<compile_context>
chip_gen: v7x
topology: tpu7x:2x2x1
jax: 0.10.0
libtpu: 0.0.40
codegen_flags: <defaults>
</compile_context>

<pallas_src>
import functools

import jax
import jax.numpy as jnp
from jax import lax
from jax.experimental import pallas as pl
from jax.experimental.pallas import tpu as pltpu


def _round_up(v, m):
    return ((v + m - 1) // m) * m


def _blk_vmem_bytes(shape, itemsize):
    """VMEM footprint of one block including (sublane, 128-lane) tile padding."""
    sub_pack = {4: 8, 2: 16, 1: 32}.get(itemsize, 8)
    lead = 1
    for d in shape[:-2]:
        lead *= d
    sub = shape[-2] if len(shape) >= 2 else 1
    lane = shape[-1]
    return lead * _round_up(sub, sub_pack) * _round_up(lane, 128) * itemsize


def _chip_budget():
    """(per-core VMEM budget bytes, prefer_multi_step) with safe fallbacks."""
    vmem_cap = 64 << 20
    got_info = False
    try:
        vmem_cap = int(pltpu.get_tpu_info().vmem_capacity_bytes)
        got_info = True
    except Exception:
        pass
    multi_tc = False
    try:
        kind = jax.devices()[0].device_kind.lower()
        multi_tc = ("v7" in kind) or ("7x" in kind)
    except Exception:
        pass
    if got_info and vmem_cap <= (80 << 20):
        multi_tc = True  # 64 MiB/TC parts have 2 TensorCores (v7x-class)
    return int(0.75 * vmem_cap), multi_tc


def _pick_batch_tile(batch, m_img, est_fn, budget, target_rows, prefer_multi_step):
    """Largest divisor of `batch` whose blocks fit the VMEM budget, keeping
    ~target_rows output rows per step; on 2-TC parts prefer >= 2 grid steps."""
    divisors = [d for d in range(1, batch + 1) if batch % d == 0]
    feasible = [d for d in divisors if est_fn(d) <= budget] or [1]
    cands = [d for d in feasible if d * m_img <= target_rows] or [feasible[0]]
    bt = max(cands)
    if prefer_multi_step:
        multi = [d for d in cands if batch // d >= 2]
        if multi:
            bt = max(multi)
    return bt


@functools.partial(jax.jit, static_argnames=("padding", "stride"))
def faster_conv2d(x, filters, biases, padding=0, stride=1):
    """JAX/Pallas equivalent of FasterConv2d.forward.

    x:       (B, C_in, H, W)           float32, NCHW (PyTorch convention)
    filters: (C_out, C_in, F, F)       float32
    biases:  (C_out,)                  float32
    returns: (B, C_out, H_out, W_out)  float32
    """
    B, C_in, H, W = x.shape
    C_out, _, F, _ = filters.shape
    P, S = int(padding), int(stride)
    H_out = (H + 2 * P - F) // S + 1
    W_out = (W + 2 * P - F) // S + 1
    H_pad, W_pad = H + 2 * P, W + 2 * P
    M_img = H_out * W_out
    K = F * F * C_in
    K_pad = _round_up(K, 128)  # lane-dense contraction dim (zero-padded rows)
    # Lane-dense output channels; 256-wide tiles only for wide layers (v6e/v7x MXU).
    N_pad = 128 if C_out <= 128 else _round_up(C_out, 256)

    # ---- wrapper-side prep: NCHW -> NHWC, spatial zero-pad, bf16 cast -------
    x_nhwc = jnp.transpose(x, (0, 2, 3, 1)).astype(jnp.bfloat16)
    x_pad = jnp.pad(x_nhwc, ((0, 0), (P, P), (P, P), (0, 0)))
    if S == 1:
        H_ph, W_ph, Cch = H_pad, W_pad, C_in
        x_in = x_pad
    else:
        # Space-to-depth phase packing so the kernel never strides over sublanes:
        # x_in[n, r, c, (a*S+b)*C_in + ci] = x_pad[n, r*S + a, c*S + b, ci]
        H_ph = -(-H_pad // S)
        W_ph = -(-W_pad // S)
        Cch = S * S * C_in
        x_ext = jnp.pad(x_pad, ((0, 0), (0, S * H_ph - H_pad),
                                (0, S * W_ph - W_pad), (0, 0)))
        x_in = x_ext.reshape(B, H_ph, S, W_ph, S, C_in)
        x_in = jnp.transpose(x_in, (0, 1, 3, 2, 4, 5)).reshape(B, H_ph, W_ph, Cch)

    # (C_out, C_in, F, F) -> (K_pad, N_pad) bf16 with k = (fi*F + fj)*C_in + ci.
    w2d = jnp.transpose(filters, (2, 3, 1, 0)).reshape(K, C_out)
    w2d = jnp.pad(w2d, ((0, K_pad - K), (0, N_pad - C_out))).astype(jnp.bfloat16)
    b2 = biases.reshape(C_out, 1).astype(jnp.float32)

    # ---- tiling / VMEM budgeting (tile-padding aware) ------------------------
    budget, multi_tc = _chip_budget()

    def est_fn(bt):
        m = bt * M_img
        blocks = (
            2 * _blk_vmem_bytes((bt, H_ph, W_ph, Cch), 2)   # x (double-buffered)
            + 2 * _blk_vmem_bytes((K_pad, N_pad), 2)        # weights
            + 2 * _blk_vmem_bytes((C_out, 1), 4)            # bias
            + 2 * _blk_vmem_bytes((bt, C_out, M_img), 4)    # output
            + _blk_vmem_bytes((m, K_pad), 2)                # im2col scratch
            + 2 * _blk_vmem_bytes((m, N_pad), 4)            # f32 acc + transpose tmp
        )
        return blocks + (2 << 20)

    target_rows = 4096 if multi_tc else 8192
    bt = _pick_batch_tile(B, M_img, est_fn, budget, target_rows, multi_tc)
    grid = (B // bt,)

    # ---- kernel ---------------------------------------------------------------
    def kernel(x_ref, w_ref, b_ref, o_ref, lhs_ref):
        # x_ref:   (bt, H_ph, W_ph, Cch) bf16    w_ref: (K_pad, N_pad) bf16
        # b_ref:   (C_out, 1) f32                o_ref: (bt, C_out, M_img) f32
        # lhs_ref: (bt*M_img, K_pad) bf16 VMEM im2col scratch
        lhs_ref[...] = jnp.zeros_like(lhs_ref)   # keep lanes >= K exactly zero
        for fi in range(F):                      # static F*F tap pack, fully unrolled
            pi, qi = fi % S, fi // S
            for fj in range(F):
                pj, qj = fj % S, fj // S
                c0 = (pi * S + pj) * C_in
                win = x_ref[:, qi:qi + H_out, qj:qj + W_out, c0:c0 + C_in]
                tap = fi * F + fj
                lhs_ref[:, tap * C_in:(tap + 1) * C_in] = (
                    win.reshape(bt * M_img, C_in))
        # Single MXU contraction over K_pad, f32 accumulation (MRB on v7x).
        acc = jnp.dot(lhs_ref[...], w_ref[...],
                      preferred_element_type=jnp.float32)    # (bt*M_img, N_pad)
        # Emit (bt, C_out, M_img): transpose on the XLU, keep only real channels,
        # add the bias once. M_img is the full dim so the store stays dense.
        for n in range(bt):
            blk = acc[n * M_img:(n + 1) * M_img, :]          # (M_img, N_pad)
            o_ref[n] = blk.T[:C_out, :] + b_ref[...]         # (C_out, M_img)

    est = est_fn(bt)
    cp_kwargs = dict(dimension_semantics=("parallel",))
    if est > (16 << 20):
        cp_kwargs["vmem_limit_bytes"] = int(min(max(est * 3 // 2, 32 << 20), budget))

    cost = pl.CostEstimate(
        flops=2 * B * M_img * K_pad * N_pad,
        transcendentals=0,
        bytes_accessed=int(B * H_ph * W_ph * Cch * 2 + K_pad * N_pad * 2
                           + C_out * 4 + B * C_out * M_img * 4),
    )

    out = pl.pallas_call(
        kernel,
        out_shape=jax.ShapeDtypeStruct((B, C_out, M_img), jnp.float32),
        grid=grid,
        in_specs=[
            pl.BlockSpec((bt, H_ph, W_ph, Cch), lambda i: (i, 0, 0, 0)),
            pl.BlockSpec((K_pad, N_pad), lambda i: (0, 0)),
            pl.BlockSpec((C_out, 1), lambda i: (0, 0)),
        ],
        out_specs=pl.BlockSpec((bt, C_out, M_img), lambda i: (i, 0, 0)),
        scratch_shapes=[pltpu.VMEM((bt * M_img, K_pad), jnp.bfloat16)],
        compiler_params=pltpu.CompilerParams(**cp_kwargs),
        cost_estimate=cost,
    )(x_in, w2d, b2)

    # (B, C_out, M_img) -> (B, C_out, H_out, W_out): free row-major split.
    return out.reshape(B, C_out, H_out, W_out)


if __name__ == "__main__":
    # Small, deterministic example matching the module's __init__ shapes.
    B, C_in, H, W = 2, 4, 16, 16
    C_out, F = 8, 3
    padding, stride = 1, 1

    key = jax.random.PRNGKey(0)
    kx, kw, kb = jax.random.split(key, 3)
    x = jax.random.normal(kx, (B, C_in, H, W), dtype=jnp.float32)
    filters = jax.random.normal(kw, (C_out, C_in, F, F), dtype=jnp.float32)
    biases = jax.random.normal(kb, (C_out,), dtype=jnp.float32)

    out = faster_conv2d(x, filters, biases, padding=padding, stride=stride)
    out = jax.block_until_ready(out)

    # Reference uses the same bf16 rounding of inputs/weights the kernel uses
    # (accumulation stays f32), so tolerances stay tight.
    xb = x.astype(jnp.bfloat16).astype(jnp.float32)
    wb = filters.astype(jnp.bfloat16).astype(jnp.float32)
    ref = lax.conv_general_dilated(
        xb, wb, window_strides=(stride, stride),
        padding=((padding, padding), (padding, padding)),
        dimension_numbers=("NCHW", "OIHW", "NCHW"),
        precision=lax.Precision.HIGHEST,
    ) + biases.reshape(1, -1, 1, 1)

    H_out = (H + 2 * padding - F) // stride + 1
    W_out = (W + 2 * padding - F) // stride + 1
    assert out.shape == (B, C_out, H_out, W_out)
    assert jnp.allclose(out, ref, atol=2e-3, rtol=2e-3)

    print("KERNEL_OK")
</pallas_src>

<mosaic_0001>
module attributes {stable_mosaic.version = 11 : i64} {
  func.func @kernel(%arg0: i32, %arg1: memref<2x18x18x4xbf16, #tpu.memory_space<vmem>>, %arg2: memref<128x128xbf16, #tpu.memory_space<vmem>>, %arg3: memref<8x1xf32, #tpu.memory_space<vmem>>, %arg4: memref<2x8x256xf32, #tpu.memory_space<vmem>>, %arg5: memref<512x128xbf16, #tpu.memory_space<vmem>>) attributes {dimension_semantics = [#tpu.dimension_semantics<parallel>], iteration_bounds = array<i64: 1>, scalar_prefetch = 0 : i64, scratch_operands = 1 : i64, tpu.core_type = #tpu.core_type<tc>, window_params = [{transform_indices = @transform_0, window_bounds = array<i64: 2, 18, 18, 4>}, {pipeline_mode = #tpu.pipeline_mode<synchronous>, transform_indices = @transform_1, window_bounds = array<i64: 128, 128>}, {pipeline_mode = #tpu.pipeline_mode<synchronous>, transform_indices = @transform_2, window_bounds = array<i64: 8, 1>}, {transform_indices = @transform_3, window_bounds = array<i64: 2, 8, 256>}]} {
    %cst = arith.constant 0.000000e+00 : bf16
    %0 = vector.broadcast %cst : bf16 to vector<512x128xbf16>
    %c0 = arith.constant 0 : index
    %c0_0 = arith.constant 0 : index
    %1 = vector.load %arg5[%c0, %c0_0] : memref<512x128xbf16, #tpu.memory_space<vmem>>, vector<512x128xbf16>
    tpu.vector_store %arg5[%c0, %c0_0], %0 {strides = array<i32>} : memref<512x128xbf16, #tpu.memory_space<vmem>>, vector<512x128xbf16>,
    %c0_1 = arith.constant 0 : index
    %c0_2 = arith.constant 0 : index
    %c0_3 = arith.constant 0 : index
    %c0_4 = arith.constant 0 : index
    %2 = vector.load %arg1[%c0_1, %c0_2, %c0_3, %c0_4] : memref<2x18x18x4xbf16, #tpu.memory_space<vmem>>, vector<2x16x16x4xbf16>
    %3 = vector.shape_cast %2 : vector<2x16x16x4xbf16> to vector<512x4xbf16>
    %c0_5 = arith.constant 0 : index
    %c0_6 = arith.constant 0 : index
    %4 = vector.load %arg5[%c0_5, %c0_6] : memref<512x128xbf16, #tpu.memory_space<vmem>>, vector<512x4xbf16>
    tpu.vector_store %arg5[%c0_5, %c0_6], %3 {strides = array<i32>} : memref<512x128xbf16, #tpu.memory_space<vmem>>, vector<512x4xbf16>,
    %c0_7 = arith.constant 0 : index
    %c0_8 = arith.constant 0 : index
    %c1 = arith.constant 1 : index
    %c0_9 = arith.constant 0 : index
    %5 = vector.load %arg1[%c0_7, %c0_8, %c1, %c0_9] : memref<2x18x18x4xbf16, #tpu.memory_space<vmem>>, vector<2x16x16x4xbf16>
    %6 = vector.shape_cast %5 : vector<2x16x16x4xbf16> to vector<512x4xbf16>
    %c0_10 = arith.constant 0 : index
    %c4 = arith.constant 4 : index
    %7 = vector.load %arg5[%c0_10, %c4] : memref<512x128xbf16, #tpu.memory_space<vmem>>, vector<512x4xbf16>
    tpu.vector_store %arg5[%c0_10, %c4], %6 {strides = array<i32>} : memref<512x128xbf16, #tpu.memory_space<vmem>>, vector<512x4xbf16>,
    %c0_11 = arith.constant 0 : index
    %c0_12 = arith.constant 0 : index
    %c2 = arith.constant 2 : index
    %c0_13 = arith.constant 0 : index
    %8 = vector.load %arg1[%c0_11, %c0_12, %c2, %c0_13] : memref<2x18x18x4xbf16, #tpu.memory_space<vmem>>, vector<2x16x16x4xbf16>
    %9 = vector.shape_cast %8 : vector<2x16x16x4xbf16> to vector<512x4xbf16>
    %c0_14 = arith.constant 0 : index
    %c8 = arith.constant 8 : index
    %10 = vector.load %arg5[%c0_14, %c8] : memref<512x128xbf16, #tpu.memory_space<vmem>>, vector<512x4xbf16>
    tpu.vector_store %arg5[%c0_14, %c8], %9 {strides = array<i32>} : memref<512x128xbf16, #tpu.memory_space<vmem>>, vector<512x4xbf16>,
    %c0_15 = arith.constant 0 : index
    %c1_16 = arith.constant 1 : index
    %c0_17 = arith.constant 0 : index
    %c0_18 = arith.constant 0 : index
    %11 = vector.load %arg1[%c0_15, %c1_16, %c0_17, %c0_18] : memref<2x18x18x4xbf16, #tpu.memory_space<vmem>>, vector<2x16x16x4xbf16>
    %12 = vector.shape_cast %11 : vector<2x16x16x4xbf16> to vector<512x4xbf16>
    %c0_19 = arith.constant 0 : index
    %c12 = arith.constant 12 : index
    %13 = vector.load %arg5[%c0_19, %c12] : memref<512x128xbf16, #tpu.memory_space<vmem>>, vector<512x4xbf16>
    tpu.vector_store %arg5[%c0_19, %c12], %12 {strides = array<i32>} : memref<512x128xbf16, #tpu.memory_space<vmem>>, vector<512x4xbf16>,
    %c0_20 = arith.constant 0 : index
    %c1_21 = arith.constant 1 : index
    %c1_22 = arith.constant 1 : index
    %c0_23 = arith.constant 0 : index
    %14 = vector.load %arg1[%c0_20, %c1_21, %c1_22, %c0_23] : memref<2x18x18x4xbf16, #tpu.memory_space<vmem>>, vector<2x16x16x4xbf16>
    %15 = vector.shape_cast %14 : vector<2x16x16x4xbf16> to vector<512x4xbf16>
    %c0_24 = arith.constant 0 : index
    %c16 = arith.constant 16 : index
    %16 = vector.load %arg5[%c0_24, %c16] : memref<512x128xbf16, #tpu.memory_space<vmem>>, vector<512x4xbf16>
    tpu.vector_store %arg5[%c0_24, %c16], %15 {strides = array<i32>} : memref<512x128xbf16, #tpu.memory_space<vmem>>, vector<512x4xbf16>,
    %c0_25 = arith.constant 0 : index
    %c1_26 = arith.constant 1 : index
    %c2_27 = arith.constant 2 : index
    %c0_28 = arith.constant 0 : index
    %17 = vector.load %arg1[%c0_25, %c1_26, %c2_27, %c0_28] : memref<2x18x18x4xbf16, #tpu.memory_space<vmem>>, vector<2x16x16x4xbf16>
    %18 = vector.shape_cast %17 : vector<2x16x16x4xbf16> to vector<512x4xbf16>
    %c0_29 = arith.constant 0 : index
    %c20 = arith.constant 20 : index
    %19 = vector.load %arg5[%c0_29, %c20] : memref<512x128xbf16, #tpu.memory_space<vmem>>, vector<512x4xbf16>
    tpu.vector_store %arg5[%c0_29, %c20], %18 {strides = array<i32>} : memref<512x128xbf16, #tpu.memory_space<vmem>>, vector<512x4xbf16>,
    %c0_30 = arith.constant 0 : index
    %c2_31 = arith.constant 2 : index
    %c0_32 = arith.constant 0 : index
    %c0_33 = arith.constant 0 : index
    %20 = vector.load %arg1[%c0_30, %c2_31, %c0_32, %c0_33] : memref<2x18x18x4xbf16, #tpu.memory_space<vmem>>, vector<2x16x16x4xbf16>
    %21 = vector.shape_cast %20 : vector<2x16x16x4xbf16> to vector<512x4xbf16>
    %c0_34 = arith.constant 0 : index
    %c24 = arith.constant 24 : index
    %22 = vector.load %arg5[%c0_34, %c24] : memref<512x128xbf16, #tpu.memory_space<vmem>>, vector<512x4xbf16>
    tpu.vector_store %arg5[%c0_34, %c24], %21 {strides = array<i32>} : memref<512x128xbf16, #tpu.memory_space<vmem>>, vector<512x4xbf16>,
    %c0_35 = arith.constant 0 : index
    %c2_36 = arith.constant 2 : index
    %c1_37 = arith.constant 1 : index
    %c0_38 = arith.constant 0 : index
    %23 = vector.load %arg1[%c0_35, %c2_36, %c1_37, %c0_38] : memref<2x18x18x4xbf16, #tpu.memory_space<vmem>>, vector<2x16x16x4xbf16>
    %24 = vector.shape_cast %23 : vector<2x16x16x4xbf16> to vector<512x4xbf16>
    %c0_39 = arith.constant 0 : index
    %c28 = arith.constant 28 : index
    %25 = vector.load %arg5[%c0_39, %c28] : memref<512x128xbf16, #tpu.memory_space<vmem>>, vector<512x4xbf16>
    tpu.vector_store %arg5[%c0_39, %c28], %24 {strides = array<i32>} : memref<512x128xbf16, #tpu.memory_space<vmem>>, vector<512x4xbf16>,
    %c0_40 = arith.constant 0 : index
    %c2_41 = arith.constant 2 : index
    %c2_42 = arith.constant 2 : index
    %c0_43 = arith.constant 0 : index
    %26 = vector.load %arg1[%c0_40, %c2_41, %c2_42, %c0_43] : memref<2x18x18x4xbf16, #tpu.memory_space<vmem>>, vector<2x16x16x4xbf16>
    %27 = vector.shape_cast %26 : vector<2x16x16x4xbf16> to vector<512x4xbf16>
    %c0_44 = arith.constant 0 : index
    %c32 = arith.constant 32 : index
    %28 = vector.load %arg5[%c0_44, %c32] : memref<512x128xbf16, #tpu.memory_space<vmem>>, vector<512x4xbf16>
    tpu.vector_store %arg5[%c0_44, %c32], %27 {strides = array<i32>} : memref<512x128xbf16, #tpu.memory_space<vmem>>, vector<512x4xbf16>,
    %c0_45 = arith.constant 0 : index
    %c0_46 = arith.constant 0 : index
    %29 = vector.load %arg5[%c0_45, %c0_46] : memref<512x128xbf16, #tpu.memory_space<vmem>>, vector<512x128xbf16>
    %c0_47 = arith.constant 0 : index
    %c0_48 = arith.constant 0 : index
    %30 = vector.load %arg2[%c0_47, %c0_48] : memref<128x128xbf16, #tpu.memory_space<vmem>>, vector<128x128xbf16>
    %cst_49 = arith.constant dense<0.000000e+00> : vector<512x128xf32>
    %31 = tpu.matmul %29, %30, %cst_49 {dimension_numbers = #tpu.dot_dimension_numbers<[1], [0], [0], [1], [0, 0, 1, 1], [], []>} : vector<512x128xbf16>, vector<128x128xbf16>, vector<512x128xf32> -> vector<512x128xf32>
    %32 = vector.extract_strided_slice %31 {offsets = [0, 0], sizes = [256, 128], strides = [1, 1]} : vector<512x128xf32> to vector<256x128xf32>
    %33 = tpu.transpose %32, [1, 0] : vector<256x128xf32> -> vector<128x256xf32>
    %34 = vector.extract_strided_slice %33 {offsets = [0, 0], sizes = [8, 256], strides = [1, 1]} : vector<128x256xf32> to vector<8x256xf32>
    %c0_50 = arith.constant 0 : index
    %c0_51 = arith.constant 0 : index
    %35 = vector.load %arg3[%c0_50, %c0_51] : memref<8x1xf32, #tpu.memory_space<vmem>>, vector<8x1xf32>
    %36 = vector.broadcast %35 : vector<8x1xf32> to vector<8x256xf32>
    %37 = arith.addf %34, %36 : vector<8x256xf32>
    %c0_52 = arith.constant 0 : index
    %c0_53 = arith.constant 0 : index
    %c0_54 = arith.constant 0 : index
    %38 = vector.load %arg4[%c0_52, %c0_53, %c0_54] : memref<2x8x256xf32, #tpu.memory_space<vmem>>, vector<1x8x256xf32>
    %39 = vector.shape_cast %38 : vector<1x8x256xf32> to vector<8x256xf32>
    %40 = vector.shape_cast %37 : vector<8x256xf32> to vector<1x8x256xf32>
    tpu.vector_store %arg4[%c0_52, %c0_53, %c0_54], %40 {strides = array<i32>} : memref<2x8x256xf32, #tpu.memory_space<vmem>>, vector<1x8x256xf32>,
    %41 = vector.extract_strided_slice %31 {offsets = [256, 0], sizes = [256, 128], strides = [1, 1]} : vector<512x128xf32> to vector<256x128xf32>
    %42 = tpu.transpose %41, [1, 0] : vector<256x128xf32> -> vector<128x256xf32>
    %43 = vector.extract_strided_slice %42 {offsets = [0, 0], sizes = [8, 256], strides = [1, 1]} : vector<128x256xf32> to vector<8x256xf32>
    %c0_55 = arith.constant 0 : index
    %c0_56 = arith.constant 0 : index
    %44 = vector.load %arg3[%c0_55, %c0_56] : memref<8x1xf32, #tpu.memory_space<vmem>>, vector<8x1xf32>
    %45 = vector.broadcast %44 : vector<8x1xf32> to vector<8x256xf32>
    %46 = arith.addf %43, %45 : vector<8x256xf32>
    %c1_57 = arith.constant 1 : index
    %c0_58 = arith.constant 0 : index
    %c0_59 = arith.constant 0 : index
    %47 = vector.load %arg4[%c1_57, %c0_58, %c0_59] : memref<2x8x256xf32, #tpu.memory_space<vmem>>, vector<1x8x256xf32>
    %48 = vector.shape_cast %47 : vector<1x8x256xf32> to vector<8x256xf32>
    %49 = vector.shape_cast %46 : vector<8x256xf32> to vector<1x8x256xf32>
    tpu.vector_store %arg4[%c1_57, %c0_58, %c0_59], %49 {strides = array<i32>} : memref<2x8x256xf32, #tpu.memory_space<vmem>>, vector<1x8x256xf32>,
    return
  }
  func.func @transform_0(%arg0: i32) -> (i32, i32, i32, i32) {
    %c0_i32 = arith.constant 0 : i32
    %c0_i32_0 = arith.constant 0 : i32
    %c0_i32_1 = arith.constant 0 : i32
    %c0_i32_2 = arith.constant 0 : i32
    return %arg0, %c0_i32, %c0_i32_0, %c0_i32_1 : i32, i32, i32, i32
  }
  func.func @transform_1(%arg0: i32) -> (i32, i32) {
    %c0_i32 = arith.constant 0 : i32
    %c0_i32_0 = arith.constant 0 : i32
    %c0_i32_1 = arith.constant 0 : i32
    return %c0_i32, %c0_i32_0 : i32, i32
  }
  func.func @transform_2(%arg0: i32) -> (i32, i32) {
    %c0_i32 = arith.constant 0 : i32
    %c0_i32_0 = arith.constant 0 : i32
    %c0_i32_1 = arith.constant 0 : i32
    return %c0_i32, %c0_i32_0 : i32, i32
  }
  func.func @transform_3(%arg0: i32) -> (i32, i32, i32) {
    %c0_i32 = arith.constant 0 : i32
    %c0_i32_0 = arith.constant 0 : i32
    %c0_i32_1 = arith.constant 0 : i32
    return %arg0, %c0_i32, %c0_i32_0 : i32, i32, i32
  }
}

</mosaic_0001>

<llo_original>
// kernel: faster_conv2d.1
$region0: #{faster_conv2d.1}
  #allocation0 [shape = 'u32[]', space=smem, size = 0x4, offset = 0x4, fixed_abs, tag = 'smem constant byte address 0x4 - core index']
  #allocation1 [shape = 'u32[144,128]{1,0:T(1,128)}', space=vmem, size = 0x12000, scoped, tag = 'internal scratch']
  #allocation2 [shape = 'bf16[512,128]{1,0:T(16,128)(2,1)}', space=vmem, size = 0x20000, scoped, tag = 'scratch operand']
  %s0 = inlined_call_operand.vmem [shape: bf16[2,18,18,4], index: 0, kind: input, shape index: {}]
  %s1 = inlined_call_operand.vmem [shape: bf16[128,128], index: 1, kind: input, shape index: {}]
  %s2 = inlined_call_operand.vmem [shape: f32[8,1], index: 2, kind: input, shape index: {}]
  %s3 = inlined_call_operand.vmem [shape: f32[2,8,256], index: 3, kind: output, shape index: {}]
  %s4 = sld [smem:[#allocation0]]
  $region22: #{faster_conv2d.1} parent=0
    _
  %s6 = ssub.s32 1, %s4
  %s7 = scalar_select 0, %s6, %s4
  // Predicated region
  $region2: #{faster_conv2d.1} parent=0 // pred_check
    _
  $region3: #{faster_conv2d.1} parent=0 // pred_check_branch
    %9 = sbr.rel (0) target = $region5
  $region4: #{faster_conv2d.1} parent=0 // pred_region
    _
  $region5: #{faster_conv2d.1} parent=0 // pred_fallthru
    _
  // Predicated region
  $region6: #{faster_conv2d.1} parent=0 // pred_check
    _
  $region7: #{faster_conv2d.1} parent=0 // pred_check_branch
    %11 = sbr.rel (0) target = $region9
  $region8: #{faster_conv2d.1} parent=0 // pred_region
    _
  $region9: #{faster_conv2d.1} parent=0 // pred_fallthru
    _
  // Predicated region
  $region10: #{faster_conv2d.1} parent=0 // pred_check
    _
  $region11: #{faster_conv2d.1} parent=0 // pred_check_branch
    %13 = sbr.rel (0) target = $region13
  $region12: #{faster_conv2d.1} parent=0 // pred_region
    _
  $region13: #{faster_conv2d.1} parent=0 // pred_fallthru
    _
  %15 = vst [vmem:[#allocation2] sm:$0xff] 0
  %16 = vst [vmem:[#allocation2 + $0x8] sm:$0xff] 0
  %17 = vst [vmem:[#allocation2 + $0x10] sm:$0xff] 0
  %18 = vst [vmem:[#allocation2 + $0x18] sm:$0xff] 0
  %19 = vst [vmem:[#allocation2 + $0x20] sm:$0xff] 0
  %20 = vst [vmem:[#allocation2 + $0x28] sm:$0xff] 0
  %21 = vst [vmem:[#allocation2 + $0x30] sm:$0xff] 0
  %22 = vst [vmem:[#allocation2 + $0x38] sm:$0xff] 0
  %23 = vst [vmem:[#allocation2 + $0x40] sm:$0xff] 0
  %24 = vst [vmem:[#allocation2 + $0x48] sm:$0xff] 0
  %25 = vst [vmem:[#allocation2 + $0x50] sm:$0xff] 0
  %26 = vst [vmem:[#allocation2 + $0x58] sm:$0xff] 0
  %27 = vst [vmem:[#allocation2 + $0x60] sm:$0xff] 0
  %28 = vst [vmem:[#allocation2 + $0x68] sm:$0xff] 0
  %29 = vst [vmem:[#allocation2 + $0x70] sm:$0xff] 0
  %30 = vst [vmem:[#allocation2 + $0x78] sm:$0xff] 0
  %31 = vst [vmem:[#allocation2 + $0x80] sm:$0xff] 0
  %32 = vst [vmem:[#allocation2 + $0x88] sm:$0xff] 0
  %33 = vst [vmem:[#allocation2 + $0x90] sm:$0xff] 0
  %34 = vst [vmem:[#allocation2 + $0x98] sm:$0xff] 0
  %35 = vst [vmem:[#allocation2 + $0xa0] sm:$0xff] 0
  %36 = vst [vmem:[#allocation2 + $0xa8] sm:$0xff] 0
  %37 = vst [vmem:[#allocation2 + $0xb0] sm:$0xff] 0
  %38 = vst [vmem:[#allocation2 + $0xb8] sm:$0xff] 0
  %39 = vst [vmem:[#allocation2 + $0xc0] sm:$0xff] 0
  %40 = vst [vmem:[#allocation2 + $0xc8] sm:$0xff] 0
  %41 = vst [vmem:[#allocation2 + $0xd0] sm:$0xff] 0
  %42 = vst [vmem:[#allocation2 + $0xd8] sm:$0xff] 0
  %43 = vst [vmem:[#allocation2 + $0xe0] sm:$0xff] 0
  %44 = vst [vmem:[#allocation2 + $0xe8] sm:$0xff] 0
  %45 = vst [vmem:[#allocation2 + $0xf0] sm:$0xff] 0
  %46 = vst [vmem:[#allocation2 + $0xf8] sm:$0xff] 0
  %v47 = vld [vmem:[%s0] sm:$0xf]
  %v48 = vld [vmem:[%s0 + $0x4] sm:$0xf]
  %v49 = vld [vmem:[%s0 + $0xc] sm:$0xf]
  %v50 = vld [vmem:[%s0 + $0x10] sm:$0xf]
  %v51 = vld [vmem:[%s0 + $0x18] sm:$0xf]
  %v52 = vld [vmem:[%s0 + $0x1c] sm:$0xf]
  %v53 = vld [vmem:[%s0 + $0x24] sm:$0xf]
  %v54 = vld [vmem:[%s0 + $0x28] sm:$0xf]
  %v55 = vld [vmem:[%s0 + $0x30] sm:$0xf]
  %v56 = vld [vmem:[%s0 + $0x34] sm:$0xf]
  %v57 = vld [vmem:[%s0 + $0x3c] sm:$0xf]
  %v58 = vld [vmem:[%s0 + $0x40] sm:$0xf]
  %v59 = vld [vmem:[%s0 + $0x48] sm:$0xf]
  %v60 = vld [vmem:[%s0 + $0x4c] sm:$0xf]
  %v61 = vld [vmem:[%s0 + $0x54] sm:$0xf]
  %v62 = vld [vmem:[%s0 + $0x58] sm:$0xf]
  %v63 = vld [vmem:[%s0 + $0x60] sm:$0xf]
  %v64 = vld [vmem:[%s0 + $0x64] sm:$0xf]
  %v65 = vld [vmem:[%s0 + $0x6c] sm:$0xf]
  %v66 = vld [vmem:[%s0 + $0x70] sm:$0xf]
  %v67 = vld [vmem:[%s0 + $0x78] sm:$0xf]
  %v68 = vld [vmem:[%s0 + $0x7c] sm:$0xf]
  %v69 = vld [vmem:[%s0 + $0x84] sm:$0xf]
  %v70 = vld [vmem:[%s0 + $0x88] sm:$0xf]
  %v71 = vld [vmem:[%s0 + $0x90] sm:$0xf]
  %v72 = vld [vmem:[%s0 + $0x94] sm:$0xf]
  %v73 = vld [vmem:[%s0 + $0x9c] sm:$0xf]
  %v74 = vld [vmem:[%s0 + $0xa0] sm:$0xf]
  %v75 = vld [vmem:[%s0 + $0xa8] sm:$0xf]
  %v76 = vld [vmem:[%s0 + $0xac] sm:$0xf]
  %v77 = vld [vmem:[%s0 + $0xb4] sm:$0xf]
  %v78 = vld [vmem:[%s0 + $0xb8] sm:$0xf]
  %v79 = vld [vmem:[%s0 + $0xd8] sm:$0xf]
  %v80 = vld [vmem:[%s0 + $0xdc] sm:$0xf]
  %v81 = vld [vmem:[%s0 + $0xe4] sm:$0xf]
  %v82 = vld [vmem:[%s0 + $0xe8] sm:$0xf]
  %v83 = vld [vmem:[%s0 + $0xf0] sm:$0xf]
  %v84 = vld [vmem:[%s0 + $0xf4] sm:$0xf]
  %v85 = vld [vmem:[%s0 + $0xfc] sm:$0xf]
  %v86 = vld [vmem:[%s0 + $0x100] sm:$0xf]
  %v87 = vld [vmem:[%s0 + $0x108] sm:$0xf]
  %v88 = vld [vmem:[%s0 + $0x10c] sm:$0xf]
  %v89 = vld [vmem:[%s0 + $0x114] sm:$0xf]
  %v90 = vld [vmem:[%s0 + $0x118] sm:$0xf]
  %v91 = vld [vmem:[%s0 + $0x120] sm:$0xf]
  %v92 = vld [vmem:[%s0 + $0x124] sm:$0xf]
  %v93 = vld [vmem:[%s0 + $0x12c] sm:$0xf]
  %v94 = vld [vmem:[%s0 + $0x130] sm:$0xf]
  %v95 = vld [vmem:[%s0 + $0x138] sm:$0xf]
  %v96 = vld [vmem:[%s0 + $0x13c] sm:$0xf]
  %v97 = vld [vmem:[%s0 + $0x144] sm:$0xf]
  %v98 = vld [vmem:[%s0 + $0x148] sm:$0xf]
  %v99 = vld [vmem:[%s0 + $0x150] sm:$0xf]
  %v100 = vld [vmem:[%s0 + $0x154] sm:$0xf]
  %v101 = vld [vmem:[%s0 + $0x15c] sm:$0xf]
  %v102 = vld [vmem:[%s0 + $0x160] sm:$0xf]
  %v103 = vld [vmem:[%s0 + $0x168] sm:$0xf]
  %v104 = vld [vmem:[%s0 + $0x16c] sm:$0xf]
  %v105 = vld [vmem:[%s0 + $0x174] sm:$0xf]
  %v106 = vld [vmem:[%s0 + $0x178] sm:$0xf]
  %v107 = vld [vmem:[%s0 + $0x180] sm:$0xf]
  %v108 = vld [vmem:[%s0 + $0x184] sm:$0xf]
  %v109 = vld [vmem:[%s0 + $0x18c] sm:$0xf]
  %v110 = vld [vmem:[%s0 + $0x190] sm:$0xf]
  %v175 = vunpack.c.l.b16 %v47
  %v176 = vunpack.c.l.b16 %v48
  %v177 = vunpack.c.l.b16 %v49
  %v178 = vunpack.c.l.b16 %v50
  %v179 = vunpack.c.l.b16 %v51
  %v180 = vunpack.c.l.b16 %v52
  %v181 = vunpack.c.l.b16 %v53
  %v182 = vunpack.c.l.b16 %v54
  %v183 = vunpack.c.l.b16 %v55
  %v184 = vunpack.c.l.b16 %v56
  %v185 = vunpack.c.l.b16 %v57
  %v186 = vunpack.c.l.b16 %v58
  %v187 = vunpack.c.l.b16 %v59
  %v188 = vunpack.c.l.b16 %v60
  %v189 = vunpack.c.l.b16 %v61
  %v190 = vunpack.c.l.b16 %v62
  %v191 = vunpack.c.l.b16 %v63
  %v192 = vunpack.c.l.b16 %v64
  %v193 = vunpack.c.l.b16 %v65
  %v194 = vunpack.c.l.b16 %v66
  %v195 = vunpack.c.l.b16 %v67
  %v196 = vunpack.c.l.b16 %v68
  %v197 = vunpack.c.l.b16 %v69
  %v198 = vunpack.c.l.b16 %v70
  %v199 = vunpack.c.l.b16 %v71
  %v200 = vunpack.c.l.b16 %v72
  %v201 = vunpack.c.l.b16 %v73
  %v202 = vunpack.c.l.b16 %v74
  %v203 = vunpack.c.l.b16 %v75
  %v204 = vunpack.c.l.b16 %v76
  %v205 = vunpack.c.l.b16 %v77
  %v206 = vunpack.c.l.b16 %v78
  %v207 = vunpack.c.l.b16 %v79
  %v208 = vunpack.c.l.b16 %v80
  %v209 = vunpack.c.l.b16 %v81
  %v210 = vunpack.c.l.b16 %v82
  %v211 = vunpack.c.l.b16 %v83
  %v212 = vunpack.c.l.b16 %v84
  %v213 = vunpack.c.l.b16 %v85
  %v214 = vunpack.c.l.b16 %v86
  %v215 = vunpack.c.l.b16 %v87
  %v216 = vunpack.c.l.b16 %v88
  %v217 = vunpack.c.l.b16 %v89
  %v218 = vunpack.c.l.b16 %v90
  %v219 = vunpack.c.l.b16 %v91
  %v220 = vunpack.c.l.b16 %v92
  %v221 = vunpack.c.l.b16 %v93
  %v222 = vunpack.c.l.b16 %v94
  %v223 = vunpack.c.l.b16 %v95
  %v224 = vunpack.c.l.b16 %v96
  %v225 = vunpack.c.l.b16 %v97
  %v226 = vunpack.c.l.b16 %v98
  %v227 = vunpack.c.l.b16 %v99
  %v228 = vunpack.c.l.b16 %v100
  %v229 = vunpack.c.l.b16 %v101
  %v230 = vunpack.c.l.b16 %v102
  %v231 = vunpack.c.l.b16 %v103
  %v232 = vunpack.c.l.b16 %v104
  %v233 = vunpack.c.l.b16 %v105
  %v234 = vunpack.c.l.b16 %v106
  %v235 = vunpack.c.l.b16 %v107
  %v236 = vunpack.c.l.b16 %v108
  %v237 = vunpack.c.l.b16 %v109
  %v238 = vunpack.c.l.b16 %v110
  %v239 = vpack.c.b16 %v176, %v175
  %v240 = vpack.c.b16 %v178, %v177
  %v241 = vpack.c.b16 %v180, %v179
  %v242 = vpack.c.b16 %v182, %v181
  %v243 = vpack.c.b16 %v184, %v183
  %v244 = vpack.c.b16 %v186, %v185
  %v245 = vpack.c.b16 %v188, %v187
  %v246 = vpack.c.b16 %v190, %v189
  %v247 = vpack.c.b16 %v192, %v191
  %v248 = vpack.c.b16 %v194, %v193
  %v249 = vpack.c.b16 %v196, %v195
  %v250 = vpack.c.b16 %v198, %v197
  %v251 = vpack.c.b16 %v200, %v199
  %v252 = vpack.c.b16 %v202, %v201
  %v253 = vpack.c.b16 %v204, %v203
  %v254 = vpack.c.b16 %v206, %v205
  %v255 = vpack.c.b16 %v208, %v207
  %v256 = vpack.c.b16 %v210, %v209
  %v257 = vpack.c.b16 %v212, %v211
  %v258 = vpack.c.b16 %v214, %v213
  %v259 = vpack.c.b16 %v216, %v215
  %v260 = vpack.c.b16 %v218, %v217
  %v261 = vpack.c.b16 %v220, %v219
  %v262 = vpack.c.b16 %v222, %v221
  %v263 = vpack.c.b16 %v224, %v223
  %v264 = vpack.c.b16 %v226, %v225
  %v265 = vpack.c.b16 %v228, %v227
  %v266 = vpack.c.b16 %v230, %v229
  %v267 = vpack.c.b16 %v232, %v231
  %v268 = vpack.c.b16 %v234, %v233
  %v269 = vpack.c.b16 %v236, %v235
  %v270 = vpack.c.b16 %v238, %v237
  %vm303 = vcmask 31744
  %304 = vst.msk [vmem:[#allocation2] sm:$0xff] %vm303, %v239
  %305 = vst.msk [vmem:[#allocation2 + $0x8] sm:$0xff] %vm303, %v240
  %306 = vst.msk [vmem:[#allocation2 + $0x10] sm:$0xff] %vm303, %v241
  %307 = vst.msk [vmem:[#allocation2 + $0x18] sm:$0xff] %vm303, %v242
  %308 = vst.msk [vmem:[#allocation2 + $0x20] sm:$0xff] %vm303, %v243
  %309 = vst.msk [vmem:[#allocation2 + $0x28] sm:$0xff] %vm303, %v244
  %310 = vst.msk [vmem:[#allocation2 + $0x30] sm:$0xff] %vm303, %v245
  %311 = vst.msk [vmem:[#allocation2 + $0x38] sm:$0xff] %vm303, %v246
  %312 = vst.msk [vmem:[#allocation2 + $0x40] sm:$0xff] %vm303, %v247
  %313 = vst.msk [vmem:[#allocation2 + $0x48] sm:$0xff] %vm303, %v248
  %314 = vst.msk [vmem:[#allocation2 + $0x50] sm:$0xff] %vm303, %v249
  %315 = vst.msk [vmem:[#allocation2 + $0x58] sm:$0xff] %vm303, %v250
  %316 = vst.msk [vmem:[#allocation2 + $0x60] sm:$0xff] %vm303, %v251
  %317 = vst.msk [vmem:[#allocation2 + $0x68] sm:$0xff] %vm303, %v252
  %318 = vst.msk [vmem:[#allocation2 + $0x70] sm:$0xff] %vm303, %v253
  %319 = vst.msk [vmem:[#allocation2 + $0x78] sm:$0xff] %vm303, %v254
  %320 = vst.msk [vmem:[#allocation2 + $0x80] sm:$0xff] %vm303, %v255
  %321 = vst.msk [vmem:[#allocation2 + $0x88] sm:$0xff] %vm303, %v256
  %322 = vst.msk [vmem:[#allocation2 + $0x90] sm:$0xff] %vm303, %v257
  %323 = vst.msk [vmem:[#allocation2 + $0x98] sm:$0xff] %vm303, %v258
  %324 = vst.msk [vmem:[#allocation2 + $0xa0] sm:$0xff] %vm303, %v259
  %325 = vst.msk [vmem:[#allocation2 + $0xa8] sm:$0xff] %vm303, %v260
  %326 = vst.msk [vmem:[#allocation2 + $0xb0] sm:$0xff] %vm303, %v261
  %327 = vst.msk [vmem:[#allocation2 + $0xb8] sm:$0xff] %vm303, %v262
  %328 = vst.msk [vmem:[#allocation2 + $0xc0] sm:$0xff] %vm303, %v263
  %329 = vst.msk [vmem:[#allocation2 + $0xc8] sm:$0xff] %vm303, %v264
  %330 = vst.msk [vmem:[#allocation2 + $0xd0] sm:$0xff] %vm303, %v265
  %331 = vst.msk [vmem:[#allocation2 + $0xd8] sm:$0xff] %vm303, %v266
  %332 = vst.msk [vmem:[#allocation2 + $0xe0] sm:$0xff] %vm303, %v267
  %333 = vst.msk [vmem:[#allocation2 + $0xe8] sm:$0xff] %vm303, %v268
  %334 = vst.msk [vmem:[#allocation2 + $0xf0] sm:$0xff] %vm303, %v269
  %335 = vst.msk [vmem:[#allocation2 + $0xf8] sm:$0xff] %vm303, %v270
  %v336 = vld [vmem:[%s0] sm:$0xf]
  %v337 = vld [vmem:[%s0 + $0x4] sm:$0xf]
  %v338 = vld [vmem:[%s0 + $0x8] sm:$0x1]
  %v339 = vld [vmem:[%s0 + $0xc] sm:$0xf]
  %v340 = vld [vmem:[%s0 + $0x10] sm:$0xf]
  %v341 = vld [vmem:[%s0 + $0x14] sm:$0x1]
  %v342 = vld [vmem:[%s0 + $0x18] sm:$0xf]
  %v343 = vld [vmem:[%s0 + $0x1c] sm:$0xf]
  %v344 = vld [vmem:[%s0 + $0x20] sm:$0x1]
  %v345 = vld [vmem:[%s0 + $0x24] sm:$0xf]
  %v346 = vld [vmem:[%s0 + $0x28] sm:$0xf]
  %v347 = vld [vmem:[%s0 + $0x2c] sm:$0x1]
  %v348 = vld [vmem:[%s0 + $0x30] sm:$0xf]
  %v349 = vld [vmem:[%s0 + $0x34] sm:$0xf]
  %v350 = vld [vmem:[%s0 + $0x38] sm:$0x1]
  %v351 = vld [vmem:[%s0 + $0x3c] sm:$0xf]
  %v352 = vld [vmem:[%s0 + $0x40] sm:$0xf]
  %v353 = vld [vmem:[%s0 + $0x44] sm:$0x1]
  %v354 = vld [vmem:[%s0 + $0x48] sm:$0xf]
  %v355 = vld [vmem:[%s0 + $0x4c] sm:$0xf]
  %v356 = vld [vmem:[%s0 + $0x50] sm:$0x1]
  %v357 = vld [vmem:[%s0 + $0x54] sm:$0xf]
  %v358 = vld [vmem:[%s0 + $0x58] sm:$0xf]
  %v359 = vld [vmem:[%s0 + $0x5c] sm:$0x1]
  %v360 = vld [vmem:[%s0 + $0x60] sm:$0xf]
  %v361 = vld [vmem:[%s0 + $0x64] sm:$0xf]
  %v362 = vld [vmem:[%s0 + $0x68] sm:$0x1]
  %v363 = vld [vmem:[%s0 + $0x6c] sm:$0xf]
  %v364 = vld [vmem:[%s0 + $0x70] sm:$0xf]
  %v365 = vld [vmem:[%s0 + $0x74] sm:$0x1]
  %v366 = vld [vmem:[%s0 + $0x78] sm:$0xf]
  %v367 = vld [vmem:[%s0 + $0x7c] sm:$0xf]
  %v368 = vld [vmem:[%s0 + $0x80] sm:$0x1]
  %v369 = vld [vmem:[%s0 + $0x84] sm:$0xf]
  %v370 = vld [vmem:[%s0 + $0x88] sm:$0xf]
  %v371 = vld [vmem:[%s0 + $0x8c] sm:$0x1]
  %v372 = vld [vmem:[%s0 + $0x90] sm:$0xf]
  %v373 = vld [vmem:[%s0 + $0x94] sm:$0xf]
  %v374 = vld [vmem:[%s0 + $0x98] sm:$0x1]
  %v375 = vld [vmem:[%s0 + $0x9c] sm:$0xf]
  %v376 = vld [vmem:[%s0 + $0xa0] sm:$0xf]
  %v377 = vld [vmem:[%s0 + $0xa4] sm:$0x1]
  %v378 = vld [vmem:[%s0 + $0xa8] sm:$0xf]
  %v379 = vld [vmem:[%s0 + $0xac] sm:$0xf]
  %v380 = vld [vmem:[%s0 + $0xb0] sm:$0x1]
  %v381 = vld [vmem:[%s0 + $0xb4] sm:$0xf]
  %v382 = vld [vmem:[%s0 + $0xb8] sm:$0xf]
  %v383 = vld [vmem:[%s0 + $0xbc] sm:$0x1]
  %v384 = vld [vmem:[%s0 + $0xd8] sm:$0xf]
  %v385 = vld [vmem:[%s0 + $0xdc] sm:$0xf]
  %v386 = vld [vmem:[%s0 + $0xe0] sm:$0x1]
  %v387 = vld [vmem:[%s0 + $0xe4] sm:$0xf]
  %v388 = vld [vmem:[%s0 + $0xe8] sm:$0xf]
  %v389 = vld [vmem:[%s0 + $0xec] sm:$0x1]
  %v390 = vld [vmem:[%s0 + $0xf0] sm:$0xf]
  %v391 = vld [vmem:[%s0 + $0xf4] sm:$0xf]
  %v392 = vld [vmem:[%s0 + $0xf8] sm:$0x1]
  %v393 = vld [vmem:[%s0 + $0xfc] sm:$0xf]
  %v394 = vld [vmem:[%s0 + $0x100] sm:$0xf]
  %v395 = vld [vmem:[%s0 + $0x104] sm:$0x1]
  %v396 = vld [vmem:[%s0 + $0x108] sm:$0xf]
  %v397 = vld [vmem:[%s0 + $0x10c] sm:$0xf]
  %v398 = vld [vmem:[%s0 + $0x110] sm:$0x1]
  %v399 = vld [vmem:[%s0 + $0x114] sm:$0xf]
  %v400 = vld [vmem:[%s0 + $0x118] sm:$0xf]
  %v401 = vld [vmem:[%s0 + $0x11c] sm:$0x1]
  %v402 = vld [vmem:[%s0 + $0x120] sm:$0xf]
  %v403 = vld [vmem:[%s0 + $0x124] sm:$0xf]
  %v404 = vld [vmem:[%s0 + $0x128] sm:$0x1]
  %v405 = vld [vmem:[%s0 + $0x12c] sm:$0xf]
  %v406 = vld [vmem:[%s0 + $0x130] sm:$0xf]
  %v407 = vld [vmem:[%s0 + $0x134] sm:$0x1]
  %v408 = vld [vmem:[%s0 + $0x138] sm:$0xf]
  %v409 = vld [vmem:[%s0 + $0x13c] sm:$0xf]
  %v410 = vld [vmem:[%s0 + $0x140] sm:$0x1]
  %v411 = vld [vmem:[%s0 + $0x144] sm:$0xf]
  %v412 = vld [vmem:[%s0 + $0x148] sm:$0xf]
  %v413 = vld [vmem:[%s0 + $0x14c] sm:$0x1]
  %v414 = vld [vmem:[%s0 + $0x150] sm:$0xf]
  %v415 = vld [vmem:[%s0 + $0x154] sm:$0xf]
  %v416 = vld [vmem:[%s0 + $0x158] sm:$0x1]
  %v417 = vld [vmem:[%s0 + $0x15c] sm:$0xf]
  %v418 = vld [vmem:[%s0 + $0x160] sm:$0xf]
  %v419 = vld [vmem:[%s0 + $0x164] sm:$0x1]
  %v420 = vld [vmem:[%s0 + $0x168] sm:$0xf]
  %v421 = vld [vmem:[%s0 + $0x16c] sm:$0xf]
  %v422 = vld [vmem:[%s0 + $0x170] sm:$0x1]
  %v423 = vld [vmem:[%s0 + $0x174] sm:$0xf]
  %v424 = vld [vmem:[%s0 + $0x178] sm:$0xf]
  %v425 = vld [vmem:[%s0 + $0x17c] sm:$0x1]
  %v426 = vld [vmem:[%s0 + $0x180] sm:$0xf]
  %v427 = vld [vmem:[%s0 + $0x184] sm:$0xf]
  %v428 = vld [vmem:[%s0 + $0x188] sm:$0x1]
  %v429 = vld [vmem:[%s0 + $0x18c] sm:$0xf]
  %v430 = vld [vmem:[%s0 + $0x190] sm:$0xf]
  %v431 = vld [vmem:[%s0 + $0x194] sm:$0x1]
  %vm432 = vsmask.f32 3328
  %vm433 = vsmask.f32 7440
  %vm434 = vmor %vm432, %vm433
  %v436 = vshrl.u32 %v336, 16
  %v438 = vrot.slane %v436, 4
  %v439 = vshll.u32 %v336, 16
  %v441 = vrot.slane %v439, 5
  %v442 = vor.u32 %v438, %v441
  %v443 = vrot.slane %v442, 4
  %v445 = vshll.u32 %v337, 16
  %v447 = vrot.slane %v445, 5
  %v448 = vsel %vm434, %v443, %v447
  %v449 = vshrl.u32 %v337, 16
  %v451 = vrot.slane %v449, 4
  %v452 = vor.u32 %v451, %v447
  %v453 = vrot.slane %v452, 4
  %v455 = vshll.u32 %v338, 16
  %v457 = vrot.slane %v455, 5
  %v458 = vsel %vm434, %v453, %v457
  %v460 = vshrl.u32 %v339, 16
  %v462 = vrot.slane %v460, 4
  %v463 = vshll.u32 %v339, 16
  %v465 = vrot.slane %v463, 5
  %v466 = vor.u32 %v462, %v465
  %v467 = vrot.slane %v466, 4
  %v469 = vshll.u32 %v340, 16
  %v471 = vrot.slane %v469, 5
  %v472 = vsel %vm434, %v467, %v471
  %v473 = vshrl.u32 %v340, 16
  %v475 = vrot.slane %v473, 4
  %v476 = vor.u32 %v475, %v471
  %v477 = vrot.slane %v476, 4
  %v479 = vshll.u32 %v341, 16
  %v481 = vrot.slane %v479, 5
  %v482 = vsel %vm434, %v477, %v481
  %v484 = vshrl.u32 %v342, 16
  %v486 = vrot.slane %v484, 4
  %v487 = vshll.u32 %v342, 16
  %v489 = vrot.slane %v487, 5
  %v490 = vor.u32 %v486, %v489
  %v491 = vrot.slane %v490, 4
  %v493 = vshll.u32 %v343, 16
  %v495 = vrot.slane %v493, 5
  %v496 = vsel %vm434, %v491, %v495
  %v497 = vshrl.u32 %v343, 16
  %v499 = vrot.slane %v497, 4
  %v500 = vor.u32 %v499, %v495
  %v501 = vrot.slane %v500, 4
  %v503 = vshll.u32 %v344, 16
  %v505 = vrot.slane %v503, 5
  %v506 = vsel %vm434, %v501, %v505
  %v508 = vshrl.u32 %v345, 16
  %v510 = vrot.slane %v508, 4
  %v511 = vshll.u32 %v345, 16
  %v513 = vrot.slane %v511, 5
  %v514 = vor.u32 %v510, %v513
  %v515 = vrot.slane %v514, 4
  %v517 = vshll.u32 %v346, 16
  %v519 = vrot.slane %v517, 5
  %v520 = vsel %vm434, %v515, %v519
  %v521 = vshrl.u32 %v346, 16
  %v523 = vrot.slane %v521, 4
  %v524 = vor.u32 %v523, %v519
  %v525 = vrot.slane %v524, 4
  %v527 = vshll.u32 %v347, 16
  %v529 = vrot.slane %v527, 5
  %v530 = vsel %vm434, %v525, %v529
  %v532 = vshrl.u32 %v348, 16
  %v534 = vrot.slane %v532, 4
  %v535 = vshll.u32 %v348, 16
  %v537 = vrot.slane %v535, 5
  %v538 = vor.u32 %v534, %v537
  %v539 = vrot.slane %v538, 4
  %v541 = vshll.u32 %v349, 16
  %v543 = vrot.slane %v541, 5
  %v544 = vsel %vm434, %v539, %v543
  %v545 = vshrl.u32 %v349, 16
  %v547 = vrot.slane %v545, 4
  %v548 = vor.u32 %v547, %v543
  %v549 = vrot.slane %v548, 4
  %v551 = vshll.u32 %v350, 16
  %v553 = vrot.slane %v551, 5
  %v554 = vsel %vm434, %v549, %v553
  %v556 = vshrl.u32 %v351, 16
  %v558 = vrot.slane %v556, 4
  %v559 = vshll.u32 %v351, 16
  %v561 = vrot.slane %v559, 5
  %v562 = vor.u32 %v558, %v561
  %v563 = vrot.slane %v562, 4
  %v565 = vshll.u32 %v352, 16
  %v567 = vrot.slane %v565, 5
  %v568 = vsel %vm434, %v563, %v567
  %v569 = vshrl.u32 %v352, 16
  %v571 = vrot.slane %v569, 4
  %v572 = vor.u32 %v571, %v567
  %v573 = vrot.slane %v572, 4
  %v575 = vshll.u32 %v353, 16
  %v577 = vrot.slane %v575, 5
  %v578 = vsel %vm434, %v573, %v577
  %v580 = vshrl.u32 %v354, 16
  %v582 = vrot.slane %v580, 4
  %v583 = vshll.u32 %v354, 16
  %v585 = vrot.slane %v583, 5
  %v586 = vor.u32 %v582, %v585
  %v587 = vrot.slane %v586, 4
  %v589 = vshll.u32 %v355, 16
  %v591 = vrot.slane %v589, 5
  %v592 = vsel %vm434, %v587, %v591
  %v593 = vshrl.u32 %v355, 16
  %v595 = vrot.slane %v593, 4
  %v596 = vor.u32 %v595, %v591
  %v597 = vrot.slane %v596, 4
  %v599 = vshll.u32 %v356, 16
  %v601 = vrot.slane %v599, 5
  %v602 = vsel %vm434, %v597, %v601
  %v604 = vshrl.u32 %v357, 16
  %v606 = vrot.slane %v604, 4
  %v607 = vshll.u32 %v357, 16
  %v609 = vrot.slane %v607, 5
  %v610 = vor.u32 %v606, %v609
  %v611 = vrot.slane %v610, 4
  %v613 = vshll.u32 %v358, 16
  %v615 = vrot.slane %v613, 5
  %v616 = vsel %vm434, %v611, %v615
  %v617 = vshrl.u32 %v358, 16
  %v619 = vrot.slane %v617, 4
  %v620 = vor.u32 %v619, %v615
  %v621 = vrot.slane %v620, 4
  %v623 = vshll.u32 %v359, 16
  %v625 = vrot.slane %v623, 5
  %v626 = vsel %vm434, %v621, %v625
  %v628 = vshrl.u32 %v360, 16
  %v630 = vrot.slane %v628, 4
  %v631 = vshll.u32 %v360, 16
  %v633 = vrot.slane %v631, 5
  %v634 = vor.u32 %v630, %v633
  %v635 = vrot.slane %v634, 4
  %v637 = vshll.u32 %v361, 16
  %v639 = vrot.slane %v637, 5
  %v640 = vsel %vm434, %v635, %v639
  %v641 = vshrl.u32 %v361, 16
  %v643 = vrot.slane %v641, 4
  %v644 = vor.u32 %v643, %v639
  %v645 = vrot.slane %v644, 4
  %v647 = vshll.u32 %v362, 16
  %v649 = vrot.slane %v647, 5
  %v650 = vsel %vm434, %v645, %v649
  %v652 = vshrl.u32 %v363, 16
  %v654 = vrot.slane %v652, 4
  %v655 = vshll.u32 %v363, 16
  %v657 = vrot.slane %v655, 5
  %v658 = vor.u32 %v654, %v657
  %v659 = vrot.slane %v658, 4
  %v661 = vshll.u32 %v364, 16
  %v663 = vrot.slane %v661, 5
  %v664 = vsel %vm434, %v659, %v663
  %v665 = vshrl.u32 %v364, 16
  %v667 = vrot.slane %v665, 4
  %v668 = vor.u32 %v667, %v663
  %v669 = vrot.slane %v668, 4
  %v671 = vshll.u32 %v365, 16
  %v673 = vrot.slane %v671, 5
  %v674 = vsel %vm434, %v669, %v673
  %v676 = vshrl.u32 %v366, 16
  %v678 = vrot.slane %v676, 4
  %v679 = vshll.u32 %v366, 16
  %v681 = vrot.slane %v679, 5
  %v682 = vor.u32 %v678, %v681
  %v683 = vrot.slane %v682, 4
  %v685 = vshll.u32 %v367, 16
  %v687 = vrot.slane %v685, 5
  %v688 = vsel %vm434, %v683, %v687
  %v689 = vshrl.u32 %v367, 16
  %v691 = vrot.slane %v689, 4
  %v692 = vor.u32 %v691, %v687
  %v693 = vrot.slane %v692, 4
  %v695 = vshll.u32 %v368, 16
  %v697 = vrot.slane %v695, 5
  %v698 = vsel %vm434, %v693, %v697
  %v700 = vshrl.u32 %v369, 16
  %v702 = vrot.slane %v700, 4
  %v703 = vshll.u32 %v369, 16
  %v705 = vrot.slane %v703, 5
  %v706 = vor.u32 %v702, %v705
  %v707 = vrot.slane %v706, 4
  %v709 = vshll.u32 %v370, 16
  %v711 = vrot.slane %v709, 5
  %v712 = vsel %vm434, %v707, %v711
  %v713 = vshrl.u32 %v370, 16
  %v715 = vrot.slane %v713, 4
  %v716 = vor.u32 %v715, %v711
  %v717 = vrot.slane %v716, 4
  %v719 = vshll.u32 %v371, 16
  %v721 = vrot.slane %v719, 5
  %v722 = vsel %vm434, %v717, %v721
  %v724 = vshrl.u32 %v372, 16
  %v726 = vrot.slane %v724, 4
  %v727 = vshll.u32 %v372, 16
  %v729 = vrot.slane %v727, 5
  %v730 = vor.u32 %v726, %v729
  %v731 = vrot.slane %v730, 4
  %v733 = vshll.u32 %v373, 16
  %v735 = vrot.slane %v733, 5
  %v736 = vsel %vm434, %v731, %v735
  %v737 = vshrl.u32 %v373, 16
  %v739 = vrot.slane %v737, 4
  %v740 = vor.u32 %v739, %v735
  %v741 = vrot.slane %v740, 4
  %v743 = vshll.u32 %v374, 16
  %v745 = vrot.slane %v743, 5
  %v746 = vsel %vm434, %v741, %v745
  %v748 = vshrl.u32 %v375, 16
  %v750 = vrot.slane %v748, 4
  %v751 = vshll.u32 %v375, 16
  %v753 = vrot.slane %v751, 5
  %v754 = vor.u32 %v750, %v753
  %v755 = vrot.slane %v754, 4
  %v757 = vshll.u32 %v376, 16
  %v759 = vrot.slane %v757, 5
  %v760 = vsel %vm434, %v755, %v759
  %v761 = vshrl.u32 %v376, 16
  %v763 = vrot.slane %v761, 4
  %v764 = vor.u32 %v763, %v759
  %v765 = vrot.slane %v764, 4
  %v767 = vshll.u32 %v377, 16
  %v769 = vrot.slane %v767, 5
  %v770 = vsel %vm434, %v765, %v769
  %v772 = vshrl.u32 %v378, 16
  %v774 = vrot.slane %v772, 4
  %v775 = vshll.u32 %v378, 16
  %v777 = vrot.slane %v775, 5
  %v778 = vor.u32 %v774, %v777
  %v779 = vrot.slane %v778, 4
  %v781 = vshll.u32 %v379, 16
  %v783 = vrot.slane %v781, 5
  %v784 = vsel %vm434, %v779, %v783
  %v785 = vshrl.u32 %v379, 16
  %v787 = vrot.slane %v785, 4
  %v788 = vor.u32 %v787, %v783
  %v789 = vrot.slane %v788, 4
  %v791 = vshll.u32 %v380, 16
  %v793 = vrot.slane %v791, 5
  %v794 = vsel %vm434, %v789, %v793
  %v796 = vshrl.u32 %v381, 16
  %v798 = vrot.slane %v796, 4
  %v799 = vshll.u32 %v381, 16
  %v801 = vrot.slane %v799, 5
  %v802 = vor.u32 %v798, %v801
  %v803 = vrot.slane %v802, 4
  %v805 = vshll.u32 %v382, 16
  %v807 = vrot.slane %v805, 5
  %v808 = vsel %vm434, %v803, %v807
  %v809 = vshrl.u32 %v382, 16
  %v811 = vrot.slane %v809, 4
  %v812 = vor.u32 %v811, %v807
  %v813 = vrot.slane %v812, 4
  %v815 = vshll.u32 %v383, 16
  %v817 = vrot.slane %v815, 5
  %v818 = vsel %vm434, %v813, %v817
  %v820 = vshrl.u32 %v384, 16
  %v822 = vrot.slane %v820, 4
  %v823 = vshll.u32 %v384, 16
  %v825 = vrot.slane %v823, 5
  %v826 = vor.u32 %v822, %v825
  %v827 = vrot.slane %v826, 4
  %v829 = vshll.u32 %v385, 16
  %v831 = vrot.slane %v829, 5
  %v832 = vsel %vm434, %v827, %v831
  %v833 = vshrl.u32 %v385, 16
  %v835 = vrot.slane %v833, 4
  %v836 = vor.u32 %v835, %v831
  %v837 = vrot.slane %v836, 4
  %v839 = vshll.u32 %v386, 16
  %v841 = vrot.slane %v839, 5
  %v842 = vsel %vm434, %v837, %v841
  %v844 = vshrl.u32 %v387, 16
  %v846 = vrot.slane %v844, 4
  %v847 = vshll.u32 %v387, 16
  %v849 = vrot.slane %v847, 5
  %v850 = vor.u32 %v846, %v849
  %v851 = vrot.slane %v850, 4
  %v853 = vshll.u32 %v388, 16
  %v855 = vrot.slane %v853, 5
  %v856 = vsel %vm434, %v851, %v855
  %v857 = vshrl.u32 %v388, 16
  %v859 = vrot.slane %v857, 4
  %v860 = vor.u32 %v859, %v855
  %v861 = vrot.slane %v860, 4
  %v863 = vshll.u32 %v389, 16
  %v865 = vrot.slane %v863, 5
  %v866 = vsel %vm434, %v861, %v865
  %v868 = vshrl.u32 %v390, 16
  %v870 = vrot.slane %v868, 4
  %v871 = vshll.u32 %v390, 16
  %v873 = vrot.slane %v871, 5
  %v874 = vor.u32 %v870, %v873
  %v875 = vrot.slane %v874, 4
  %v877 = vshll.u32 %v391, 16
  %v879 = vrot.slane %v877, 5
  %v880 = vsel %vm434, %v875, %v879
  %v881 = vshrl.u32 %v391, 16
  %v883 = vrot.slane %v881, 4
  %v884 = vor.u32 %v883, %v879
  %v885 = vrot.slane %v884, 4
  %v887 = vshll.u32 %v392, 16
  %v889 = vrot.slane %v887, 5
  %v890 = vsel %vm434, %v885, %v889
  %v892 = vshrl.u32 %v393, 16
  %v894 = vrot.slane %v892, 4
  %v895 = vshll.u32 %v393, 16
  %v897 = vrot.slane %v895, 5
  %v898 = vor.u32 %v894, %v897
  %v899 = vrot.slane %v898, 4
  %v901 = vshll.u32 %v394, 16
  %v903 = vrot.slane %v901, 5
  %v904 = vsel %vm434, %v899, %v903
  %v905 = vshrl.u32 %v394, 16
  %v907 = vrot.slane %v905, 4
  %v908 = vor.u32 %v907, %v903
  %v909 = vrot.slane %v908, 4
  %v911 = vshll.u32 %v395, 16
  %v913 = vrot.slane %v911, 5
  %v914 = vsel %vm434, %v909, %v913
  %v916 = vshrl.u32 %v396, 16
  %v918 = vrot.slane %v916, 4
  %v919 = vshll.u32 %v396, 16
  %v921 = vrot.slane %v919, 5
  %v922 = vor.u32 %v918, %v921
  %v923 = vrot.slane %v922, 4
  %v925 = vshll.u32 %v397, 16
  %v927 = vrot.slane %v925, 5
  %v928 = vsel %vm434, %v923, %v927
  %v929 = vshrl.u32 %v397, 16
  %v931 = vrot.slane %v929, 4
  %v932 = vor.u32 %v931, %v927
  %v933 = vrot.slane %v932, 4
  %v935 = vshll.u32 %v398, 16
  %v937 = vrot.slane %v935, 5
  %v938 = vsel %vm434, %v933, %v937
  %v940 = vshrl.u32 %v399, 16
  %v942 = vrot.slane %v940, 4
  %v943 = vshll.u32 %v399, 16
  %v945 = vrot.slane %v943, 5
  %v946 = vor.u32 %v942, %v945
  %v947 = vrot.slane %v946, 4
  %v949 = vshll.u32 %v400, 16
  %v951 = vrot.slane %v949, 5
  %v952 = vsel %vm434, %v947, %v951
  %v953 = vshrl.u32 %v400, 16
  %v955 = vrot.slane %v953, 4
  %v956 = vor.u32 %v955, %v951
  %v957 = vrot.slane %v956, 4
  %v959 = vshll.u32 %v401, 16
  %v961 = vrot.slane %v959, 5
  %v962 = vsel %vm434, %v957, %v961
  %v964 = vshrl.u32 %v402, 16
  %v966 = vrot.slane %v964, 4
  %v967 = vshll.u32 %v402, 16
  %v969 = vrot.slane %v967, 5
  %v970 = vor.u32 %v966, %v969
  %v971 = vrot.slane %v970, 4
  %v973 = vshll.u32 %v403, 16
  %v975 = vrot.slane %v973, 5
  %v976 = vsel %vm434, %v971, %v975
  %v977 = vshrl.u32 %v403, 16
  %v979 = vrot.slane %v977, 4
  %v980 = vor.u32 %v979, %v975
  %v981 = vrot.slane %v980, 4
  %v983 = vshll.u32 %v404, 16
  %v985 = vrot.slane %v983, 5
  %v986 = vsel %vm434, %v981, %v985
  %v988 = vshrl.u32 %v405, 16
  %v990 = vrot.slane %v988, 4
  %v991 = vshll.u32 %v405, 16
  %v993 = vrot.slane %v991, 5
  %v994 = vor.u32 %v990, %v993
  %v995 = vrot.slane %v994, 4
  %v997 = vshll.u32 %v406, 16
  %v999 = vrot.slane %v997, 5
  %v1000 = vsel %vm434, %v995, %v999
  %v1001 = vshrl.u32 %v406, 16
  %v1003 = vrot.slane %v1001, 4
  %v1004 = vor.u32 %v1003, %v999
  %v1005 = vrot.slane %v1004, 4
  %v1007 = vshll.u32 %v407, 16
  %v1009 = vrot.slane %v1007, 5
  %v1010 = vsel %vm434, %v1005, %v1009
  %v1012 = vshrl.u32 %v408, 16
  %v1014 = vrot.slane %v1012, 4
  %v1015 = vshll.u32 %v408, 16
  %v1017 = vrot.slane %v1015, 5
  %v1018 = vor.u32 %v1014, %v1017
  %v1019 = vrot.slane %v1018, 4
  %v1021 = vshll.u32 %v409, 16
  %v1023 = vrot.slane %v1021, 5
  %v1024 = vsel %vm434, %v1019, %v1023
  %v1025 = vshrl.u32 %v409, 16
  %v1027 = vrot.slane %v1025, 4
  %v1028 = vor.u32 %v1027, %v1023
  %v1029 = vrot.slane %v1028, 4
  %v1031 = vshll.u32 %v410, 16
  %v1033 = vrot.slane %v1031, 5
  %v1034 = vsel %vm434, %v1029, %v1033
  %v1036 = vshrl.u32 %v411, 16
  %v1038 = vrot.slane %v1036, 4
  %v1039 = vshll.u32 %v411, 16
  %v1041 = vrot.slane %v1039, 5
  %v1042 = vor.u32 %v1038, %v1041
  %v1043 = vrot.slane %v1042, 4
  %v1045 = vshll.u32 %v412, 16
  %v1047 = vrot.slane %v1045, 5
  %v1048 = vsel %vm434, %v1043, %v1047
  %v1049 = vshrl.u32 %v412, 16
  %v1051 = vrot.slane %v1049, 4
  %v1052 = vor.u32 %v1051, %v1047
  %v1053 = vrot.slane %v1052, 4
  %v1055 = vshll.u32 %v413, 16
  %v1057 = vrot.slane %v1055, 5
  %v1058 = vsel %vm434, %v1053, %v1057
  %v1060 = vshrl.u32 %v414, 16
  %v1062 = vrot.slane %v1060, 4
  %v1063 = vshll.u32 %v414, 16
  %v1065 = vrot.slane %v1063, 5
  %v1066 = vor.u32 %v1062, %v1065
  %v1067 = vrot.slane %v1066, 4
  %v1069 = vshll.u32 %v415, 16
  %v1071 = vrot.slane %v1069, 5
  %v1072 = vsel %vm434, %v1067, %v1071
  %v1073 = vshrl.u32 %v415, 16
  %v1075 = vrot.slane %v1073, 4
  %v1076 = vor.u32 %v1075, %v1071
  %v1077 = vrot.slane %v1076, 4
  %v1079 = vshll.u32 %v416, 16
  %v1081 = vrot.slane %v1079, 5
  %v1082 = vsel %vm434, %v1077, %v1081
  %v1084 = vshrl.u32 %v417, 16
  %v1086 = vrot.slane %v1084, 4
  %v1087 = vshll.u32 %v417, 16
  %v1089 = vrot.slane %v1087, 5
  %v1090 = vor.u32 %v1086, %v1089
  %v1091 = vrot.slane %v1090, 4
  %v1093 = vshll.u32 %v418, 16
  %v1095 = vrot.slane %v1093, 5
  %v1096 = vsel %vm434, %v1091, %v1095
  %v1097 = vshrl.u32 %v418, 16
  %v1099 = vrot.slane %v1097, 4
  %v1100 = vor.u32 %v1099, %v1095
  %v1101 = vrot.slane %v1100, 4
  %v1103 = vshll.u32 %v419, 16
  %v1105 = vrot.slane %v1103, 5
  %v1106 = vsel %vm434, %v1101, %v1105
  %v1108 = vshrl.u32 %v420, 16
  %v1110 = vrot.slane %v1108, 4
  %v1111 = vshll.u32 %v420, 16
  %v1113 = vrot.slane %v1111, 5
  %v1114 = vor.u32 %v1110, %v1113
  %v1115 = vrot.slane %v1114, 4
  %v1117 = vshll.u32 %v421, 16
  %v1119 = vrot.slane %v1117, 5
  %v1120 = vsel %vm434, %v1115, %v1119
  %v1121 = vshrl.u32 %v421, 16
  %v1123 = vrot.slane %v1121, 4
  %v1124 = vor.u32 %v1123, %v1119
  %v1125 = vrot.slane %v1124, 4
  %v1127 = vshll.u32 %v422, 16
  %v1129 = vrot.slane %v1127, 5
  %v1130 = vsel %vm434, %v1125, %v1129
  %v1132 = vshrl.u32 %v423, 16
  %v1134 = vrot.slane %v1132, 4
  %v1135 = vshll.u32 %v423, 16
  %v1137 = vrot.slane %v1135, 5
  %v1138 = vor.u32 %v1134, %v1137
  %v1139 = vrot.slane %v1138, 4
  %v1141 = vshll.u32 %v424, 16
  %v1143 = vrot.slane %v1141, 5
  %v1144 = vsel %vm434, %v1139, %v1143
  %v1145 = vshrl.u32 %v424, 16
  %v1147 = vrot.slane %v1145, 4
  %v1148 = vor.u32 %v1147, %v1143
  %v1149 = vrot.slane %v1148, 4
  %v1151 = vshll.u32 %v425, 16
  %v1153 = vrot.slane %v1151, 5
  %v1154 = vsel %vm434, %v1149, %v1153
  %v1156 = vshrl.u32 %v426, 16
  %v1158 = vrot.slane %v1156, 4
  %v1159 = vshll.u32 %v426, 16
  %v1161 = vrot.slane %v1159, 5
  %v1162 = vor.u32 %v1158, %v1161
  %v1163 = vrot.slane %v1162, 4
  %v1165 = vshll.u32 %v427, 16
  %v1167 = vrot.slane %v1165, 5
  %v1168 = vsel %vm434, %v1163, %v1167
  %v1169 = vshrl.u32 %v427, 16
  %v1171 = vrot.slane %v1169, 4
  %v1172 = vor.u32 %v1171, %v1167
  %v1173 = vrot.slane %v1172, 4
  %v1175 = vshll.u32 %v428, 16
  %v1177 = vrot.slane %v1175, 5
  %v1178 = vsel %vm434, %v1173, %v1177
  %v1180 = vshrl.u32 %v429, 16
  %v1182 = vrot.slane %v1180, 4
  %v1183 = vshll.u32 %v429, 16
  %v1185 = vrot.slane %v1183, 5
  %v1186 = vor.u32 %v1182, %v1185
  %v1187 = vrot.slane %v1186, 4
  %v1189 = vshll.u32 %v430, 16
  %v1191 = vrot.slane %v1189, 5
  %v1192 = vsel %vm434, %v1187, %v1191
  %v1193 = vshrl.u32 %v430, 16
  %v1195 = vrot.slane %v1193, 4
  %v1196 = vor.u32 %v1195, %v1191
  %v1197 = vrot.slane %v1196, 4
  %v1199 = vshll.u32 %v431, 16
  %v1201 = vrot.slane %v1199, 5
  %v1202 = vsel %vm434, %v1197, %v1201
  %v1203 = vunpack.c.l.b16 %v448
  %v1204 = vunpack.c.l.b16 %v458
  %v1205 = vunpack.c.l.b16 %v472
  %v1206 = vunpack.c.l.b16 %v482
  %v1207 = vunpack.c.l.b16 %v496
  %v1208 = vunpack.c.l.b16 %v506
  %v1209 = vunpack.c.l.b16 %v520
  %v1210 = vunpack.c.l.b16 %v530
  %v1211 = vunpack.c.l.b16 %v544
  %v1212 = vunpack.c.l.b16 %v554
  %v1213 = vunpack.c.l.b16 %v568
  %v1214 = vunpack.c.l.b16 %v578
  %v1215 = vunpack.c.l.b16 %v592
  %v1216 = vunpack.c.l.b16 %v602
  %v1217 = vunpack.c.l.b16 %v616
  %v1218 = vunpack.c.l.b16 %v626
  %v1219 = vunpack.c.l.b16 %v640
  %v1220 = vunpack.c.l.b16 %v650
  %v1221 = vunpack.c.l.b16 %v664
  %v1222 = vunpack.c.l.b16 %v674
  %v1223 = vunpack.c.l.b16 %v688
  %v1224 = vunpack.c.l.b16 %v698
  %v1225 = vunpack.c.l.b16 %v712
  %v1226 = vunpack.c.l.b16 %v722
  %v1227 = vunpack.c.l.b16 %v736
  %v1228 = vunpack.c.l.b16 %v746
  %v1229 = vunpack.c.l.b16 %v760
  %v1230 = vunpack.c.l.b16 %v770
  %v1231 = vunpack.c.l.b16 %v784
  %v1232 = vunpack.c.l.b16 %v794
  %v1233 = vunpack.c.l.b16 %v808
  %v1234 = vunpack.c.l.b16 %v818
  %v1235 = vunpack.c.l.b16 %v832
  %v1236 = vunpack.c.l.b16 %v842
  %v1237 = vunpack.c.l.b16 %v856
  %v1238 = vunpack.c.l.b16 %v866
  %v1239 = vunpack.c.l.b16 %v880
  %v1240 = vunpack.c.l.b16 %v890
  %v1241 = vunpack.c.l.b16 %v904
  %v1242 = vunpack.c.l.b16 %v914
  %v1243 = vunpack.c.l.b16 %v928
  %v1244 = vunpack.c.l.b16 %v938
  %v1245 = vunpack.c.l.b16 %v952
  %v1246 = vunpack.c.l.b16 %v962
  %v1247 = vunpack.c.l.b16 %v976
  %v1248 = vunpack.c.l.b16 %v986
  %v1249 = vunpack.c.l.b16 %v1000
  %v1250 = vunpack.c.l.b16 %v1010
  %v1251 = vunpack.c.l.b16 %v1024
  %v1252 = vunpack.c.l.b16 %v1034
  %v1253 = vunpack.c.l.b16 %v1048
  %v1254 = vunpack.c.l.b16 %v1058
  %v1255 = vunpack.c.l.b16 %v1072
  %v1256 = vunpack.c.l.b16 %v1082
  %v1257 = vunpack.c.l.b16 %v1096
  %v1258 = vunpack.c.l.b16 %v1106
  %v1259 = vunpack.c.l.b16 %v1120
  %v1260 = vunpack.c.l.b16 %v1130
  %v1261 = vunpack.c.l.b16 %v1144
  %v1262 = vunpack.c.l.b16 %v1154
  %v1263 = vunpack.c.l.b16 %v1168
  %v1264 = vunpack.c.l.b16 %v1178
  %v1265 = vunpack.c.l.b16 %v1192
  %v1266 = vunpack.c.l.b16 %v1202
  %v1267 = vpack.c.b16 %v1204, %v1203
  %v1268 = vpack.c.b16 %v1206, %v1205
  %v1269 = vpack.c.b16 %v1208, %v1207
  %v1270 = vpack.c.b16 %v1210, %v1209
  %v1271 = vpack.c.b16 %v1212, %v1211
  %v1272 = vpack.c.b16 %v1214, %v1213
  %v1273 = vpack.c.b16 %v1216, %v1215
  %v1274 = vpack.c.b16 %v1218, %v1217
  %v1275 = vpack.c.b16 %v1220, %v1219
  %v1276 = vpack.c.b16 %v1222, %v1221
  %v1277 = vpack.c.b16 %v1224, %v1223
  %v1278 = vpack.c.b16 %v1226, %v1225
  %v1279 = vpack.c.b16 %v1228, %v1227
  %v1280 = vpack.c.b16 %v1230, %v1229
  %v1281 = vpack.c.b16 %v1232, %v1231
  %v1282 = vpack.c.b16 %v1234, %v1233
  %v1283 = vpack.c.b16 %v1236, %v1235
  %v1284 = vpack.c.b16 %v1238, %v1237
  %v1285 = vpack.c.b16 %v1240, %v1239
  %v1286 = vpack.c.b16 %v1242, %v1241
  %v1287 = vpack.c.b16 %v1244, %v1243
  %v1288 = vpack.c.b16 %v1246, %v1245
  %v1289 = vpack.c.b16 %v1248, %v1247
  %v1290 = vpack.c.b16 %v1250, %v1249
  %v1291 = vpack.c.b16 %v1252, %v1251
  %v1292 = vpack.c.b16 %v1254, %v1253
  %v1293 = vpack.c.b16 %v1256, %v1255
  %v1294 = vpack.c.b16 %v1258, %v1257
  %v1295 = vpack.c.b16 %v1260, %v1259
  %v1296 = vpack.c.b16 %v1262, %v1261
  %v1297 = vpack.c.b16 %v1264, %v1263
  %v1298 = vpack.c.b16 %v1266, %v1265
  %1299 = vrot.lane.b32.xlu0 %v1267, 4
  %v1300 = vpop.permute.xlu0 %1299
  %1301 = vrot.lane.b32.xlu0 %v1268, 4
  %v1302 = vpop.permute.xlu0 %1301
  %1303 = vrot.lane.b32.xlu0 %v1269, 4
  %v1304 = vpop.permute.xlu0 %1303
  %1305 = vrot.lane.b32.xlu0 %v1270, 4
  %v1306 = vpop.permute.xlu0 %1305
  %1307 = vrot.lane.b32.xlu0 %v1271, 4
  %v1308 = vpop.permute.xlu0 %1307
  %1309 = vrot.lane.b32.xlu0 %v1272, 4
  %v1310 = vpop.permute.xlu0 %1309
  %1311 = vrot.lane.b32.xlu0 %v1273, 4
  %v1312 = vpop.permute.xlu0 %1311
  %1313 = vrot.lane.b32.xlu0 %v1274, 4
  %v1314 = vpop.permute.xlu0 %1313
  %1315 = vrot.lane.b32.xlu0 %v1275, 4
  %v1316 = vpop.permute.xlu0 %1315
  %1317 = vrot.lane.b32.xlu0 %v1276, 4
  %v1318 = vpop.permute.xlu0 %1317
  %1319 = vrot.lane.b32.xlu0 %v1277, 4
  %v1320 = vpop.permute.xlu0 %1319
  %1321 = vrot.lane.b32.xlu0 %v1278, 4
  %v1322 = vpop.permute.xlu0 %1321
  %1323 = vrot.lane.b32.xlu0 %v1279, 4
  %v1324 = vpop.permute.xlu0 %1323
  %1325 = vrot.lane.b32.xlu0 %v1280, 4
  %v1326 = vpop.permute.xlu0 %1325
  %1327 = vrot.lane.b32.xlu0 %v1281, 4
  %v1328 = vpop.permute.xlu0 %1327
  %1329 = vrot.lane.b32.xlu0 %v1282, 4
  %v1330 = vpop.permute.xlu0 %1329
  %1331 = vrot.lane.b32.xlu0 %v1283, 4
  %v1332 = vpop.permute.xlu0 %1331
  %1333 = vrot.lane.b32.xlu0 %v1284, 4
  %v1334 = vpop.permute.xlu0 %1333
  %1335 = vrot.lane.b32.xlu0 %v1285, 4
  %v1336 = vpop.permute.xlu0 %1335
  %1337 = vrot.lane.b32.xlu0 %v1286, 4
  %v1338 = vpop.permute.xlu0 %1337
  %1339 = vrot.lane.b32.xlu0 %v1287, 4
  %v1340 = vpop.permute.xlu0 %1339
  %1341 = vrot.lane.b32.xlu0 %v1288, 4
  %v1342 = vpop.permute.xlu0 %1341
  %1343 = vrot.lane.b32.xlu0 %v1289, 4
  %v1344 = vpop.permute.xlu0 %1343
  %1345 = vrot.lane.b32.xlu0 %v1290, 4
  %v1346 = vpop.permute.xlu0 %1345
  %1347 = vrot.lane.b32.xlu0 %v1291, 4
  %v1348 = vpop.permute.xlu0 %1347
  %1349 = vrot.lane.b32.xlu0 %v1292, 4
  %v1350 = vpop.permute.xlu0 %1349
  %1351 = vrot.lane.b32.xlu0 %v1293, 4
  %v1352 = vpop.permute.xlu0 %1351
  %1353 = vrot.lane.b32.xlu0 %v1294, 4
  %v1354 = vpop.permute.xlu0 %1353
  %1355 = vrot.lane.b32.xlu0 %v1295, 4
  %v1356 = vpop.permute.xlu0 %1355
  %1357 = vrot.lane.b32.xlu0 %v1296, 4
  %v1358 = vpop.permute.xlu0 %1357
  %1359 = vrot.lane.b32.xlu0 %v1297, 4
  %v1360 = vpop.permute.xlu0 %1359
  %1361 = vrot.lane.b32.xlu0 %v1298, 4
  %v1362 = vpop.permute.xlu0 %1361
  %vm1395 = vcmask 64544
  %1396 = vst.msk [vmem:[#allocation2] sm:$0xff] %vm1395, %v1300
  %1397 = vst.msk [vmem:[#allocation2 + $0x8] sm:$0xff] %vm1395, %v1302
  %1398 = vst.msk [vmem:[#allocation2 + $0x10] sm:$0xff] %vm1395, %v1304
  %1399 = vst.msk [vmem:[#allocation2 + $0x18] sm:$0xff] %vm1395, %v1306
  %1400 = vst.msk [vmem:[#allocation2 + $0x20] sm:$0xff] %vm1395, %v1308
  %1401 = vst.msk [vmem:[#allocation2 + $0x28] sm:$0xff] %vm1395, %v1310
  %1402 = vst.msk [vmem:[#allocation2 + $0x30] sm:$0xff] %vm1395, %v1312
  %1403 = vst.msk [vmem:[#allocation2 + $0x38] sm:$0xff] %vm1395, %v1314
  %1404 = vst.msk [vmem:[#allocation2 + $0x40] sm:$0xff] %vm1395, %v1316
  %1405 = vst.msk [vmem:[#allocation2 + $0x48] sm:$0xff] %vm1395, %v1318
  %1406 = vst.msk [vmem:[#allocation2 + $0x50] sm:$0xff] %vm1395, %v1320
  %1407 = vst.msk [vmem:[#allocation2 + $0x58] sm:$0xff] %vm1395, %v1322
  %1408 = vst.msk [vmem:[#allocation2 + $0x60] sm:$0xff] %vm1395, %v1324
  %1409 = vst.msk [vmem:[#allocation2 + $0x68] sm:$0xff] %vm1395, %v1326
  %1410 = vst.msk [vmem:[#allocation2 + $0x70] sm:$0xff] %vm1395, %v1328
  %1411 = vst.msk [vmem:[#allocation2 + $0x78] sm:$0xff] %vm1395, %v1330
  %1412 = vst.msk [vmem:[#allocation2 + $0x80] sm:$0xff] %vm1395, %v1332
  %1413 = vst.msk [vmem:[#allocation2 + $0x88] sm:$0xff] %vm1395, %v1334
  %1414 = vst.msk [vmem:[#allocation2 + $0x90] sm:$0xff] %vm1395, %v1336
  %1415 = vst.msk [vmem:[#allocation2 + $0x98] sm:$0xff] %vm1395, %v1338
  %1416 = vst.msk [vmem:[#allocation2 + $0xa0] sm:$0xff] %vm1395, %v1340
  %1417 = vst.msk [vmem:[#allocation2 + $0xa8] sm:$0xff] %vm1395, %v1342
  %1418 = vst.msk [vmem:[#allocation2 + $0xb0] sm:$0xff] %vm1395, %v1344
  %1419 = vst.msk [vmem:[#allocation2 + $0xb8] sm:$0xff] %vm1395, %v1346
  %1420 = vst.msk [vmem:[#allocation2 + $0xc0] sm:$0xff] %vm1395, %v1348
  %1421 = vst.msk [vmem:[#allocation2 + $0xc8] sm:$0xff] %vm1395, %v1350
  %1422 = vst.msk [vmem:[#allocation2 + $0xd0] sm:$0xff] %vm1395, %v1352
  %1423 = vst.msk [vmem:[#allocation2 + $0xd8] sm:$0xff] %vm1395, %v1354
  %1424 = vst.msk [vmem:[#allocation2 + $0xe0] sm:$0xff] %vm1395, %v1356
  %1425 = vst.msk [vmem:[#allocation2 + $0xe8] sm:$0xff] %vm1395, %v1358
  %1426 = vst.msk [vmem:[#allocation2 + $0xf0] sm:$0xff] %vm1395, %v1360
  %1427 = vst.msk [vmem:[#allocation2 + $0xf8] sm:$0xff] %vm1395, %v1362
  %v1428 = vld [vmem:[%s0] sm:$0xe]
  %v1429 = vld [vmem:[%s0 + $0x4] sm:$0xf]
  %v1430 = vld [vmem:[%s0 + $0x8] sm:$0x1]
  %v1431 = vld [vmem:[%s0 + $0xc] sm:$0xe]
  %v1432 = vld [vmem:[%s0 + $0x10] sm:$0xf]
  %v1433 = vld [vmem:[%s0 + $0x14] sm:$0x1]
  %v1434 = vld [vmem:[%s0 + $0x18] sm:$0xe]
  %v1435 = vld [vmem:[%s0 + $0x1c] sm:$0xf]
  %v1436 = vld [vmem:[%s0 + $0x20] sm:$0x1]
  %v1437 = vld [vmem:[%s0 + $0x24] sm:$0xe]
  %v1438 = vld [vmem:[%s0 + $0x28] sm:$0xf]
  %v1439 = vld [vmem:[%s0 + $0x2c] sm:$0x1]
  %v1440 = vld [vmem:[%s0 + $0x30] sm:$0xe]
  %v1441 = vld [vmem:[%s0 + $0x34] sm:$0xf]
  %v1442 = vld [vmem:[%s0 + $0x38] sm:$0x1]
  %v1443 = vld [vmem:[%s0 + $0x3c] sm:$0xe]
  %v1444 = vld [vmem:[%s0 + $0x40] sm:$0xf]
  %v1445 = vld [vmem:[%s0 + $0x44] sm:$0x1]
  %v1446 = vld [vmem:[%s0 + $0x48] sm:$0xe]
  %v1447 = vld [vmem:[%s0 + $0x4c] sm:$0xf]
  %v1448 = vld [vmem:[%s0 + $0x50] sm:$0x1]
  %v1449 = vld [vmem:[%s0 + $0x54] sm:$0xe]
  %v1450 = vld [vmem:[%s0 + $0x58] sm:$0xf]
  %v1451 = vld [vmem:[%s0 + $0x5c] sm:$0x1]
  %v1452 = vld [vmem:[%s0 + $0x60] sm:$0xe]
  %v1453 = vld [vmem:[%s0 + $0x64] sm:$0xf]
  %v1454 = vld [vmem:[%s0 + $0x68] sm:$0x1]
  %v1455 = vld [vmem:[%s0 + $0x6c] sm:$0xe]
  %v1456 = vld [vmem:[%s0 + $0x70] sm:$0xf]
  %v1457 = vld [vmem:[%s0 + $0x74] sm:$0x1]
  %v1458 = vld [vmem:[%s0 + $0x78] sm:$0xe]
  %v1459 = vld [vmem:[%s0 + $0x7c] sm:$0xf]
  %v1460 = vld [vmem:[%s0 + $0x80] sm:$0x1]
  %v1461 = vld [vmem:[%s0 + $0x84] sm:$0xe]
  %v1462 = vld [vmem:[%s0 + $0x88] sm:$0xf]
  %v1463 = vld [vmem:[%s0 + $0x8c] sm:$0x1]
  %v1464 = vld [vmem:[%s0 + $0x90] sm:$0xe]
  %v1465 = vld [vmem:[%s0 + $0x94] sm:$0xf]
  %v1466 = vld [vmem:[%s0 + $0x98] sm:$0x1]
  %v1467 = vld [vmem:[%s0 + $0x9c] sm:$0xe]
  %v1468 = vld [vmem:[%s0 + $0xa0] sm:$0xf]
  %v1469 = vld [vmem:[%s0 + $0xa4] sm:$0x1]
  %v1470 = vld [vmem:[%s0 + $0xa8] sm:$0xe]
  %v1471 = vld [vmem:[%s0 + $0xac] sm:$0xf]
  %v1472 = vld [vmem:[%s0 + $0xb0] sm:$0x1]
  %v1473 = vld [vmem:[%s0 + $0xb4] sm:$0xe]
  %v1474 = vld [vmem:[%s0 + $0xb8] sm:$0xf]
  %v1475 = vld [vmem:[%s0 + $0xbc] sm:$0x1]
  %v1476 = vld [vmem:[%s0 + $0xd8] sm:$0xe]
  %v1477 = vld [vmem:[%s0 + $0xdc] sm:$0xf]
  %v1478 = vld [vmem:[%s0 + $0xe0] sm:$0x1]
  %v1479 = vld [vmem:[%s0 + $0xe4] sm:$0xe]
  %v1480 = vld [vmem:[%s0 + $0xe8] sm:$0xf]
  %v1481 = vld [vmem:[%s0 + $0xec] sm:$0x1]
  %v1482 = vld [vmem:[%s0 + $0xf0] sm:$0xe]
  %v1483 = vld [vmem:[%s0 + $0xf4] sm:$0xf]
  %v1484 = vld [vmem:[%s0 + $0xf8] sm:$0x1]
  %v1485 = vld [vmem:[%s0 + $0xfc] sm:$0xe]
  %v1486 = vld [vmem:[%s0 + $0x100] sm:$0xf]
  %v1487 = vld [vmem:[%s0 + $0x104] sm:$0x1]
  %v1488 = vld [vmem:[%s0 + $0x108] sm:$0xe]
  %v1489 = vld [vmem:[%s0 + $0x10c] sm:$0xf]
  %v1490 = vld [vmem:[%s0 + $0x110] sm:$0x1]
  %v1491 = vld [vmem:[%s0 + $0x114] sm:$0xe]
  %v1492 = vld [vmem:[%s0 + $0x118] sm:$0xf]
  %v1493 = vld [vmem:[%s0 + $0x11c] sm:$0x1]
  %v1494 = vld [vmem:[%s0 + $0x120] sm:$0xe]
  %v1495 = vld [vmem:[%s0 + $0x124] sm:$0xf]
  %v1496 = vld [vmem:[%s0 + $0x128] sm:$0x1]
  %v1497 = vld [vmem:[%s0 + $0x12c] sm:$0xe]
  %v1498 = vld [vmem:[%s0 + $0x130] sm:$0xf]
  %v1499 = vld [vmem:[%s0 + $0x134] sm:$0x1]
  %v1500 = vld [vmem:[%s0 + $0x138] sm:$0xe]
  %v1501 = vld [vmem:[%s0 + $0x13c] sm:$0xf]
  %v1502 = vld [vmem:[%s0 + $0x140] sm:$0x1]
  %v1503 = vld [vmem:[%s0 + $0x144] sm:$0xe]
  %v1504 = vld [vmem:[%s0 + $0x148] sm:$0xf]
  %v1505 = vld [vmem:[%s0 + $0x14c] sm:$0x1]
  %v1506 = vld [vmem:[%s0 + $0x150] sm:$0xe]
  %v1507 = vld [vmem:[%s0 + $0x154] sm:$0xf]
  %v1508 = vld [vmem:[%s0 + $0x158] sm:$0x1]
  %v1509 = vld [vmem:[%s0 + $0x15c] sm:$0xe]
  %v1510 = vld [vmem:[%s0 + $0x160] sm:$0xf]
  %v1511 = vld [vmem:[%s0 + $0x164] sm:$0x1]
  %v1512 = vld [vmem:[%s0 + $0x168] sm:$0xe]
  %v1513 = vld [vmem:[%s0 + $0x16c] sm:$0xf]
  %v1514 = vld [vmem:[%s0 + $0x170] sm:$0x1]
  %v1515 = vld [vmem:[%s0 + $0x174] sm:$0xe]
  %v1516 = vld [vmem:[%s0 + $0x178] sm:$0xf]
  %v1517 = vld [vmem:[%s0 + $0x17c] sm:$0x1]
  %v1518 = vld [vmem:[%s0 + $0x180] sm:$0xe]
  %v1519 = vld [vmem:[%s0 + $0x184] sm:$0xf]
  %v1520 = vld [vmem:[%s0 + $0x188] sm:$0x1]
  %v1521 = vld [vmem:[%s0 + $0x18c] sm:$0xe]
  %v1522 = vld [vmem:[%s0 + $0x190] sm:$0xf]
  %v1523 = vld [vmem:[%s0 + $0x194] sm:$0x1]
  %vm1620 = vcmask 1042432
  %vm1621 = vcmask 1046532
  %vm1622 = vmor %vm1620, %vm1621
  %v1623 = vrot.slane %v1428, 5
  %v1624 = vrot.slane %v1623, 4
  %v1625 = vrot.slane %v1429, 5
  %v1626 = vsel %vm1622, %v1624, %v1625
  %v1627 = vrot.slane %v1625, 4
  %v1628 = vrot.slane %v1430, 5
  %v1629 = vsel %vm1622, %v1627, %v1628
  %v1630 = vrot.slane %v1431, 5
  %v1631 = vrot.slane %v1630, 4
  %v1632 = vrot.slane %v1432, 5
  %v1633 = vsel %vm1622, %v1631, %v1632
  %v1634 = vrot.slane %v1632, 4
  %v1635 = vrot.slane %v1433, 5
  %v1636 = vsel %vm1622, %v1634, %v1635
  %v1637 = vrot.slane %v1434, 5
  %v1638 = vrot.slane %v1637, 4
  %v1639 = vrot.slane %v1435, 5
  %v1640 = vsel %vm1622, %v1638, %v1639
  %v1641 = vrot.slane %v1639, 4
  %v1642 = vrot.slane %v1436, 5
  %v1643 = vsel %vm1622, %v1641, %v1642
  %v1644 = vrot.slane %v1437, 5
  %v1645 = vrot.slane %v1644, 4
  %v1646 = vrot.slane %v1438, 5
  %v1647 = vsel %vm1622, %v1645, %v1646
  %v1648 = vrot.slane %v1646, 4
  %v1649 = vrot.slane %v1439, 5
  %v1650 = vsel %vm1622, %v1648, %v1649
  %v1651 = vrot.slane %v1440, 5
  %v1652 = vrot.slane %v1651, 4
  %v1653 = vrot.slane %v1441, 5
  %v1654 = vsel %vm1622, %v1652, %v1653
  %v1655 = vrot.slane %v1653, 4
  %v1656 = vrot.slane %v1442, 5
  %v1657 = vsel %vm1622, %v1655, %v1656
  %v1658 = vrot.slane %v1443, 5
  %v1659 = vrot.slane %v1658, 4
  %v1660 = vrot.slane %v1444, 5
  %v1661 = vsel %vm1622, %v1659, %v1660
  %v1662 = vrot.slane %v1660, 4
  %v1663 = vrot.slane %v1445, 5
  %v1664 = vsel %vm1622, %v1662, %v1663
  %v1665 = vrot.slane %v1446, 5
  %v1666 = vrot.slane %v1665, 4
  %v1667 = vrot.slane %v1447, 5
  %v1668 = vsel %vm1622, %v1666, %v1667
  %v1669 = vrot.slane %v1667, 4
  %v1670 = vrot.slane %v1448, 5
  %v1671 = vsel %vm1622, %v1669, %v1670
  %v1672 = vrot.slane %v1449, 5
  %v1673 = vrot.slane %v1672, 4
  %v1674 = vrot.slane %v1450, 5
  %v1675 = vsel %vm1622, %v1673, %v1674
  %v1676 = vrot.slane %v1674, 4
  %v1677 = vrot.slane %v1451, 5
  %v1678 = vsel %vm1622, %v1676, %v1677
  %v1679 = vrot.slane %v1452, 5
  %v1680 = vrot.slane %v1679, 4
  %v1681 = vrot.slane %v1453, 5
  %v1682 = vsel %vm1622, %v1680, %v1681
  %v1683 = vrot.slane %v1681, 4
  %v1684 = vrot.slane %v1454, 5
  %v1685 = vsel %vm1622, %v1683, %v1684
  %v1686 = vrot.slane %v1455, 5
  %v1687 = vrot.slane %v1686, 4
  %v1688 = vrot.slane %v1456, 5
  %v1689 = vsel %vm1622, %v1687, %v1688
  %v1690 = vrot.slane %v1688, 4
  %v1691 = vrot.slane %v1457, 5
  %v1692 = vsel %vm1622, %v1690, %v1691
  %v1693 = vrot.slane %v1458, 5
  %v1694 = vrot.slane %v1693, 4
  %v1695 = vrot.slane %v1459, 5
  %v1696 = vsel %vm1622, %v1694, %v1695
  %v1697 = vrot.slane %v1695, 4
  %v1698 = vrot.slane %v1460, 5
  %v1699 = vsel %vm1622, %v1697, %v1698
  %v1700 = vrot.slane %v1461, 5
  %v1701 = vrot.slane %v1700, 4
  %v1702 = vrot.slane %v1462, 5
  %v1703 = vsel %vm1622, %v1701, %v1702
  %v1704 = vrot.slane %v1702, 4
  %v1705 = vrot.slane %v1463, 5
  %v1706 = vsel %vm1622, %v1704, %v1705
  %v1707 = vrot.slane %v1464, 5
  %v1708 = vrot.slane %v1707, 4
  %v1709 = vrot.slane %v1465, 5
  %v1710 = vsel %vm1622, %v1708, %v1709
  %v1711 = vrot.slane %v1709, 4
  %v1712 = vrot.slane %v1466, 5
  %v1713 = vsel %vm1622, %v1711, %v1712
  %v1714 = vrot.slane %v1467, 5
  %v1715 = vrot.slane %v1714, 4
  %v1716 = vrot.slane %v1468, 5
  %v1717 = vsel %vm1622, %v1715, %v1716
  %v1718 = vrot.slane %v1716, 4
  %v1719 = vrot.slane %v1469, 5
  %v1720 = vsel %vm1622, %v1718, %v1719
  %v1721 = vrot.slane %v1470, 5
  %v1722 = vrot.slane %v1721, 4
  %v1723 = vrot.slane %v1471, 5
  %v1724 = vsel %vm1622, %v1722, %v1723
  %v1725 = vrot.slane %v1723, 4
  %v1726 = vrot.slane %v1472, 5
  %v1727 = vsel %vm1622, %v1725, %v1726
  %v1728 = vrot.slane %v1473, 5
  %v1729 = vrot.slane %v1728, 4
  %v1730 = vrot.slane %v1474, 5
  %v1731 = vsel %vm1622, %v1729, %v1730
  %v1732 = vrot.slane %v1730, 4
  %v1733 = vrot.slane %v1475, 5
  %v1734 = vsel %vm1622, %v1732, %v1733
  %v1735 = vrot.slane %v1476, 5
  %v1736 = vrot.slane %v1735, 4
  %v1737 = vrot.slane %v1477, 5
  %v1738 = vsel %vm1622, %v1736, %v1737
  %v1739 = vrot.slane %v1737, 4
  %v1740 = vrot.slane %v1478, 5
  %v1741 = vsel %vm1622, %v1739, %v1740
  %v1742 = vrot.slane %v1479, 5
  %v1743 = vrot.slane %v1742, 4
  %v1744 = vrot.slane %v1480, 5
  %v1745 = vsel %vm1622, %v1743, %v1744
  %v1746 = vrot.slane %v1744, 4
  %v1747 = vrot.slane %v1481, 5
  %v1748 = vsel %vm1622, %v1746, %v1747
  %v1749 = vrot.slane %v1482, 5
  %v1750 = vrot.slane %v1749, 4
  %v1751 = vrot.slane %v1483, 5
  %v1752 = vsel %vm1622, %v1750, %v1751
  %v1753 = vrot.slane %v1751, 4
  %v1754 = vrot.slane %v1484, 5
  %v1755 = vsel %vm1622, %v1753, %v1754
  %v1756 = vrot.slane %v1485, 5
  %v1757 = vrot.slane %v1756, 4
  %v1758 = vrot.slane %v1486, 5
  %v1759 = vsel %vm1622, %v1757, %v1758
  %v1760 = vrot.slane %v1758, 4
  %v1761 = vrot.slane %v1487, 5
  %v1762 = vsel %vm1622, %v1760, %v1761
  %v1763 = vrot.slane %v1488, 5
  %v1764 = vrot.slane %v1763, 4
  %v1765 = vrot.slane %v1489, 5
  %v1766 = vsel %vm1622, %v1764, %v1765
  %v1767 = vrot.slane %v1765, 4
  %v1768 = vrot.slane %v1490, 5
  %v1769 = vsel %vm1622, %v1767, %v1768
  %v1770 = vrot.slane %v1491, 5
  %v1771 = vrot.slane %v1770, 4
  %v1772 = vrot.slane %v1492, 5
  %v1773 = vsel %vm1622, %v1771, %v1772
  %v1774 = vrot.slane %v1772, 4
  %v1775 = vrot.slane %v1493, 5
  %v1776 = vsel %vm1622, %v1774, %v1775
  %v1777 = vrot.slane %v1494, 5
  %v1778 = vrot.slane %v1777, 4
  %v1779 = vrot.slane %v1495, 5
  %v1780 = vsel %vm1622, %v1778, %v1779
  %v1781 = vrot.slane %v1779, 4
  %v1782 = vrot.slane %v1496, 5
  %v1783 = vsel %vm1622, %v1781, %v1782
  %v1784 = vrot.slane %v1497, 5
  %v1785 = vrot.slane %v1784, 4
  %v1786 = vrot.slane %v1498, 5
  %v1787 = vsel %vm1622, %v1785, %v1786
  %v1788 = vrot.slane %v1786, 4
  %v1789 = vrot.slane %v1499, 5
  %v1790 = vsel %vm1622, %v1788, %v1789
  %v1791 = vrot.slane %v1500, 5
  %v1792 = vrot.slane %v1791, 4
  %v1793 = vrot.slane %v1501, 5
  %v1794 = vsel %vm1622, %v1792, %v1793
  %v1795 = vrot.slane %v1793, 4
  %v1796 = vrot.slane %v1502, 5
  %v1797 = vsel %vm1622, %v1795, %v1796
  %v1798 = vrot.slane %v1503, 5
  %v1799 = vrot.slane %v1798, 4
  %v1800 = vrot.slane %v1504, 5
  %v1801 = vsel %vm1622, %v1799, %v1800
  %v1802 = vrot.slane %v1800, 4
  %v1803 = vrot.slane %v1505, 5
  %v1804 = vsel %vm1622, %v1802, %v1803
  %v1805 = vrot.slane %v1506, 5
  %v1806 = vrot.slane %v1805, 4
  %v1807 = vrot.slane %v1507, 5
  %v1808 = vsel %vm1622, %v1806, %v1807
  %v1809 = vrot.slane %v1807, 4
  %v1810 = vrot.slane %v1508, 5
  %v1811 = vsel %vm1622, %v1809, %v1810
  %v1812 = vrot.slane %v1509, 5
  %v1813 = vrot.slane %v1812, 4
  %v1814 = vrot.slane %v1510, 5
  %v1815 = vsel %vm1622, %v1813, %v1814
  %v1816 = vrot.slane %v1814, 4
  %v1817 = vrot.slane %v1511, 5
  %v1818 = vsel %vm1622, %v1816, %v1817
  %v1819 = vrot.slane %v1512, 5
  %v1820 = vrot.slane %v1819, 4
  %v1821 = vrot.slane %v1513, 5
  %v1822 = vsel %vm1622, %v1820, %v1821
  %v1823 = vrot.slane %v1821, 4
  %v1824 = vrot.slane %v1514, 5
  %v1825 = vsel %vm1622, %v1823, %v1824
  %v1826 = vrot.slane %v1515, 5
  %v1827 = vrot.slane %v1826, 4
  %v1828 = vrot.slane %v1516, 5
  %v1829 = vsel %vm1622, %v1827, %v1828
  %v1830 = vrot.slane %v1828, 4
  %v1831 = vrot.slane %v1517, 5
  %v1832 = vsel %vm1622, %v1830, %v1831
  %v1833 = vrot.slane %v1518, 5
  %v1834 = vrot.slane %v1833, 4
  %v1835 = vrot.slane %v1519, 5
  %v1836 = vsel %vm1622, %v1834, %v1835
  %v1837 = vrot.slane %v1835, 4
  %v1838 = vrot.slane %v1520, 5
  %v1839 = vsel %vm1622, %v1837, %v1838
  %v1840 = vrot.slane %v1521, 5
  %v1841 = vrot.slane %v1840, 4
  %v1842 = vrot.slane %v1522, 5
  %v1843 = vsel %vm1622, %v1841, %v1842
  %v1844 = vrot.slane %v1842, 4
  %v1845 = vrot.slane %v1523, 5
  %v1846 = vsel %vm1622, %v1844, %v1845
  %v1847 = vunpack.c.l.b16 %v1626
  %v1848 = vunpack.c.l.b16 %v1629
  %v1849 = vunpack.c.l.b16 %v1633
  %v1850 = vunpack.c.l.b16 %v1636
  %v1851 = vunpack.c.l.b16 %v1640
  %v1852 = vunpack.c.l.b16 %v1643
  %v1853 = vunpack.c.l.b16 %v1647
  %v1854 = vunpack.c.l.b16 %v1650
  %v1855 = vunpack.c.l.b16 %v1654
  %v1856 = vunpack.c.l.b16 %v1657
  %v1857 = vunpack.c.l.b16 %v1661
  %v1858 = vunpack.c.l.b16 %v1664
  %v1859 = vunpack.c.l.b16 %v1668
  %v1860 = vunpack.c.l.b16 %v1671
  %v1861 = vunpack.c.l.b16 %v1675
  %v1862 = vunpack.c.l.b16 %v1678
  %v1863 = vunpack.c.l.b16 %v1682
  %v1864 = vunpack.c.l.b16 %v1685
  %v1865 = vunpack.c.l.b16 %v1689
  %v1866 = vunpack.c.l.b16 %v1692
  %v1867 = vunpack.c.l.b16 %v1696
  %v1868 = vunpack.c.l.b16 %v1699
  %v1869 = vunpack.c.l.b16 %v1703
  %v1870 = vunpack.c.l.b16 %v1706
  %v1871 = vunpack.c.l.b16 %v1710
  %v1872 = vunpack.c.l.b16 %v1713
  %v1873 = vunpack.c.l.b16 %v1717
  %v1874 = vunpack.c.l.b16 %v1720
  %v1875 = vunpack.c.l.b16 %v1724
  %v1876 = vunpack.c.l.b16 %v1727
  %v1877 = vunpack.c.l.b16 %v1731
  %v1878 = vunpack.c.l.b16 %v1734
  %v1879 = vunpack.c.l.b16 %v1738
  %v1880 = vunpack.c.l.b16 %v1741
  %v1881 = vunpack.c.l.b16 %v1745
  %v1882 = vunpack.c.l.b16 %v1748
  %v1883 = vunpack.c.l.b16 %v1752
  %v1884 = vunpack.c.l.b16 %v1755
  %v1885 = vunpack.c.l.b16 %v1759
  %v1886 = vunpack.c.l.b16 %v1762
  %v1887 = vunpack.c.l.b16 %v1766
  %v1888 = vunpack.c.l.b16 %v1769
  %v1889 = vunpack.c.l.b16 %v1773
  %v1890 = vunpack.c.l.b16 %v1776
  %v1891 = vunpack.c.l.b16 %v1780
  %v1892 = vunpack.c.l.b16 %v1783
  %v1893 = vunpack.c.l.b16 %v1787
  %v1894 = vunpack.c.l.b16 %v1790
  %v1895 = vunpack.c.l.b16 %v1794
  %v1896 = vunpack.c.l.b16 %v1797
  %v1897 = vunpack.c.l.b16 %v1801
  %v1898 = vunpack.c.l.b16 %v1804
  %v1899 = vunpack.c.l.b16 %v1808
  %v1900 = vunpack.c.l.b16 %v1811
  %v1901 = vunpack.c.l.b16 %v1815
  %v1902 = vunpack.c.l.b16 %v1818
  %v1903 = vunpack.c.l.b16 %v1822
  %v1904 = vunpack.c.l.b16 %v1825
  %v1905 = vunpack.c.l.b16 %v1829
  %v1906 = vunpack.c.l.b16 %v1832
  %v1907 = vunpack.c.l.b16 %v1836
  %v1908 = vunpack.c.l.b16 %v1839
  %v1909 = vunpack.c.l.b16 %v1843
  %v1910 = vunpack.c.l.b16 %v1846
  %v1911 = vpack.c.b16 %v1848, %v1847
  %v1912 = vpack.c.b16 %v1850, %v1849
  %v1913 = vpack.c.b16 %v1852, %v1851
  %v1914 = vpack.c.b16 %v1854, %v1853
  %v1915 = vpack.c.b16 %v1856, %v1855
  %v1916 = vpack.c.b16 %v1858, %v1857
  %v1917 = vpack.c.b16 %v1860, %v1859
  %v1918 = vpack.c.b16 %v1862, %v1861
  %v1919 = vpack.c.b16 %v1864, %v1863
  %v1920 = vpack.c.b16 %v1866, %v1865
  %v1921 = vpack.c.b16 %v1868, %v1867
  %v1922 = vpack.c.b16 %v1870, %v1869
  %v1923 = vpack.c.b16 %v1872, %v1871
  %v1924 = vpack.c.b16 %v1874, %v1873
  %v1925 = vpack.c.b16 %v1876, %v1875
  %v1926 = vpack.c.b16 %v1878, %v1877
  %v1927 = vpack.c.b16 %v1880, %v1879
  %v1928 = vpack.c.b16 %v1882, %v1881
  %v1929 = vpack.c.b16 %v1884, %v1883
  %v1930 = vpack.c.b16 %v1886, %v1885
  %v1931 = vpack.c.b16 %v1888, %v1887
  %v1932 = vpack.c.b16 %v1890, %v1889
  %v1933 = vpack.c.b16 %v1892, %v1891
  %v1934 = vpack.c.b16 %v1894, %v1893
  %v1935 = vpack.c.b16 %v1896, %v1895
  %v1936 = vpack.c.b16 %v1898, %v1897
  %v1937 = vpack.c.b16 %v1900, %v1899
  %v1938 = vpack.c.b16 %v1902, %v1901
  %v1939 = vpack.c.b16 %v1904, %v1903
  %v1940 = vpack.c.b16 %v1906, %v1905
  %v1941 = vpack.c.b16 %v1908, %v1907
  %v1942 = vpack.c.b16 %v1910, %v1909
  %1943 = vrot.lane.b32.xlu0 %v1911, 8
  %v1944 = vpop.permute.xlu0 %1943
  %1945 = vrot.lane.b32.xlu0 %v1912, 8
  %v1946 = vpop.permute.xlu0 %1945
  %1947 = vrot.lane.b32.xlu0 %v1913, 8
  %v1948 = vpop.permute.xlu0 %1947
  %1949 = vrot.lane.b32.xlu0 %v1914, 8
  %v1950 = vpop.permute.xlu0 %1949
  %1951 = vrot.lane.b32.xlu0 %v1915, 8
  %v1952 = vpop.permute.xlu0 %1951
  %1953 = vrot.lane.b32.xlu0 %v1916, 8
  %v1954 = vpop.permute.xlu0 %1953
  %1955 = vrot.lane.b32.xlu0 %v1917, 8
  %v1956 = vpop.permute.xlu0 %1955
  %1957 = vrot.lane.b32.xlu0 %v1918, 8
  %v1958 = vpop.permute.xlu0 %1957
  %1959 = vrot.lane.b32.xlu0 %v1919, 8
  %v1960 = vpop.permute.xlu0 %1959
  %1961 = vrot.lane.b32.xlu0 %v1920, 8
  %v1962 = vpop.permute.xlu0 %1961
  %1963 = vrot.lane.b32.xlu0 %v1921, 8
  %v1964 = vpop.permute.xlu0 %1963
  %1965 = vrot.lane.b32.xlu0 %v1922, 8
  %v1966 = vpop.permute.xlu0 %1965
  %1967 = vrot.lane.b32.xlu0 %v1923, 8
  %v1968 = vpop.permute.xlu0 %1967
  %1969 = vrot.lane.b32.xlu0 %v1924, 8
  %v1970 = vpop.permute.xlu0 %1969
  %1971 = vrot.lane.b32.xlu0 %v1925, 8
  %v1972 = vpop.permute.xlu0 %1971
  %1973 = vrot.lane.b32.xlu0 %v1926, 8
  %v1974 = vpop.permute.xlu0 %1973
  %1975 = vrot.lane.b32.xlu0 %v1927, 8
  %v1976 = vpop.permute.xlu0 %1975
  %1977 = vrot.lane.b32.xlu0 %v1928, 8
  %v1978 = vpop.permute.xlu0 %1977
  %1979 = vrot.lane.b32.xlu0 %v1929, 8
  %v1980 = vpop.permute.xlu0 %1979
  %1981 = vrot.lane.b32.xlu0 %v1930, 8
  %v1982 = vpop.permute.xlu0 %1981
  %1983 = vrot.lane.b32.xlu0 %v1931, 8
  %v1984 = vpop.permute.xlu0 %1983
  %1985 = vrot.lane.b32.xlu0 %v1932, 8
  %v1986 = vpop.permute.xlu0 %1985
  %1987 = vrot.lane.b32.xlu0 %v1933, 8
  %v1988 = vpop.permute.xlu0 %1987
  %1989 = vrot.lane.b32.xlu0 %v1934, 8
  %v1990 = vpop.permute.xlu0 %1989
  %1991 = vrot.lane.b32.xlu0 %v1935, 8
  %v1992 = vpop.permute.xlu0 %1991
  %1993 = vrot.lane.b32.xlu0 %v1936, 8
  %v1994 = vpop.permute.xlu0 %1993
  %1995 = vrot.lane.b32.xlu0 %v1937, 8
  %v1996 = vpop.permute.xlu0 %1995
  %1997 = vrot.lane.b32.xlu0 %v1938, 8
  %v1998 = vpop.permute.xlu0 %1997
  %1999 = vrot.lane.b32.xlu0 %v1939, 8
  %v2000 = vpop.permute.xlu0 %1999
  %2001 = vrot.lane.b32.xlu0 %v1940, 8
  %v2002 = vpop.permute.xlu0 %2001
  %2003 = vrot.lane.b32.xlu0 %v1941, 8
  %v2004 = vpop.permute.xlu0 %2003
  %2005 = vrot.lane.b32.xlu0 %v1942, 8
  %v2006 = vpop.permute.xlu0 %2005
  %vm2039 = vcmask 97344
  %2040 = vst.msk [vmem:[#allocation2] sm:$0xff] %vm2039, %v1944
  %2041 = vst.msk [vmem:[#allocation2 + $0x8] sm:$0xff] %vm2039, %v1946
  %2042 = vst.msk [vmem:[#allocation2 + $0x10] sm:$0xff] %vm2039, %v1948
  %2043 = vst.msk [vmem:[#allocation2 + $0x18] sm:$0xff] %vm2039, %v1950
  %2044 = vst.msk [vmem:[#allocation2 + $0x20] sm:$0xff] %vm2039, %v1952
  %2045 = vst.msk [vmem:[#allocation2 + $0x28] sm:$0xff] %vm2039, %v1954
  %2046 = vst.msk [vmem:[#allocation2 + $0x30] sm:$0xff] %vm2039, %v1956
  %2047 = vst.msk [vmem:[#allocation2 + $0x38] sm:$0xff] %vm2039, %v1958
  %2048 = vst.msk [vmem:[#allocation2 + $0x40] sm:$0xff] %vm2039, %v1960
  %2049 = vst.msk [vmem:[#allocation2 + $0x48] sm:$0xff] %vm2039, %v1962
  %2050 = vst.msk [vmem:[#allocation2 + $0x50] sm:$0xff] %vm2039, %v1964
  %2051 = vst.msk [vmem:[#allocation2 + $0x58] sm:$0xff] %vm2039, %v1966
  %2052 = vst.msk [vmem:[#allocation2 + $0x60] sm:$0xff] %vm2039, %v1968
  %2053 = vst.msk [vmem:[#allocation2 + $0x68] sm:$0xff] %vm2039, %v1970
  %2054 = vst.msk [vmem:[#allocation2 + $0x70] sm:$0xff] %vm2039, %v1972
  %2055 = vst.msk [vmem:[#allocation2 + $0x78] sm:$0xff] %vm2039, %v1974
  %2056 = vst.msk [vmem:[#allocation2 + $0x80] sm:$0xff] %vm2039, %v1976
  %2057 = vst.msk [vmem:[#allocation2 + $0x88] sm:$0xff] %vm2039, %v1978
  %2058 = vst.msk [vmem:[#allocation2 + $0x90] sm:$0xff] %vm2039, %v1980
  %2059 = vst.msk [vmem:[#allocation2 + $0x98] sm:$0xff] %vm2039, %v1982
  %2060 = vst.msk [vmem:[#allocation2 + $0xa0] sm:$0xff] %vm2039, %v1984
  %2061 = vst.msk [vmem:[#allocation2 + $0xa8] sm:$0xff] %vm2039, %v1986
  %2062 = vst.msk [vmem:[#allocation2 + $0xb0] sm:$0xff] %vm2039, %v1988
  %2063 = vst.msk [vmem:[#allocation2 + $0xb8] sm:$0xff] %vm2039, %v1990
  %2064 = vst.msk [vmem:[#allocation2 + $0xc0] sm:$0xff] %vm2039, %v1992
  %2065 = vst.msk [vmem:[#allocation2 + $0xc8] sm:$0xff] %vm2039, %v1994
  %2066 = vst.msk [vmem:[#allocation2 + $0xd0] sm:$0xff] %vm2039, %v1996
  %2067 = vst.msk [vmem:[#allocation2 + $0xd8] sm:$0xff] %vm2039, %v1998
  %2068 = vst.msk [vmem:[#allocation2 + $0xe0] sm:$0xff] %vm2039, %v2000
  %2069 = vst.msk [vmem:[#allocation2 + $0xe8] sm:$0xff] %vm2039, %v2002
  %2070 = vst.msk [vmem:[#allocation2 + $0xf0] sm:$0xff] %vm2039, %v2004
  %2071 = vst.msk [vmem:[#allocation2 + $0xf8] sm:$0xff] %vm2039, %v2006
  %s2072 = scalar_lea.vmem %s0, 12
  %v2073 = vld [vmem:[%s2072] sm:$0xf]
  %v2074 = vld [vmem:[%s2072 + $0x4] sm:$0xf]
  %v2075 = vld [vmem:[%s2072 + $0xc] sm:$0xf]
  %v2076 = vld [vmem:[%s2072 + $0x10] sm:$0xf]
  %v2077 = vld [vmem:[%s2072 + $0x18] sm:$0xf]
  %v2078 = vld [vmem:[%s2072 + $0x1c] sm:$0xf]
  %v2079 = vld [vmem:[%s2072 + $0x24] sm:$0xf]
  %v2080 = vld [vmem:[%s2072 + $0x28] sm:$0xf]
  %v2081 = vld [vmem:[%s2072 + $0x30] sm:$0xf]
  %v2082 = vld [vmem:[%s2072 + $0x34] sm:$0xf]
  %v2083 = vld [vmem:[%s2072 + $0x3c] sm:$0xf]
  %v2084 = vld [vmem:[%s2072 + $0x40] sm:$0xf]
  %v2085 = vld [vmem:[%s2072 + $0x48] sm:$0xf]
  %v2086 = vld [vmem:[%s2072 + $0x4c] sm:$0xf]
  %v2087 = vld [vmem:[%s2072 + $0x54] sm:$0xf]
  %v2088 = vld [vmem:[%s2072 + $0x58] sm:$0xf]
  %v2089 = vld [vmem:[%s2072 + $0x60] sm:$0xf]
  %v2090 = vld [vmem:[%s2072 + $0x64] sm:$0xf]
  %v2091 = vld [vmem:[%s2072 + $0x6c] sm:$0xf]
  %v2092 = vld [vmem:[%s2072 + $0x70] sm:$0xf]
  %v2093 = vld [vmem:[%s2072 + $0x78] sm:$0xf]
  %v2094 = vld [vmem:[%s2072 + $0x7c] sm:$0xf]
  %v2095 = vld [vmem:[%s2072 + $0x84] sm:$0xf]
  %v2096 = vld [vmem:[%s2072 + $0x88] sm:$0xf]
  %v2097 = vld [vmem:[%s2072 + $0x90] sm:$0xf]
  %v2098 = vld [vmem:[%s2072 + $0x94] sm:$0xf]
  %v2099 = vld [vmem:[%s2072 + $0x9c] sm:$0xf]
  %v2100 = vld [vmem:[%s2072 + $0xa0] sm:$0xf]
  %v2101 = vld [vmem:[%s2072 + $0xa8] sm:$0xf]
  %v2102 = vld [vmem:[%s2072 + $0xac] sm:$0xf]
  %v2103 = vld [vmem:[%s2072 + $0xb4] sm:$0xf]
  %v2104 = vld [vmem:[%s2072 + $0xb8] sm:$0xf]
  %v2105 = vld [vmem:[%s2072 + $0xd8] sm:$0xf]
  %v2106 = vld [vmem:[%s2072 + $0xdc] sm:$0xf]
  %v2107 = vld [vmem:[%s2072 + $0xe4] sm:$0xf]
  %v2108 = vld [vmem:[%s2072 + $0xe8] sm:$0xf]
  %v2109 = vld [vmem:[%s2072 + $0xf0] sm:$0xf]
  %v2110 = vld [vmem:[%s2072 + $0xf4] sm:$0xf]
  %v2111 = vld [vmem:[%s2072 + $0xfc] sm:$0xf]
  %v2112 = vld [vmem:[%s2072 + $0x100] sm:$0xf]
  %v2113 = vld [vmem:[%s2072 + $0x108] sm:$0xf]
  %v2114 = vld [vmem:[%s2072 + $0x10c] sm:$0xf]
  %v2115 = vld [vmem:[%s2072 + $0x114] sm:$0xf]
  %v2116 = vld [vmem:[%s2072 + $0x118] sm:$0xf]
  %v2117 = vld [vmem:[%s2072 + $0x120] sm:$0xf]
  %v2118 = vld [vmem:[%s2072 + $0x124] sm:$0xf]
  %v2119 = vld [vmem:[%s2072 + $0x12c] sm:$0xf]
  %v2120 = vld [vmem:[%s2072 + $0x130] sm:$0xf]
  %v2121 = vld [vmem:[%s2072 + $0x138] sm:$0xf]
  %v2122 = vld [vmem:[%s2072 + $0x13c] sm:$0xf]
  %v2123 = vld [vmem:[%s2072 + $0x144] sm:$0xf]
  %v2124 = vld [vmem:[%s2072 + $0x148] sm:$0xf]
  %v2125 = vld [vmem:[%s2072 + $0x150] sm:$0xf]
  %v2126 = vld [vmem:[%s2072 + $0x154] sm:$0xf]
  %v2127 = vld [vmem:[%s2072 + $0x15c] sm:$0xf]
  %v2128 = vld [vmem:[%s2072 + $0x160] sm:$0xf]
  %v2129 = vld [vmem:[%s2072 + $0x168] sm:$0xf]
  %v2130 = vld [vmem:[%s2072 + $0x16c] sm:$0xf]
  %v2131 = vld [vmem:[%s2072 + $0x174] sm:$0xf]
  %v2132 = vld [vmem:[%s2072 + $0x178] sm:$0xf]
  %v2133 = vld [vmem:[%s2072 + $0x180] sm:$0xf]
  %v2134 = vld [vmem:[%s2072 + $0x184] sm:$0xf]
  %v2135 = vld [vmem:[%s2072 + $0x18c] sm:$0xf]
  %v2136 = vld [vmem:[%s2072 + $0x190] sm:$0xf]
  %v2201 = vunpack.c.l.b16 %v2073
  %v2202 = vunpack.c.l.b16 %v2074
  %v2203 = vunpack.c.l.b16 %v2075
  %v2204 = vunpack.c.l.b16 %v2076
  %v2205 = vunpack.c.l.b16 %v2077
  %v2206 = vunpack.c.l.b16 %v2078
  %v2207 = vunpack.c.l.b16 %v2079
  %v2208 = vunpack.c.l.b16 %v2080
  %v2209 = vunpack.c.l.b16 %v2081
  %v2210 = vunpack.c.l.b16 %v2082
  %v2211 = vunpack.c.l.b16 %v2083
  %v2212 = vunpack.c.l.b16 %v2084
  %v2213 = vunpack.c.l.b16 %v2085
  %v2214 = vunpack.c.l.b16 %v2086
  %v2215 = vunpack.c.l.b16 %v2087
  %v2216 = vunpack.c.l.b16 %v2088
  %v2217 = vunpack.c.l.b16 %v2089
  %v2218 = vunpack.c.l.b16 %v2090
  %v2219 = vunpack.c.l.b16 %v2091
  %v2220 = vunpack.c.l.b16 %v2092
  %v2221 = vunpack.c.l.b16 %v2093
  %v2222 = vunpack.c.l.b16 %v2094
  %v2223 = vunpack.c.l.b16 %v2095
  %v2224 = vunpack.c.l.b16 %v2096
  %v2225 = vunpack.c.l.b16 %v2097
  %v2226 = vunpack.c.l.b16 %v2098
  %v2227 = vunpack.c.l.b16 %v2099
  %v2228 = vunpack.c.l.b16 %v2100
  %v2229 = vunpack.c.l.b16 %v2101
  %v2230 = vunpack.c.l.b16 %v2102
  %v2231 = vunpack.c.l.b16 %v2103
  %v2232 = vunpack.c.l.b16 %v2104
  %v2233 = vunpack.c.l.b16 %v2105
  %v2234 = vunpack.c.l.b16 %v2106
  %v2235 = vunpack.c.l.b16 %v2107
  %v2236 = vunpack.c.l.b16 %v2108
  %v2237 = vunpack.c.l.b16 %v2109
  %v2238 = vunpack.c.l.b16 %v2110
  %v2239 = vunpack.c.l.b16 %v2111
  %v2240 = vunpack.c.l.b16 %v2112
  %v2241 = vunpack.c.l.b16 %v2113
  %v2242 = vunpack.c.l.b16 %v2114
  %v2243 = vunpack.c.l.b16 %v2115
  %v2244 = vunpack.c.l.b16 %v2116
  %v2245 = vunpack.c.l.b16 %v2117
  %v2246 = vunpack.c.l.b16 %v2118
  %v2247 = vunpack.c.l.b16 %v2119
  %v2248 = vunpack.c.l.b16 %v2120
  %v2249 = vunpack.c.l.b16 %v2121
  %v2250 = vunpack.c.l.b16 %v2122
  %v2251 = vunpack.c.l.b16 %v2123
  %v2252 = vunpack.c.l.b16 %v2124
  %v2253 = vunpack.c.l.b16 %v2125
  %v2254 = vunpack.c.l.b16 %v2126
  %v2255 = vunpack.c.l.b16 %v2127
  %v2256 = vunpack.c.l.b16 %v2128
  %v2257 = vunpack.c.l.b16 %v2129
  %v2258 = vunpack.c.l.b16 %v2130
  %v2259 = vunpack.c.l.b16 %v2131
  %v2260 = vunpack.c.l.b16 %v2132
  %v2261 = vunpack.c.l.b16 %v2133
  %v2262 = vunpack.c.l.b16 %v2134
  %v2263 = vunpack.c.l.b16 %v2135
  %v2264 = vunpack.c.l.b16 %v2136
  %v2265 = vpack.c.b16 %v2202, %v2201
  %v2266 = vpack.c.b16 %v2204, %v2203
  %v2267 = vpack.c.b16 %v2206, %v2205
  %v2268 = vpack.c.b16 %v2208, %v2207
  %v2269 = vpack.c.b16 %v2210, %v2209
  %v2270 = vpack.c.b16 %v2212, %v2211
  %v2271 = vpack.c.b16 %v2214, %v2213
  %v2272 = vpack.c.b16 %v2216, %v2215
  %v2273 = vpack.c.b16 %v2218, %v2217
  %v2274 = vpack.c.b16 %v2220, %v2219
  %v2275 = vpack.c.b16 %v2222, %v2221
  %v2276 = vpack.c.b16 %v2224, %v2223
  %v2277 = vpack.c.b16 %v2226, %v2225
  %v2278 = vpack.c.b16 %v2228, %v2227
  %v2279 = vpack.c.b16 %v2230, %v2229
  %v2280 = vpack.c.b16 %v2232, %v2231
  %v2281 = vpack.c.b16 %v2234, %v2233
  %v2282 = vpack.c.b16 %v2236, %v2235
  %v2283 = vpack.c.b16 %v2238, %v2237
  %v2284 = vpack.c.b16 %v2240, %v2239
  %v2285 = vpack.c.b16 %v2242, %v2241
  %v2286 = vpack.c.b16 %v2244, %v2243
  %v2287 = vpack.c.b16 %v2246, %v2245
  %v2288 = vpack.c.b16 %v2248, %v2247
  %v2289 = vpack.c.b16 %v2250, %v2249
  %v2290 = vpack.c.b16 %v2252, %v2251
  %v2291 = vpack.c.b16 %v2254, %v2253
  %v2292 = vpack.c.b16 %v2256, %v2255
  %v2293 = vpack.c.b16 %v2258, %v2257
  %v2294 = vpack.c.b16 %v2260, %v2259
  %v2295 = vpack.c.b16 %v2262, %v2261
  %v2296 = vpack.c.b16 %v2264, %v2263
  %2297 = vrot.lane.b32.xlu0 %v2265, 12
  %v2298 = vpop.permute.xlu0 %2297
  %2299 = vrot.lane.b32.xlu0 %v2266, 12
  %v2300 = vpop.permute.xlu0 %2299
  %2301 = vrot.lane.b32.xlu0 %v2267, 12
  %v2302 = vpop.permute.xlu0 %2301
  %2303 = vrot.lane.b32.xlu0 %v2268, 12
  %v2304 = vpop.permute.xlu0 %2303
  %2305 = vrot.lane.b32.xlu0 %v2269, 12
  %v2306 = vpop.permute.xlu0 %2305
  %2307 = vrot.lane.b32.xlu0 %v2270, 12
  %v2308 = vpop.permute.xlu0 %2307
  %2309 = vrot.lane.b32.xlu0 %v2271, 12
  %v2310 = vpop.permute.xlu0 %2309
  %2311 = vrot.lane.b32.xlu0 %v2272, 12
  %v2312 = vpop.permute.xlu0 %2311
  %2313 = vrot.lane.b32.xlu0 %v2273, 12
  %v2314 = vpop.permute.xlu0 %2313
  %2315 = vrot.lane.b32.xlu0 %v2274, 12
  %v2316 = vpop.permute.xlu0 %2315
  %2317 = vrot.lane.b32.xlu0 %v2275, 12
  %v2318 = vpop.permute.xlu0 %2317
  %2319 = vrot.lane.b32.xlu0 %v2276, 12
  %v2320 = vpop.permute.xlu0 %2319
  %2321 = vrot.lane.b32.xlu0 %v2277, 12
  %v2322 = vpop.permute.xlu0 %2321
  %2323 = vrot.lane.b32.xlu0 %v2278, 12
  %v2324 = vpop.permute.xlu0 %2323
  %2325 = vrot.lane.b32.xlu0 %v2279, 12
  %v2326 = vpop.permute.xlu0 %2325
  %2327 = vrot.lane.b32.xlu0 %v2280, 12
  %v2328 = vpop.permute.xlu0 %2327
  %2329 = vrot.lane.b32.xlu0 %v2281, 12
  %v2330 = vpop.permute.xlu0 %2329
  %2331 = vrot.lane.b32.xlu0 %v2282, 12
  %v2332 = vpop.permute.xlu0 %2331
  %2333 = vrot.lane.b32.xlu0 %v2283, 12
  %v2334 = vpop.permute.xlu0 %2333
  %2335 = vrot.lane.b32.xlu0 %v2284, 12
  %v2336 = vpop.permute.xlu0 %2335
  %2337 = vrot.lane.b32.xlu0 %v2285, 12
  %v2338 = vpop.permute.xlu0 %2337
  %2339 = vrot.lane.b32.xlu0 %v2286, 12
  %v2340 = vpop.permute.xlu0 %2339
  %2341 = vrot.lane.b32.xlu0 %v2287, 12
  %v2342 = vpop.permute.xlu0 %2341
  %2343 = vrot.lane.b32.xlu0 %v2288, 12
  %v2344 = vpop.permute.xlu0 %2343
  %2345 = vrot.lane.b32.xlu0 %v2289, 12
  %v2346 = vpop.permute.xlu0 %2345
  %2347 = vrot.lane.b32.xlu0 %v2290, 12
  %v2348 = vpop.permute.xlu0 %2347
  %2349 = vrot.lane.b32.xlu0 %v2291, 12
  %v2350 = vpop.permute.xlu0 %2349
  %2351 = vrot.lane.b32.xlu0 %v2292, 12
  %v2352 = vpop.permute.xlu0 %2351
  %2353 = vrot.lane.b32.xlu0 %v2293, 12
  %v2354 = vpop.permute.xlu0 %2353
  %2355 = vrot.lane.b32.xlu0 %v2294, 12
  %v2356 = vpop.permute.xlu0 %2355
  %2357 = vrot.lane.b32.xlu0 %v2295, 12
  %v2358 = vpop.permute.xlu0 %2357
  %2359 = vrot.lane.b32.xlu0 %v2296, 12
  %v2360 = vpop.permute.xlu0 %2359
  %vm2393 = vcmask 130144
  %2394 = vst.msk [vmem:[#allocation2] sm:$0xff] %vm2393, %v2298
  %2395 = vst.msk [vmem:[#allocation2 + $0x8] sm:$0xff] %vm2393, %v2300
  %2396 = vst.msk [vmem:[#allocation2 + $0x10] sm:$0xff] %vm2393, %v2302
  %2397 = vst.msk [vmem:[#allocation2 + $0x18] sm:$0xff] %vm2393, %v2304
  %2398 = vst.msk [vmem:[#allocation2 + $0x20] sm:$0xff] %vm2393, %v2306
  %2399 = vst.msk [vmem:[#allocation2 + $0x28] sm:$0xff] %vm2393, %v2308
  %2400 = vst.msk [vmem:[#allocation2 + $0x30] sm:$0xff] %vm2393, %v2310
  %2401 = vst.msk [vmem:[#allocation2 + $0x38] sm:$0xff] %vm2393, %v2312
  %2402 = vst.msk [vmem:[#allocation2 + $0x40] sm:$0xff] %vm2393, %v2314
  %2403 = vst.msk [vmem:[#allocation2 + $0x48] sm:$0xff] %vm2393, %v2316
  %2404 = vst.msk [vmem:[#allocation2 + $0x50] sm:$0xff] %vm2393, %v2318
  %2405 = vst.msk [vmem:[#allocation2 + $0x58] sm:$0xff] %vm2393, %v2320
  %2406 = vst.msk [vmem:[#allocation2 + $0x60] sm:$0xff] %vm2393, %v2322
  %2407 = vst.msk [vmem:[#allocation2 + $0x68] sm:$0xff] %vm2393, %v2324
  %2408 = vst.msk [vmem:[#allocation2 + $0x70] sm:$0xff] %vm2393, %v2326
  %2409 = vst.msk [vmem:[#allocation2 + $0x78] sm:$0xff] %vm2393, %v2328
  %2410 = vst.msk [vmem:[#allocation2 + $0x80] sm:$0xff] %vm2393, %v2330
  %2411 = vst.msk [vmem:[#allocation2 + $0x88] sm:$0xff] %vm2393, %v2332
  %2412 = vst.msk [vmem:[#allocation2 + $0x90] sm:$0xff] %vm2393, %v2334
  %2413 = vst.msk [vmem:[#allocation2 + $0x98] sm:$0xff] %vm2393, %v2336
  %2414 = vst.msk [vmem:[#allocation2 + $0xa0] sm:$0xff] %vm2393, %v2338
  %2415 = vst.msk [vmem:[#allocation2 + $0xa8] sm:$0xff] %vm2393, %v2340
  %2416 = vst.msk [vmem:[#allocation2 + $0xb0] sm:$0xff] %vm2393, %v2342
  %2417 = vst.msk [vmem:[#allocation2 + $0xb8] sm:$0xff] %vm2393, %v2344
  %2418 = vst.msk [vmem:[#allocation2 + $0xc0] sm:$0xff] %vm2393, %v2346
  %2419 = vst.msk [vmem:[#allocation2 + $0xc8] sm:$0xff] %vm2393, %v2348
  %2420 = vst.msk [vmem:[#allocation2 + $0xd0] sm:$0xff] %vm2393, %v2350
  %2421 = vst.msk [vmem:[#allocation2 + $0xd8] sm:$0xff] %vm2393, %v2352
  %2422 = vst.msk [vmem:[#allocation2 + $0xe0] sm:$0xff] %vm2393, %v2354
  %2423 = vst.msk [vmem:[#allocation2 + $0xe8] sm:$0xff] %vm2393, %v2356
  %2424 = vst.msk [vmem:[#allocation2 + $0xf0] sm:$0xff] %vm2393, %v2358
  %2425 = vst.msk [vmem:[#allocation2 + $0xf8] sm:$0xff] %vm2393, %v2360
  %v2426 = vld [vmem:[%s2072] sm:$0xf]
  %v2427 = vld [vmem:[%s2072 + $0x4] sm:$0xf]
  %v2428 = vld [vmem:[%s2072 + $0x8] sm:$0x1]
  %v2429 = vld [vmem:[%s2072 + $0xc] sm:$0xf]
  %v2430 = vld [vmem:[%s2072 + $0x10] sm:$0xf]
  %v2431 = vld [vmem:[%s2072 + $0x14] sm:$0x1]
  %v2432 = vld [vmem:[%s2072 + $0x18] sm:$0xf]
  %v2433 = vld [vmem:[%s2072 + $0x1c] sm:$0xf]
  %v2434 = vld [vmem:[%s2072 + $0x20] sm:$0x1]
  %v2435 = vld [vmem:[%s2072 + $0x24] sm:$0xf]
  %v2436 = vld [vmem:[%s2072 + $0x28] sm:$0xf]
  %v2437 = vld [vmem:[%s2072 + $0x2c] sm:$0x1]
  %v2438 = vld [vmem:[%s2072 + $0x30] sm:$0xf]
  %v2439 = vld [vmem:[%s2072 + $0x34] sm:$0xf]
  %v2440 = vld [vmem:[%s2072 + $0x38] sm:$0x1]
  %v2441 = vld [vmem:[%s2072 + $0x3c] sm:$0xf]
  %v2442 = vld [vmem:[%s2072 + $0x40] sm:$0xf]
  %v2443 = vld [vmem:[%s2072 + $0x44] sm:$0x1]
  %v2444 = vld [vmem:[%s2072 + $0x48] sm:$0xf]
  %v2445 = vld [vmem:[%s2072 + $0x4c] sm:$0xf]
  %v2446 = vld [vmem:[%s2072 + $0x50] sm:$0x1]
  %v2447 = vld [vmem:[%s2072 + $0x54] sm:$0xf]
  %v2448 = vld [vmem:[%s2072 + $0x58] sm:$0xf]
  %v2449 = vld [vmem:[%s2072 + $0x5c] sm:$0x1]
  %v2450 = vld [vmem:[%s2072 + $0x60] sm:$0xf]
  %v2451 = vld [vmem:[%s2072 + $0x64] sm:$0xf]
  %v2452 = vld [vmem:[%s2072 + $0x68] sm:$0x1]
  %v2453 = vld [vmem:[%s2072 + $0x6c] sm:$0xf]
  %v2454 = vld [vmem:[%s2072 + $0x70] sm:$0xf]
  %v2455 = vld [vmem:[%s2072 + $0x74] sm:$0x1]
  %v2456 = vld [vmem:[%s2072 + $0x78] sm:$0xf]
  %v2457 = vld [vmem:[%s2072 + $0x7c] sm:$0xf]
  %v2458 = vld [vmem:[%s2072 + $0x80] sm:$0x1]
  %v2459 = vld [vmem:[%s2072 + $0x84] sm:$0xf]
  %v2460 = vld [vmem:[%s2072 + $0x88] sm:$0xf]
  %v2461 = vld [vmem:[%s2072 + $0x8c] sm:$0x1]
  %v2462 = vld [vmem:[%s2072 + $0x90] sm:$0xf]
  %v2463 = vld [vmem:[%s2072 + $0x94] sm:$0xf]
  %v2464 = vld [vmem:[%s2072 + $0x98] sm:$0x1]
  %v2465 = vld [vmem:[%s2072 + $0x9c] sm:$0xf]
  %v2466 = vld [vmem:[%s2072 + $0xa0] sm:$0xf]
  %v2467 = vld [vmem:[%s2072 + $0xa4] sm:$0x1]
  %v2468 = vld [vmem:[%s2072 + $0xa8] sm:$0xf]
  %v2469 = vld [vmem:[%s2072 + $0xac] sm:$0xf]
  %v2470 = vld [vmem:[%s2072 + $0xb0] sm:$0x1]
  %v2471 = vld [vmem:[%s2072 + $0xb4] sm:$0xf]
  %v2472 = vld [vmem:[%s2072 + $0xb8] sm:$0xf]
  %v2473 = vld [vmem:[%s2072 + $0xbc] sm:$0x1]
  %v2474 = vld [vmem:[%s2072 + $0xd8] sm:$0xf]
  %v2475 = vld [vmem:[%s2072 + $0xdc] sm:$0xf]
  %v2476 = vld [vmem:[%s2072 + $0xe0] sm:$0x1]
  %v2477 = vld [vmem:[%s2072 + $0xe4] sm:$0xf]
  %v2478 = vld [vmem:[%s2072 + $0xe8] sm:$0xf]
  %v2479 = vld [vmem:[%s2072 + $0xec] sm:$0x1]
  %v2480 = vld [vmem:[%s2072 + $0xf0] sm:$0xf]
  %v2481 = vld [vmem:[%s2072 + $0xf4] sm:$0xf]
  %v2482 = vld [vmem:[%s2072 + $0xf8] sm:$0x1]
  %v2483 = vld [vmem:[%s2072 + $0xfc] sm:$0xf]
  %v2484 = vld [vmem:[%s2072 + $0x100] sm:$0xf]
  %v2485 = vld [vmem:[%s2072 + $0x104] sm:$0x1]
  %v2486 = vld [vmem:[%s2072 + $0x108] sm:$0xf]
  %v2487 = vld [vmem:[%s2072 + $0x10c] sm:$0xf]
  %v2488 = vld [vmem:[%s2072 + $0x110] sm:$0x1]
  %v2489 = vld [vmem:[%s2072 + $0x114] sm:$0xf]
  %v2490 = vld [vmem:[%s2072 + $0x118] sm:$0xf]
  %v2491 = vld [vmem:[%s2072 + $0x11c] sm:$0x1]
  %v2492 = vld [vmem:[%s2072 + $0x120] sm:$0xf]
  %v2493 = vld [vmem:[%s2072 + $0x124] sm:$0xf]
  %v2494 = vld [vmem:[%s2072 + $0x128] sm:$0x1]
  %v2495 = vld [vmem:[%s2072 + $0x12c] sm:$0xf]
  %v2496 = vld [vmem:[%s2072 + $0x130] sm:$0xf]
  %v2497 = vld [vmem:[%s2072 + $0x134] sm:$0x1]
  %v2498 = vld [vmem:[%s2072 + $0x138] sm:$0xf]
  %v2499 = vld [vmem:[%s2072 + $0x13c] sm:$0xf]
  %v2500 = vld [vmem:[%s2072 + $0x140] sm:$0x1]
  %v2501 = vld [vmem:[%s2072 + $0x144] sm:$0xf]
  %v2502 = vld [vmem:[%s2072 + $0x148] sm:$0xf]
  %v2503 = vld [vmem:[%s2072 + $0x14c] sm:$0x1]
  %v2504 = vld [vmem:[%s2072 + $0x150] sm:$0xf]
  %v2505 = vld [vmem:[%s2072 + $0x154] sm:$0xf]
  %v2506 = vld [vmem:[%s2072 + $0x158] sm:$0x1]
  %v2507 = vld [vmem:[%s2072 + $0x15c] sm:$0xf]
  %v2508 = vld [vmem:[%s2072 + $0x160] sm:$0xf]
  %v2509 = vld [vmem:[%s2072 + $0x164] sm:$0x1]
  %v2510 = vld [vmem:[%s2072 + $0x168] sm:$0xf]
  %v2511 = vld [vmem:[%s2072 + $0x16c] sm:$0xf]
  %v2512 = vld [vmem:[%s2072 + $0x170] sm:$0x1]
  %v2513 = vld [vmem:[%s2072 + $0x174] sm:$0xf]
  %v2514 = vld [vmem:[%s2072 + $0x178] sm:$0xf]
  %v2515 = vld [vmem:[%s2072 + $0x17c] sm:$0x1]
  %v2516 = vld [vmem:[%s2072 + $0x180] sm:$0xf]
  %v2517 = vld [vmem:[%s2072 + $0x184] sm:$0xf]
  %v2518 = vld [vmem:[%s2072 + $0x188] sm:$0x1]
  %v2519 = vld [vmem:[%s2072 + $0x18c] sm:$0xf]
  %v2520 = vld [vmem:[%s2072 + $0x190] sm:$0xf]
  %v2521 = vld [vmem:[%s2072 + $0x194] sm:$0x1]
  %v2523 = vshrl.u32 %v2426, 16
  %v2525 = vrot.slane %v2523, 4
  %v2526 = vshll.u32 %v2426, 16
  %v2528 = vrot.slane %v2526, 5
  %v2529 = vor.u32 %v2525, %v2528
  %v2530 = vrot.slane %v2529, 4
  %v2532 = vshll.u32 %v2427, 16
  %v2534 = vrot.slane %v2532, 5
  %v2535 = vsel %vm434, %v2530, %v2534
  %v2536 = vshrl.u32 %v2427, 16
  %v2538 = vrot.slane %v2536, 4
  %v2539 = vor.u32 %v2538, %v2534
  %v2540 = vrot.slane %v2539, 4
  %v2542 = vshll.u32 %v2428, 16
  %v2544 = vrot.slane %v2542, 5
  %v2545 = vsel %vm434, %v2540, %v2544
  %v2547 = vshrl.u32 %v2429, 16
  %v2549 = vrot.slane %v2547, 4
  %v2550 = vshll.u32 %v2429, 16
  %v2552 = vrot.slane %v2550, 5
  %v2553 = vor.u32 %v2549, %v2552
  %v2554 = vrot.slane %v2553, 4
  %v2556 = vshll.u32 %v2430, 16
  %v2558 = vrot.slane %v2556, 5
  %v2559 = vsel %vm434, %v2554, %v2558
  %v2560 = vshrl.u32 %v2430, 16
  %v2562 = vrot.slane %v2560, 4
  %v2563 = vor.u32 %v2562, %v2558
  %v2564 = vrot.slane %v2563, 4
  %v2566 = vshll.u32 %v2431, 16
  %v2568 = vrot.slane %v2566, 5
  %v2569 = vsel %vm434, %v2564, %v2568
  %v2571 = vshrl.u32 %v2432, 16
  %v2573 = vrot.slane %v2571, 4
  %v2574 = vshll.u32 %v2432, 16
  %v2576 = vrot.slane %v2574, 5
  %v2577 = vor.u32 %v2573, %v2576
  %v2578 = vrot.slane %v2577, 4
  %v2580 = vshll.u32 %v2433, 16
  %v2582 = vrot.slane %v2580, 5
  %v2583 = vsel %vm434, %v2578, %v2582
  %v2584 = vshrl.u32 %v2433, 16
  %v2586 = vrot.slane %v2584, 4
  %v2587 = vor.u32 %v2586, %v2582
  %v2588 = vrot.slane %v2587, 4
  %v2590 = vshll.u32 %v2434, 16
  %v2592 = vrot.slane %v2590, 5
  %v2593 = vsel %vm434, %v2588, %v2592
  %v2595 = vshrl.u32 %v2435, 16
  %v2597 = vrot.slane %v2595, 4
  %v2598 = vshll.u32 %v2435, 16
  %v2600 = vrot.slane %v2598, 5
  %v2601 = vor.u32 %v2597, %v2600
  %v2602 = vrot.slane %v2601, 4
  %v2604 = vshll.u32 %v2436, 16
  %v2606 = vrot.slane %v2604, 5
  %v2607 = vsel %vm434, %v2602, %v2606
  %v2608 = vshrl.u32 %v2436, 16
  %v2610 = vrot.slane %v2608, 4
  %v2611 = vor.u32 %v2610, %v2606
  %v2612 = vrot.slane %v2611, 4
  %v2614 = vshll.u32 %v2437, 16
  %v2616 = vrot.slane %v2614, 5
  %v2617 = vsel %vm434, %v2612, %v2616
  %v2619 = vshrl.u32 %v2438, 16
  %v2621 = vrot.slane %v2619, 4
  %v2622 = vshll.u32 %v2438, 16
  %v2624 = vrot.slane %v2622, 5
  %v2625 = vor.u32 %v2621, %v2624
  %v2626 = vrot.slane %v2625, 4
  %v2628 = vshll.u32 %v2439, 16
  %v2630 = vrot.slane %v2628, 5
  %v2631 = vsel %vm434, %v2626, %v2630
  %v2632 = vshrl.u32 %v2439, 16
  %v2634 = vrot.slane %v2632, 4
  %v2635 = vor.u32 %v2634, %v2630
  %v2636 = vrot.slane %v2635, 4
  %v2638 = vshll.u32 %v2440, 16
  %v2640 = vrot.slane %v2638, 5
  %v2641 = vsel %vm434, %v2636, %v2640
  %v2643 = vshrl.u32 %v2441, 16
  %v2645 = vrot.slane %v2643, 4
  %v2646 = vshll.u32 %v2441, 16
  %v2648 = vrot.slane %v2646, 5
  %v2649 = vor.u32 %v2645, %v2648
  %v2650 = vrot.slane %v2649, 4
  %v2652 = vshll.u32 %v2442, 16
  %v2654 = vrot.slane %v2652, 5
  %v2655 = vsel %vm434, %v2650, %v2654
  %v2656 = vshrl.u32 %v2442, 16
  %v2658 = vrot.slane %v2656, 4
  %v2659 = vor.u32 %v2658, %v2654
  %v2660 = vrot.slane %v2659, 4
  %v2662 = vshll.u32 %v2443, 16
  %v2664 = vrot.slane %v2662, 5
  %v2665 = vsel %vm434, %v2660, %v2664
  %v2667 = vshrl.u32 %v2444, 16
  %v2669 = vrot.slane %v2667, 4
  %v2670 = vshll.u32 %v2444, 16
  %v2672 = vrot.slane %v2670, 5
  %v2673 = vor.u32 %v2669, %v2672
  %v2674 = vrot.slane %v2673, 4
  %v2676 = vshll.u32 %v2445, 16
  %v2678 = vrot.slane %v2676, 5
  %v2679 = vsel %vm434, %v2674, %v2678
  %v2680 = vshrl.u32 %v2445, 16
  %v2682 = vrot.slane %v2680, 4
  %v2683 = vor.u32 %v2682, %v2678
  %v2684 = vrot.slane %v2683, 4
  %v2686 = vshll.u32 %v2446, 16
  %v2688 = vrot.slane %v2686, 5
  %v2689 = vsel %vm434, %v2684, %v2688
  %v2691 = vshrl.u32 %v2447, 16
  %v2693 = vrot.slane %v2691, 4
  %v2694 = vshll.u32 %v2447, 16
  %v2696 = vrot.slane %v2694, 5
  %v2697 = vor.u32 %v2693, %v2696
  %v2698 = vrot.slane %v2697, 4
  %v2700 = vshll.u32 %v2448, 16
  %v2702 = vrot.slane %v2700, 5
  %v2703 = vsel %vm434, %v2698, %v2702
  %v2704 = vshrl.u32 %v2448, 16
  %v2706 = vrot.slane %v2704, 4
  %v2707 = vor.u32 %v2706, %v2702
  %v2708 = vrot.slane %v2707, 4
  %v2710 = vshll.u32 %v2449, 16
  %v2712 = vrot.slane %v2710, 5
  %v2713 = vsel %vm434, %v2708, %v2712
  %v2715 = vshrl.u32 %v2450, 16
  %v2717 = vrot.slane %v2715, 4
  %v2718 = vshll.u32 %v2450, 16
  %v2720 = vrot.slane %v2718, 5
  %v2721 = vor.u32 %v2717, %v2720
  %v2722 = vrot.slane %v2721, 4
  %v2724 = vshll.u32 %v2451, 16
  %v2726 = vrot.slane %v2724, 5
  %v2727 = vsel %vm434, %v2722, %v2726
  %v2728 = vshrl.u32 %v2451, 16
  %v2730 = vrot.slane %v2728, 4
  %v2731 = vor.u32 %v2730, %v2726
  %v2732 = vrot.slane %v2731, 4
  %v2734 = vshll.u32 %v2452, 16
  %v2736 = vrot.slane %v2734, 5
  %v2737 = vsel %vm434, %v2732, %v2736
  %v2739 = vshrl.u32 %v2453, 16
  %v2741 = vrot.slane %v2739, 4
  %v2742 = vshll.u32 %v2453, 16
  %v2744 = vrot.slane %v2742, 5
  %v2745 = vor.u32 %v2741, %v2744
  %v2746 = vrot.slane %v2745, 4
  %v2748 = vshll.u32 %v2454, 16
  %v2750 = vrot.slane %v2748, 5
  %v2751 = vsel %vm434, %v2746, %v2750
  %v2752 = vshrl.u32 %v2454, 16
  %v2754 = vrot.slane %v2752, 4
  %v2755 = vor.u32 %v2754, %v2750
  %v2756 = vrot.slane %v2755, 4
  %v2758 = vshll.u32 %v2455, 16
  %v2760 = vrot.slane %v2758, 5
  %v2761 = vsel %vm434, %v2756, %v2760
  %v2763 = vshrl.u32 %v2456, 16
  %v2765 = vrot.slane %v2763, 4
  %v2766 = vshll.u32 %v2456, 16
  %v2768 = vrot.slane %v2766, 5
  %v2769 = vor.u32 %v2765, %v2768
  %v2770 = vrot.slane %v2769, 4
  %v2772 = vshll.u32 %v2457, 16
  %v2774 = vrot.slane %v2772, 5
  %v2775 = vsel %vm434, %v2770, %v2774
  %v2776 = vshrl.u32 %v2457, 16
  %v2778 = vrot.slane %v2776, 4
  %v2779 = vor.u32 %v2778, %v2774
  %v2780 = vrot.slane %v2779, 4
  %v2782 = vshll.u32 %v2458, 16
  %v2784 = vrot.slane %v2782, 5
  %v2785 = vsel %vm434, %v2780, %v2784
  %v2787 = vshrl.u32 %v2459, 16
  %v2789 = vrot.slane %v2787, 4
  %v2790 = vshll.u32 %v2459, 16
  %v2792 = vrot.slane %v2790, 5
  %v2793 = vor.u32 %v2789, %v2792
  %v2794 = vrot.slane %v2793, 4
  %v2796 = vshll.u32 %v2460, 16
  %v2798 = vrot.slane %v2796, 5
  %v2799 = vsel %vm434, %v2794, %v2798
  %v2800 = vshrl.u32 %v2460, 16
  %v2802 = vrot.slane %v2800, 4
  %v2803 = vor.u32 %v2802, %v2798
  %v2804 = vrot.slane %v2803, 4
  %v2806 = vshll.u32 %v2461, 16
  %v2808 = vrot.slane %v2806, 5
  %v2809 = vsel %vm434, %v2804, %v2808
  %v2811 = vshrl.u32 %v2462, 16
  %v2813 = vrot.slane %v2811, 4
  %v2814 = vshll.u32 %v2462, 16
  %v2816 = vrot.slane %v2814, 5
  %v2817 = vor.u32 %v2813, %v2816
  %v2818 = vrot.slane %v2817, 4
  %v2820 = vshll.u32 %v2463, 16
  %v2822 = vrot.slane %v2820, 5
  %v2823 = vsel %vm434, %v2818, %v2822
  %v2824 = vshrl.u32 %v2463, 16
  %v2826 = vrot.slane %v2824, 4
  %v2827 = vor.u32 %v2826, %v2822
  %v2828 = vrot.slane %v2827, 4
  %v2830 = vshll.u32 %v2464, 16
  %v2832 = vrot.slane %v2830, 5
  %v2833 = vsel %vm434, %v2828, %v2832
  %v2835 = vshrl.u32 %v2465, 16
  %v2837 = vrot.slane %v2835, 4
  %v2838 = vshll.u32 %v2465, 16
  %v2840 = vrot.slane %v2838, 5
  %v2841 = vor.u32 %v2837, %v2840
  %v2842 = vrot.slane %v2841, 4
  %v2844 = vshll.u32 %v2466, 16
  %v2846 = vrot.slane %v2844, 5
  %v2847 = vsel %vm434, %v2842, %v2846
  %v2848 = vshrl.u32 %v2466, 16
  %v2850 = vrot.slane %v2848, 4
  %v2851 = vor.u32 %v2850, %v2846
  %v2852 = vrot.slane %v2851, 4
  %v2854 = vshll.u32 %v2467, 16
  %v2856 = vrot.slane %v2854, 5
  %v2857 = vsel %vm434, %v2852, %v2856
  %v2859 = vshrl.u32 %v2468, 16
  %v2861 = vrot.slane %v2859, 4
  %v2862 = vshll.u32 %v2468, 16
  %v2864 = vrot.slane %v2862, 5
  %v2865 = vor.u32 %v2861, %v2864
  %v2866 = vrot.slane %v2865, 4
  %v2868 = vshll.u32 %v2469, 16
  %v2870 = vrot.slane %v2868, 5
  %v2871 = vsel %vm434, %v2866, %v2870
  %v2872 = vshrl.u32 %v2469, 16
  %v2874 = vrot.slane %v2872, 4
  %v2875 = vor.u32 %v2874, %v2870
  %v2876 = vrot.slane %v2875, 4
  %v2878 = vshll.u32 %v2470, 16
  %v2880 = vrot.slane %v2878, 5
  %v2881 = vsel %vm434, %v2876, %v2880
  %v2883 = vshrl.u32 %v2471, 16
  %v2885 = vrot.slane %v2883, 4
  %v2886 = vshll.u32 %v2471, 16
  %v2888 = vrot.slane %v2886, 5
  %v2889 = vor.u32 %v2885, %v2888
  %v2890 = vrot.slane %v2889, 4
  %v2892 = vshll.u32 %v2472, 16
  %v2894 = vrot.slane %v2892, 5
  %v2895 = vsel %vm434, %v2890, %v2894
  %v2896 = vshrl.u32 %v2472, 16
  %v2898 = vrot.slane %v2896, 4
  %v2899 = vor.u32 %v2898, %v2894
  %v2900 = vrot.slane %v2899, 4
  %v2902 = vshll.u32 %v2473, 16
  %v2904 = vrot.slane %v2902, 5
  %v2905 = vsel %vm434, %v2900, %v2904
  %v2907 = vshrl.u32 %v2474, 16
  %v2909 = vrot.slane %v2907, 4
  %v2910 = vshll.u32 %v2474, 16
  %v2912 = vrot.slane %v2910, 5
  %v2913 = vor.u32 %v2909, %v2912
  %v2914 = vrot.slane %v2913, 4
  %v2916 = vshll.u32 %v2475, 16
  %v2918 = vrot.slane %v2916, 5
  %v2919 = vsel %vm434, %v2914, %v2918
  %v2920 = vshrl.u32 %v2475, 16
  %v2922 = vrot.slane %v2920, 4
  %v2923 = vor.u32 %v2922, %v2918
  %v2924 = vrot.slane %v2923, 4
  %v2926 = vshll.u32 %v2476, 16
  %v2928 = vrot.slane %v2926, 5
  %v2929 = vsel %vm434, %v2924, %v2928
  %v2931 = vshrl.u32 %v2477, 16
  %v2933 = vrot.slane %v2931, 4
  %v2934 = vshll.u32 %v2477, 16
  %v2936 = vrot.slane %v2934, 5
  %v2937 = vor.u32 %v2933, %v2936
  %v2938 = vrot.slane %v2937, 4
  %v2940 = vshll.u32 %v2478, 16
  %v2942 = vrot.slane %v2940, 5
  %v2943 = vsel %vm434, %v2938, %v2942
  %v2944 = vshrl.u32 %v2478, 16
  %v2946 = vrot.slane %v2944, 4
  %v2947 = vor.u32 %v2946, %v2942
  %v2948 = vrot.slane %v2947, 4
  %v2950 = vshll.u32 %v2479, 16
  %v2952 = vrot.slane %v2950, 5
  %v2953 = vsel %vm434, %v2948, %v2952
  %v2955 = vshrl.u32 %v2480, 16
  %v2957 = vrot.slane %v2955, 4
  %v2958 = vshll.u32 %v2480, 16
  %v2960 = vrot.slane %v2958, 5
  %v2961 = vor.u32 %v2957, %v2960
  %v2962 = vrot.slane %v2961, 4
  %v2964 = vshll.u32 %v2481, 16
  %v2966 = vrot.slane %v2964, 5
  %v2967 = vsel %vm434, %v2962, %v2966
  %v2968 = vshrl.u32 %v2481, 16
  %v2970 = vrot.slane %v2968, 4
  %v2971 = vor.u32 %v2970, %v2966
  %v2972 = vrot.slane %v2971, 4
  %v2974 = vshll.u32 %v2482, 16
  %v2976 = vrot.slane %v2974, 5
  %v2977 = vsel %vm434, %v2972, %v2976
  %v2979 = vshrl.u32 %v2483, 16
  %v2981 = vrot.slane %v2979, 4
  %v2982 = vshll.u32 %v2483, 16
  %v2984 = vrot.slane %v2982, 5
  %v2985 = vor.u32 %v2981, %v2984
  %v2986 = vrot.slane %v2985, 4
  %v2988 = vshll.u32 %v2484, 16
  %v2990 = vrot.slane %v2988, 5
  %v2991 = vsel %vm434, %v2986, %v2990
  %v2992 = vshrl.u32 %v2484, 16
  %v2994 = vrot.slane %v2992, 4
  %v2995 = vor.u32 %v2994, %v2990
  %v2996 = vrot.slane %v2995, 4
  %v2998 = vshll.u32 %v2485, 16
  %v3000 = vrot.slane %v2998, 5
  %v3001 = vsel %vm434, %v2996, %v3000
  %v3003 = vshrl.u32 %v2486, 16
  %v3005 = vrot.slane %v3003, 4
  %v3006 = vshll.u32 %v2486, 16
  %v3008 = vrot.slane %v3006, 5
  %v3009 = vor.u32 %v3005, %v3008
  %v3010 = vrot.slane %v3009, 4
  %v3012 = vshll.u32 %v2487, 16
  %v3014 = vrot.slane %v3012, 5
  %v3015 = vsel %vm434, %v3010, %v3014
  %v3016 = vshrl.u32 %v2487, 16
  %v3018 = vrot.slane %v3016, 4
  %v3019 = vor.u32 %v3018, %v3014
  %v3020 = vrot.slane %v3019, 4
  %v3022 = vshll.u32 %v2488, 16
  %v3024 = vrot.slane %v3022, 5
  %v3025 = vsel %vm434, %v3020, %v3024
  %v3027 = vshrl.u32 %v2489, 16
  %v3029 = vrot.slane %v3027, 4
  %v3030 = vshll.u32 %v2489, 16
  %v3032 = vrot.slane %v3030, 5
  %v3033 = vor.u32 %v3029, %v3032
  %v3034 = vrot.slane %v3033, 4
  %v3036 = vshll.u32 %v2490, 16
  %v3038 = vrot.slane %v3036, 5
  %v3039 = vsel %vm434, %v3034, %v3038
  %v3040 = vshrl.u32 %v2490, 16
  %v3042 = vrot.slane %v3040, 4
  %v3043 = vor.u32 %v3042, %v3038
  %v3044 = vrot.slane %v3043, 4
  %v3046 = vshll.u32 %v2491, 16
  %v3048 = vrot.slane %v3046, 5
  %v3049 = vsel %vm434, %v3044, %v3048
  %v3051 = vshrl.u32 %v2492, 16
  %v3053 = vrot.slane %v3051, 4
  %v3054 = vshll.u32 %v2492, 16
  %v3056 = vrot.slane %v3054, 5
  %v3057 = vor.u32 %v3053, %v3056
  %v3058 = vrot.slane %v3057, 4
  %v3060 = vshll.u32 %v2493, 16
  %v3062 = vrot.slane %v3060, 5
  %v3063 = vsel %vm434, %v3058, %v3062
  %v3064 = vshrl.u32 %v2493, 16
  %v3066 = vrot.slane %v3064, 4
  %v3067 = vor.u32 %v3066, %v3062
  %v3068 = vrot.slane %v3067, 4
  %v3070 = vshll.u32 %v2494, 16
  %v3072 = vrot.slane %v3070, 5
  %v3073 = vsel %vm434, %v3068, %v3072
  %v3075 = vshrl.u32 %v2495, 16
  %v3077 = vrot.slane %v3075, 4
  %v3078 = vshll.u32 %v2495, 16
  %v3080 = vrot.slane %v3078, 5
  %v3081 = vor.u32 %v3077, %v3080
  %v3082 = vrot.slane %v3081, 4
  %v3084 = vshll.u32 %v2496, 16
  %v3086 = vrot.slane %v3084, 5
  %v3087 = vsel %vm434, %v3082, %v3086
  %v3088 = vshrl.u32 %v2496, 16
  %v3090 = vrot.slane %v3088, 4
  %v3091 = vor.u32 %v3090, %v3086
  %v3092 = vrot.slane %v3091, 4
  %v3094 = vshll.u32 %v2497, 16
  %v3096 = vrot.slane %v3094, 5
  %v3097 = vsel %vm434, %v3092, %v3096
  %v3099 = vshrl.u32 %v2498, 16
  %v3101 = vrot.slane %v3099, 4
  %v3102 = vshll.u32 %v2498, 16
  %v3104 = vrot.slane %v3102, 5
  %v3105 = vor.u32 %v3101, %v3104
  %v3106 = vrot.slane %v3105, 4
  %v3108 = vshll.u32 %v2499, 16
  %v3110 = vrot.slane %v3108, 5
  %v3111 = vsel %vm434, %v3106, %v3110
  %v3112 = vshrl.u32 %v2499, 16
  %v3114 = vrot.slane %v3112, 4
  %v3115 = vor.u32 %v3114, %v3110
  %v3116 = vrot.slane %v3115, 4
  %v3118 = vshll.u32 %v2500, 16
  %v3120 = vrot.slane %v3118, 5
  %v3121 = vsel %vm434, %v3116, %v3120
  %v3123 = vshrl.u32 %v2501, 16
  %v3125 = vrot.slane %v3123, 4
  %v3126 = vshll.u32 %v2501, 16
  %v3128 = vrot.slane %v3126, 5
  %v3129 = vor.u32 %v3125, %v3128
  %v3130 = vrot.slane %v3129, 4
  %v3132 = vshll.u32 %v2502, 16
  %v3134 = vrot.slane %v3132, 5
  %v3135 = vsel %vm434, %v3130, %v3134
  %v3136 = vshrl.u32 %v2502, 16
  %v3138 = vrot.slane %v3136, 4
  %v3139 = vor.u32 %v3138, %v3134
  %v3140 = vrot.slane %v3139, 4
  %v3142 = vshll.u32 %v2503, 16
  %v3144 = vrot.slane %v3142, 5
  %v3145 = vsel %vm434, %v3140, %v3144
  %v3147 = vshrl.u32 %v2504, 16
  %v3149 = vrot.slane %v3147, 4
  %v3150 = vshll.u32 %v2504, 16
  %v3152 = vrot.slane %v3150, 5
  %v3153 = vor.u32 %v3149, %v3152
  %v3154 = vrot.slane %v3153, 4
  %v3156 = vshll.u32 %v2505, 16
  %v3158 = vrot.slane %v3156, 5
  %v3159 = vsel %vm434, %v3154, %v3158
  %v3160 = vshrl.u32 %v2505, 16
  %v3162 = vrot.slane %v3160, 4
  %v3163 = vor.u32 %v3162, %v3158
  %v3164 = vrot.slane %v3163, 4
  %v3166 = vshll.u32 %v2506, 16
  %v3168 = vrot.slane %v3166, 5
  %v3169 = vsel %vm434, %v3164, %v3168
  %v3171 = vshrl.u32 %v2507, 16
  %v3173 = vrot.slane %v3171, 4
  %v3174 = vshll.u32 %v2507, 16
  %v3176 = vrot.slane %v3174, 5
  %v3177 = vor.u32 %v3173, %v3176
  %v3178 = vrot.slane %v3177, 4
  %v3180 = vshll.u32 %v2508, 16
  %v3182 = vrot.slane %v3180, 5
  %v3183 = vsel %vm434, %v3178, %v3182
  %v3184 = vshrl.u32 %v2508, 16
  %v3186 = vrot.slane %v3184, 4
  %v3187 = vor.u32 %v3186, %v3182
  %v3188 = vrot.slane %v3187, 4
  %v3190 = vshll.u32 %v2509, 16
  %v3192 = vrot.slane %v3190, 5
  %v3193 = vsel %vm434, %v3188, %v3192
  %v3195 = vshrl.u32 %v2510, 16
  %v3197 = vrot.slane %v3195, 4
  %v3198 = vshll.u32 %v2510, 16
  %v3200 = vrot.slane %v3198, 5
  %v3201 = vor.u32 %v3197, %v3200
  %v3202 = vrot.slane %v3201, 4
  %v3204 = vshll.u32 %v2511, 16
  %v3206 = vrot.slane %v3204, 5
  %v3207 = vsel %vm434, %v3202, %v3206
  %v3208 = vshrl.u32 %v2511, 16
  %v3210 = vrot.slane %v3208, 4
  %v3211 = vor.u32 %v3210, %v3206
  %v3212 = vrot.slane %v3211, 4
  %v3214 = vshll.u32 %v2512, 16
  %v3216 = vrot.slane %v3214, 5
  %v3217 = vsel %vm434, %v3212, %v3216
  %v3219 = vshrl.u32 %v2513, 16
  %v3221 = vrot.slane %v3219, 4
  %v3222 = vshll.u32 %v2513, 16
  %v3224 = vrot.slane %v3222, 5
  %v3225 = vor.u32 %v3221, %v3224
  %v3226 = vrot.slane %v3225, 4
  %v3228 = vshll.u32 %v2514, 16
  %v3230 = vrot.slane %v3228, 5
  %v3231 = vsel %vm434, %v3226, %v3230
  %v3232 = vshrl.u32 %v2514, 16
  %v3234 = vrot.slane %v3232, 4
  %v3235 = vor.u32 %v3234, %v3230
  %v3236 = vrot.slane %v3235, 4
  %v3238 = vshll.u32 %v2515, 16
  %v3240 = vrot.slane %v3238, 5
  %v3241 = vsel %vm434, %v3236, %v3240
  %v3243 = vshrl.u32 %v2516, 16
  %v3245 = vrot.slane %v3243, 4
  %v3246 = vshll.u32 %v2516, 16
  %v3248 = vrot.slane %v3246, 5
  %v3249 = vor.u32 %v3245, %v3248
  %v3250 = vrot.slane %v3249, 4
  %v3252 = vshll.u32 %v2517, 16
  %v3254 = vrot.slane %v3252, 5
  %v3255 = vsel %vm434, %v3250, %v3254
  %v3256 = vshrl.u32 %v2517, 16
  %v3258 = vrot.slane %v3256, 4
  %v3259 = vor.u32 %v3258, %v3254
  %v3260 = vrot.slane %v3259, 4
  %v3262 = vshll.u32 %v2518, 16
  %v3264 = vrot.slane %v3262, 5
  %v3265 = vsel %vm434, %v3260, %v3264
  %v3267 = vshrl.u32 %v2519, 16
  %v3269 = vrot.slane %v3267, 4
  %v3270 = vshll.u32 %v2519, 16
  %v3272 = vrot.slane %v3270, 5
  %v3273 = vor.u32 %v3269, %v3272
  %v3274 = vrot.slane %v3273, 4
  %v3276 = vshll.u32 %v2520, 16
  %v3278 = vrot.slane %v3276, 5
  %v3279 = vsel %vm434, %v3274, %v3278
  %v3280 = vshrl.u32 %v2520, 16
  %v3282 = vrot.slane %v3280, 4
  %v3283 = vor.u32 %v3282, %v3278
  %v3284 = vrot.slane %v3283, 4
  %v3286 = vshll.u32 %v2521, 16
  %v3288 = vrot.slane %v3286, 5
  %v3289 = vsel %vm434, %v3284, %v3288
  %v3290 = vunpack.c.l.b16 %v2535
  %v3291 = vunpack.c.l.b16 %v2545
  %v3292 = vunpack.c.l.b16 %v2559
  %v3293 = vunpack.c.l.b16 %v2569
  %v3294 = vunpack.c.l.b16 %v2583
  %v3295 = vunpack.c.l.b16 %v2593
  %v3296 = vunpack.c.l.b16 %v2607
  %v3297 = vunpack.c.l.b16 %v2617
  %v3298 = vunpack.c.l.b16 %v2631
  %v3299 = vunpack.c.l.b16 %v2641
  %v3300 = vunpack.c.l.b16 %v2655
  %v3301 = vunpack.c.l.b16 %v2665
  %v3302 = vunpack.c.l.b16 %v2679
  %v3303 = vunpack.c.l.b16 %v2689
  %v3304 = vunpack.c.l.b16 %v2703
  %v3305 = vunpack.c.l.b16 %v2713
  %v3306 = vunpack.c.l.b16 %v2727
  %v3307 = vunpack.c.l.b16 %v2737
  %v3308 = vunpack.c.l.b16 %v2751
  %v3309 = vunpack.c.l.b16 %v2761
  %v3310 = vunpack.c.l.b16 %v2775
  %v3311 = vunpack.c.l.b16 %v2785
  %v3312 = vunpack.c.l.b16 %v2799
  %v3313 = vunpack.c.l.b16 %v2809
  %v3314 = vunpack.c.l.b16 %v2823
  %v3315 = vunpack.c.l.b16 %v2833
  %v3316 = vunpack.c.l.b16 %v2847
  %v3317 = vunpack.c.l.b16 %v2857
  %v3318 = vunpack.c.l.b16 %v2871
  %v3319 = vunpack.c.l.b16 %v2881
  %v3320 = vunpack.c.l.b16 %v2895
  %v3321 = vunpack.c.l.b16 %v2905
  %v3322 = vunpack.c.l.b16 %v2919
  %v3323 = vunpack.c.l.b16 %v2929
  %v3324 = vunpack.c.l.b16 %v2943
  %v3325 = vunpack.c.l.b16 %v2953
  %v3326 = vunpack.c.l.b16 %v2967
  %v3327 = vunpack.c.l.b16 %v2977
  %v3328 = vunpack.c.l.b16 %v2991
  %v3329 = vunpack.c.l.b16 %v3001
  %v3330 = vunpack.c.l.b16 %v3015
  %v3331 = vunpack.c.l.b16 %v3025
  %v3332 = vunpack.c.l.b16 %v3039
  %v3333 = vunpack.c.l.b16 %v3049
  %v3334 = vunpack.c.l.b16 %v3063
  %v3335 = vunpack.c.l.b16 %v3073
  %v3336 = vunpack.c.l.b16 %v3087
  %v3337 = vunpack.c.l.b16 %v3097
  %v3338 = vunpack.c.l.b16 %v3111
  %v3339 = vunpack.c.l.b16 %v3121
  %v3340 = vunpack.c.l.b16 %v3135
  %v3341 = vunpack.c.l.b16 %v3145
  %v3342 = vunpack.c.l.b16 %v3159
  %v3343 = vunpack.c.l.b16 %v3169
  %v3344 = vunpack.c.l.b16 %v3183
  %v3345 = vunpack.c.l.b16 %v3193
  %v3346 = vunpack.c.l.b16 %v3207
  %v3347 = vunpack.c.l.b16 %v3217
  %v3348 = vunpack.c.l.b16 %v3231
  %v3349 = vunpack.c.l.b16 %v3241
  %v3350 = vunpack.c.l.b16 %v3255
  %v3351 = vunpack.c.l.b16 %v3265
  %v3352 = vunpack.c.l.b16 %v3279
  %v3353 = vunpack.c.l.b16 %v3289
  %v3354 = vpack.c.b16 %v3291, %v3290
  %v3355 = vpack.c.b16 %v3293, %v3292
  %v3356 = vpack.c.b16 %v3295, %v3294
  %v3357 = vpack.c.b16 %v3297, %v3296
  %v3358 = vpack.c.b16 %v3299, %v3298
  %v3359 = vpack.c.b16 %v3301, %v3300
  %v3360 = vpack.c.b16 %v3303, %v3302
  %v3361 = vpack.c.b16 %v3305, %v3304
  %v3362 = vpack.c.b16 %v3307, %v3306
  %v3363 = vpack.c.b16 %v3309, %v3308
  %v3364 = vpack.c.b16 %v3311, %v3310
  %v3365 = vpack.c.b16 %v3313, %v3312
  %v3366 = vpack.c.b16 %v3315, %v3314
  %v3367 = vpack.c.b16 %v3317, %v3316
  %v3368 = vpack.c.b16 %v3319, %v3318
  %v3369 = vpack.c.b16 %v3321, %v3320
  %v3370 = vpack.c.b16 %v3323, %v3322
  %v3371 = vpack.c.b16 %v3325, %v3324
  %v3372 = vpack.c.b16 %v3327, %v3326
  %v3373 = vpack.c.b16 %v3329, %v3328
  %v3374 = vpack.c.b16 %v3331, %v3330
  %v3375 = vpack.c.b16 %v3333, %v3332
  %v3376 = vpack.c.b16 %v3335, %v3334
  %v3377 = vpack.c.b16 %v3337, %v3336
  %v3378 = vpack.c.b16 %v3339, %v3338
  %v3379 = vpack.c.b16 %v3341, %v3340
  %v3380 = vpack.c.b16 %v3343, %v3342
  %v3381 = vpack.c.b16 %v3345, %v3344
  %v3382 = vpack.c.b16 %v3347, %v3346
  %v3383 = vpack.c.b16 %v3349, %v3348
  %v3384 = vpack.c.b16 %v3351, %v3350
  %v3385 = vpack.c.b16 %v3353, %v3352
  %3386 = vrot.lane.b32.xlu0 %v3354, 16
  %v3387 = vpop.permute.xlu0 %3386
  %3388 = vrot.lane.b32.xlu0 %v3355, 16
  %v3389 = vpop.permute.xlu0 %3388
  %3390 = vrot.lane.b32.xlu0 %v3356, 16
  %v3391 = vpop.permute.xlu0 %3390
  %3392 = vrot.lane.b32.xlu0 %v3357, 16
  %v3393 = vpop.permute.xlu0 %3392
  %3394 = vrot.lane.b32.xlu0 %v3358, 16
  %v3395 = vpop.permute.xlu0 %3394
  %3396 = vrot.lane.b32.xlu0 %v3359, 16
  %v3397 = vpop.permute.xlu0 %3396
  %3398 = vrot.lane.b32.xlu0 %v3360, 16
  %v3399 = vpop.permute.xlu0 %3398
  %3400 = vrot.lane.b32.xlu0 %v3361, 16
  %v3401 = vpop.permute.xlu0 %3400
  %3402 = vrot.lane.b32.xlu0 %v3362, 16
  %v3403 = vpop.permute.xlu0 %3402
  %3404 = vrot.lane.b32.xlu0 %v3363, 16
  %v3405 = vpop.permute.xlu0 %3404
  %3406 = vrot.lane.b32.xlu0 %v3364, 16
  %v3407 = vpop.permute.xlu0 %3406
  %3408 = vrot.lane.b32.xlu0 %v3365, 16
  %v3409 = vpop.permute.xlu0 %3408
  %3410 = vrot.lane.b32.xlu0 %v3366, 16
  %v3411 = vpop.permute.xlu0 %3410
  %3412 = vrot.lane.b32.xlu0 %v3367, 16
  %v3413 = vpop.permute.xlu0 %3412
  %3414 = vrot.lane.b32.xlu0 %v3368, 16
  %v3415 = vpop.permute.xlu0 %3414
  %3416 = vrot.lane.b32.xlu0 %v3369, 16
  %v3417 = vpop.permute.xlu0 %3416
  %3418 = vrot.lane.b32.xlu0 %v3370, 16
  %v3419 = vpop.permute.xlu0 %3418
  %3420 = vrot.lane.b32.xlu0 %v3371, 16
  %v3421 = vpop.permute.xlu0 %3420
  %3422 = vrot.lane.b32.xlu0 %v3372, 16
  %v3423 = vpop.permute.xlu0 %3422
  %3424 = vrot.lane.b32.xlu0 %v3373, 16
  %v3425 = vpop.permute.xlu0 %3424
  %3426 = vrot.lane.b32.xlu0 %v3374, 16
  %v3427 = vpop.permute.xlu0 %3426
  %3428 = vrot.lane.b32.xlu0 %v3375, 16
  %v3429 = vpop.permute.xlu0 %3428
  %3430 = vrot.lane.b32.xlu0 %v3376, 16
  %v3431 = vpop.permute.xlu0 %3430
  %3432 = vrot.lane.b32.xlu0 %v3377, 16
  %v3433 = vpop.permute.xlu0 %3432
  %3434 = vrot.lane.b32.xlu0 %v3378, 16
  %v3435 = vpop.permute.xlu0 %3434
  %3436 = vrot.lane.b32.xlu0 %v3379, 16
  %v3437 = vpop.permute.xlu0 %3436
  %3438 = vrot.lane.b32.xlu0 %v3380, 16
  %v3439 = vpop.permute.xlu0 %3438
  %3440 = vrot.lane.b32.xlu0 %v3381, 16
  %v3441 = vpop.permute.xlu0 %3440
  %3442 = vrot.lane.b32.xlu0 %v3382, 16
  %v3443 = vpop.permute.xlu0 %3442
  %3444 = vrot.lane.b32.xlu0 %v3383, 16
  %v3445 = vpop.permute.xlu0 %3444
  %3446 = vrot.lane.b32.xlu0 %v3384, 16
  %v3447 = vpop.permute.xlu0 %3446
  %3448 = vrot.lane.b32.xlu0 %v3385, 16
  %v3449 = vpop.permute.xlu0 %3448
  %vm3482 = vcmask 162944
  %3483 = vst.msk [vmem:[#allocation2] sm:$0xff] %vm3482, %v3387
  %3484 = vst.msk [vmem:[#allocation2 + $0x8] sm:$0xff] %vm3482, %v3389
  %3485 = vst.msk [vmem:[#allocation2 + $0x10] sm:$0xff] %vm3482, %v3391
  %3486 = vst.msk [vmem:[#allocation2 + $0x18] sm:$0xff] %vm3482, %v3393
  %3487 = vst.msk [vmem:[#allocation2 + $0x20] sm:$0xff] %vm3482, %v3395
  %3488 = vst.msk [vmem:[#allocation2 + $0x28] sm:$0xff] %vm3482, %v3397
  %3489 = vst.msk [vmem:[#allocation2 + $0x30] sm:$0xff] %vm3482, %v3399
  %3490 = vst.msk [vmem:[#allocation2 + $0x38] sm:$0xff] %vm3482, %v3401
  %3491 = vst.msk [vmem:[#allocation2 + $0x40] sm:$0xff] %vm3482, %v3403
  %3492 = vst.msk [vmem:[#allocation2 + $0x48] sm:$0xff] %vm3482, %v3405
  %3493 = vst.msk [vmem:[#allocation2 + $0x50] sm:$0xff] %vm3482, %v3407
  %3494 = vst.msk [vmem:[#allocation2 + $0x58] sm:$0xff] %vm3482, %v3409
  %3495 = vst.msk [vmem:[#allocation2 + $0x60] sm:$0xff] %vm3482, %v3411
  %3496 = vst.msk [vmem:[#allocation2 + $0x68] sm:$0xff] %vm3482, %v3413
  %3497 = vst.msk [vmem:[#allocation2 + $0x70] sm:$0xff] %vm3482, %v3415
  %3498 = vst.msk [vmem:[#allocation2 + $0x78] sm:$0xff] %vm3482, %v3417
  %3499 = vst.msk [vmem:[#allocation2 + $0x80] sm:$0xff] %vm3482, %v3419
  %3500 = vst.msk [vmem:[#allocation2 + $0x88] sm:$0xff] %vm3482, %v3421
  %3501 = vst.msk [vmem:[#allocation2 + $0x90] sm:$0xff] %vm3482, %v3423
  %3502 = vst.msk [vmem:[#allocation2 + $0x98] sm:$0xff] %vm3482, %v3425
  %3503 = vst.msk [vmem:[#allocation2 + $0xa0] sm:$0xff] %vm3482, %v3427
  %3504 = vst.msk [vmem:[#allocation2 + $0xa8] sm:$0xff] %vm3482, %v3429
  %3505 = vst.msk [vmem:[#allocation2 + $0xb0] sm:$0xff] %vm3482, %v3431
  %3506 = vst.msk [vmem:[#allocation2 + $0xb8] sm:$0xff] %vm3482, %v3433
  %3507 = vst.msk [vmem:[#allocation2 + $0xc0] sm:$0xff] %vm3482, %v3435
  %3508 = vst.msk [vmem:[#allocation2 + $0xc8] sm:$0xff] %vm3482, %v3437
  %3509 = vst.msk [vmem:[#allocation2 + $0xd0] sm:$0xff] %vm3482, %v3439
  %3510 = vst.msk [vmem:[#allocation2 + $0xd8] sm:$0xff] %vm3482, %v3441
  %3511 = vst.msk [vmem:[#allocation2 + $0xe0] sm:$0xff] %vm3482, %v3443
  %3512 = vst.msk [vmem:[#allocation2 + $0xe8] sm:$0xff] %vm3482, %v3445
  %3513 = vst.msk [vmem:[#allocation2 + $0xf0] sm:$0xff] %vm3482, %v3447
  %3514 = vst.msk [vmem:[#allocation2 + $0xf8] sm:$0xff] %vm3482, %v3449
  %v3515 = vld [vmem:[%s2072] sm:$0xe]
  %v3516 = vld [vmem:[%s2072 + $0x4] sm:$0xf]
  %v3517 = vld [vmem:[%s2072 + $0x8] sm:$0x1]
  %v3518 = vld [vmem:[%s2072 + $0xc] sm:$0xe]
  %v3519 = vld [vmem:[%s2072 + $0x10] sm:$0xf]
  %v3520 = vld [vmem:[%s2072 + $0x14] sm:$0x1]
  %v3521 = vld [vmem:[%s2072 + $0x18] sm:$0xe]
  %v3522 = vld [vmem:[%s2072 + $0x1c] sm:$0xf]
  %v3523 = vld [vmem:[%s2072 + $0x20] sm:$0x1]
  %v3524 = vld [vmem:[%s2072 + $0x24] sm:$0xe]
  %v3525 = vld [vmem:[%s2072 + $0x28] sm:$0xf]
  %v3526 = vld [vmem:[%s2072 + $0x2c] sm:$0x1]
  %v3527 = vld [vmem:[%s2072 + $0x30] sm:$0xe]
  %v3528 = vld [vmem:[%s2072 + $0x34] sm:$0xf]
  %v3529 = vld [vmem:[%s2072 + $0x38] sm:$0x1]
  %v3530 = vld [vmem:[%s2072 + $0x3c] sm:$0xe]
  %v3531 = vld [vmem:[%s2072 + $0x40] sm:$0xf]
  %v3532 = vld [vmem:[%s2072 + $0x44] sm:$0x1]
  %v3533 = vld [vmem:[%s2072 + $0x48] sm:$0xe]
  %v3534 = vld [vmem:[%s2072 + $0x4c] sm:$0xf]
  %v3535 = vld [vmem:[%s2072 + $0x50] sm:$0x1]
  %v3536 = vld [vmem:[%s2072 + $0x54] sm:$0xe]
  %v3537 = vld [vmem:[%s2072 + $0x58] sm:$0xf]
  %v3538 = vld [vmem:[%s2072 + $0x5c] sm:$0x1]
  %v3539 = vld [vmem:[%s2072 + $0x60] sm:$0xe]
  %v3540 = vld [vmem:[%s2072 + $0x64] sm:$0xf]
  %v3541 = vld [vmem:[%s2072 + $0x68] sm:$0x1]
  %v3542 = vld [vmem:[%s2072 + $0x6c] sm:$0xe]
  %v3543 = vld [vmem:[%s2072 + $0x70] sm:$0xf]
  %v3544 = vld [vmem:[%s2072 + $0x74] sm:$0x1]
  %v3545 = vld [vmem:[%s2072 + $0x78] sm:$0xe]
  %v3546 = vld [vmem:[%s2072 + $0x7c] sm:$0xf]
  %v3547 = vld [vmem:[%s2072 + $0x80] sm:$0x1]
  %v3548 = vld [vmem:[%s2072 + $0x84] sm:$0xe]
  %v3549 = vld [vmem:[%s2072 + $0x88] sm:$0xf]
  %v3550 = vld [vmem:[%s2072 + $0x8c] sm:$0x1]
  %v3551 = vld [vmem:[%s2072 + $0x90] sm:$0xe]
  %v3552 = vld [vmem:[%s2072 + $0x94] sm:$0xf]
  %v3553 = vld [vmem:[%s2072 + $0x98] sm:$0x1]
  %v3554 = vld [vmem:[%s2072 + $0x9c] sm:$0xe]
  %v3555 = vld [vmem:[%s2072 + $0xa0] sm:$0xf]
  %v3556 = vld [vmem:[%s2072 + $0xa4] sm:$0x1]
  %v3557 = vld [vmem:[%s2072 + $0xa8] sm:$0xe]
  %v3558 = vld [vmem:[%s2072 + $0xac] sm:$0xf]
  %v3559 = vld [vmem:[%s2072 + $0xb0] sm:$0x1]
  %v3560 = vld [vmem:[%s2072 + $0xb4] sm:$0xe]
  %v3561 = vld [vmem:[%s2072 + $0xb8] sm:$0xf]
  %v3562 = vld [vmem:[%s2072 + $0xbc] sm:$0x1]
  %v3563 = vld [vmem:[%s2072 + $0xd8] sm:$0xe]
  %v3564 = vld [vmem:[%s2072 + $0xdc] sm:$0xf]
  %v3565 = vld [vmem:[%s2072 + $0xe0] sm:$0x1]
  %v3566 = vld [vmem:[%s2072 + $0xe4] sm:$0xe]
  %v3567 = vld [vmem:[%s2072 + $0xe8] sm:$0xf]
  %v3568 = vld [vmem:[%s2072 + $0xec] sm:$0x1]
  %v3569 = vld [vmem:[%s2072 + $0xf0] sm:$0xe]
  %v3570 = vld [vmem:[%s2072 + $0xf4] sm:$0xf]
  %v3571 = vld [vmem:[%s2072 + $0xf8] sm:$0x1]
  %v3572 = vld [vmem:[%s2072 + $0xfc] sm:$0xe]
  %v3573 = vld [vmem:[%s2072 + $0x100] sm:$0xf]
  %v3574 = vld [vmem:[%s2072 + $0x104] sm:$0x1]
  %v3575 = vld [vmem:[%s2072 + $0x108] sm:$0xe]
  %v3576 = vld [vmem:[%s2072 + $0x10c] sm:$0xf]
  %v3577 = vld [vmem:[%s2072 + $0x110] sm:$0x1]
  %v3578 = vld [vmem:[%s2072 + $0x114] sm:$0xe]
  %v3579 = vld [vmem:[%s2072 + $0x118] sm:$0xf]
  %v3580 = vld [vmem:[%s2072 + $0x11c] sm:$0x1]
  %v3581 = vld [vmem:[%s2072 + $0x120] sm:$0xe]
  %v3582 = vld [vmem:[%s2072 + $0x124] sm:$0xf]
  %v3583 = vld [vmem:[%s2072 + $0x128] sm:$0x1]
  %v3584 = vld [vmem:[%s2072 + $0x12c] sm:$0xe]
  %v3585 = vld [vmem:[%s2072 + $0x130] sm:$0xf]
  %v3586 = vld [vmem:[%s2072 + $0x134] sm:$0x1]
  %v3587 = vld [vmem:[%s2072 + $0x138] sm:$0xe]
  %v3588 = vld [vmem:[%s2072 + $0x13c] sm:$0xf]
  %v3589 = vld [vmem:[%s2072 + $0x140] sm:$0x1]
  %v3590 = vld [vmem:[%s2072 + $0x144] sm:$0xe]
  %v3591 = vld [vmem:[%s2072 + $0x148] sm:$0xf]
  %v3592 = vld [vmem:[%s2072 + $0x14c] sm:$0x1]
  %v3593 = vld [vmem:[%s2072 + $0x150] sm:$0xe]
  %v3594 = vld [vmem:[%s2072 + $0x154] sm:$0xf]
  %v3595 = vld [vmem:[%s2072 + $0x158] sm:$0x1]
  %v3596 = vld [vmem:[%s2072 + $0x15c] sm:$0xe]
  %v3597 = vld [vmem:[%s2072 + $0x160] sm:$0xf]
  %v3598 = vld [vmem:[%s2072 + $0x164] sm:$0x1]
  %v3599 = vld [vmem:[%s2072 + $0x168] sm:$0xe]
  %v3600 = vld [vmem:[%s2072 + $0x16c] sm:$0xf]
  %v3601 = vld [vmem:[%s2072 + $0x170] sm:$0x1]
  %v3602 = vld [vmem:[%s2072 + $0x174] sm:$0xe]
  %v3603 = vld [vmem:[%s2072 + $0x178] sm:$0xf]
  %v3604 = vld [vmem:[%s2072 + $0x17c] sm:$0x1]
  %v3605 = vld [vmem:[%s2072 + $0x180] sm:$0xe]
  %v3606 = vld [vmem:[%s2072 + $0x184] sm:$0xf]
  %v3607 = vld [vmem:[%s2072 + $0x188] sm:$0x1]
  %v3608 = vld [vmem:[%s2072 + $0x18c] sm:$0xe]
  %v3609 = vld [vmem:[%s2072 + $0x190] sm:$0xf]
  %v3610 = vld [vmem:[%s2072 + $0x194] sm:$0x1]
  %v3707 = vrot.slane %v3515, 5
  %v3708 = vrot.slane %v3707, 4
  %v3709 = vrot.slane %v3516, 5
  %v3710 = vsel %vm1622, %v3708, %v3709
  %v3711 = vrot.slane %v3709, 4
  %v3712 = vrot.slane %v3517, 5
  %v3713 = vsel %vm1622, %v3711, %v3712
  %v3714 = vrot.slane %v3518, 5
  %v3715 = vrot.slane %v3714, 4
  %v3716 = vrot.slane %v3519, 5
  %v3717 = vsel %vm1622, %v3715, %v3716
  %v3718 = vrot.slane %v3716, 4
  %v3719 = vrot.slane %v3520, 5
  %v3720 = vsel %vm1622, %v3718, %v3719
  %v3721 = vrot.slane %v3521, 5
  %v3722 = vrot.slane %v3721, 4
  %v3723 = vrot.slane %v3522, 5
  %v3724 = vsel %vm1622, %v3722, %v3723
  %v3725 = vrot.slane %v3723, 4
  %v3726 = vrot.slane %v3523, 5
  %v3727 = vsel %vm1622, %v3725, %v3726
  %v3728 = vrot.slane %v3524, 5
  %v3729 = vrot.slane %v3728, 4
  %v3730 = vrot.slane %v3525, 5
  %v3731 = vsel %vm1622, %v3729, %v3730
  %v3732 = vrot.slane %v3730, 4
  %v3733 = vrot.slane %v3526, 5
  %v3734 = vsel %vm1622, %v3732, %v3733
  %v3735 = vrot.slane %v3527, 5
  %v3736 = vrot.slane %v3735, 4
  %v3737 = vrot.slane %v3528, 5
  %v3738 = vsel %vm1622, %v3736, %v3737
  %v3739 = vrot.slane %v3737, 4
  %v3740 = vrot.slane %v3529, 5
  %v3741 = vsel %vm1622, %v3739, %v3740
  %v3742 = vrot.slane %v3530, 5
  %v3743 = vrot.slane %v3742, 4
  %v3744 = vrot.slane %v3531, 5
  %v3745 = vsel %vm1622, %v3743, %v3744
  %v3746 = vrot.slane %v3744, 4
  %v3747 = vrot.slane %v3532, 5
  %v3748 = vsel %vm1622, %v3746, %v3747
  %v3749 = vrot.slane %v3533, 5
  %v3750 = vrot.slane %v3749, 4
  %v3751 = vrot.slane %v3534, 5
  %v3752 = vsel %vm1622, %v3750, %v3751
  %v3753 = vrot.slane %v3751, 4
  %v3754 = vrot.slane %v3535, 5
  %v3755 = vsel %vm1622, %v3753, %v3754
  %v3756 = vrot.slane %v3536, 5
  %v3757 = vrot.slane %v3756, 4
  %v3758 = vrot.slane %v3537, 5
  %v3759 = vsel %vm1622, %v3757, %v3758
  %v3760 = vrot.slane %v3758, 4
  %v3761 = vrot.slane %v3538, 5
  %v3762 = vsel %vm1622, %v3760, %v3761
  %v3763 = vrot.slane %v3539, 5
  %v3764 = vrot.slane %v3763, 4
  %v3765 = vrot.slane %v3540, 5
  %v3766 = vsel %vm1622, %v3764, %v3765
  %v3767 = vrot.slane %v3765, 4
  %v3768 = vrot.slane %v3541, 5
  %v3769 = vsel %vm1622, %v3767, %v3768
  %v3770 = vrot.slane %v3542, 5
  %v3771 = vrot.slane %v3770, 4
  %v3772 = vrot.slane %v3543, 5
  %v3773 = vsel %vm1622, %v3771, %v3772
  %v3774 = vrot.slane %v3772, 4
  %v3775 = vrot.slane %v3544, 5
  %v3776 = vsel %vm1622, %v3774, %v3775
  %v3777 = vrot.slane %v3545, 5
  %v3778 = vrot.slane %v3777, 4
  %v3779 = vrot.slane %v3546, 5
  %v3780 = vsel %vm1622, %v3778, %v3779
  %v3781 = vrot.slane %v3779, 4
  %v3782 = vrot.slane %v3547, 5
  %v3783 = vsel %vm1622, %v3781, %v3782
  %v3784 = vrot.slane %v3548, 5
  %v3785 = vrot.slane %v3784, 4
  %v3786 = vrot.slane %v3549, 5
  %v3787 = vsel %vm1622, %v3785, %v3786
  %v3788 = vrot.slane %v3786, 4
  %v3789 = vrot.slane %v3550, 5
  %v3790 = vsel %vm1622, %v3788, %v3789
  %v3791 = vrot.slane %v3551, 5
  %v3792 = vrot.slane %v3791, 4
  %v3793 = vrot.slane %v3552, 5
  %v3794 = vsel %vm1622, %v3792, %v3793
  %v3795 = vrot.slane %v3793, 4
  %v3796 = vrot.slane %v3553, 5
  %v3797 = vsel %vm1622, %v3795, %v3796
  %v3798 = vrot.slane %v3554, 5
  %v3799 = vrot.slane %v3798, 4
  %v3800 = vrot.slane %v3555, 5
  %v3801 = vsel %vm1622, %v3799, %v3800
  %v3802 = vrot.slane %v3800, 4
  %v3803 = vrot.slane %v3556, 5
  %v3804 = vsel %vm1622, %v3802, %v3803
  %v3805 = vrot.slane %v3557, 5
  %v3806 = vrot.slane %v3805, 4
  %v3807 = vrot.slane %v3558, 5
  %v3808 = vsel %vm1622, %v3806, %v3807
  %v3809 = vrot.slane %v3807, 4
  %v3810 = vrot.slane %v3559, 5
  %v3811 = vsel %vm1622, %v3809, %v3810
  %v3812 = vrot.slane %v3560, 5
  %v3813 = vrot.slane %v3812, 4
  %v3814 = vrot.slane %v3561, 5
  %v3815 = vsel %vm1622, %v3813, %v3814
  %v3816 = vrot.slane %v3814, 4
  %v3817 = vrot.slane %v3562, 5
  %v3818 = vsel %vm1622, %v3816, %v3817
  %v3819 = vrot.slane %v3563, 5
  %v3820 = vrot.slane %v3819, 4
  %v3821 = vrot.slane %v3564, 5
  %v3822 = vsel %vm1622, %v3820, %v3821
  %v3823 = vrot.slane %v3821, 4
  %v3824 = vrot.slane %v3565, 5
  %v3825 = vsel %vm1622, %v3823, %v3824
  %v3826 = vrot.slane %v3566, 5
  %v3827 = vrot.slane %v3826, 4
  %v3828 = vrot.slane %v3567, 5
  %v3829 = vsel %vm1622, %v3827, %v3828
  %v3830 = vrot.slane %v3828, 4
  %v3831 = vrot.slane %v3568, 5
  %v3832 = vsel %vm1622, %v3830, %v3831
  %v3833 = vrot.slane %v3569, 5
  %v3834 = vrot.slane %v3833, 4
  %v3835 = vrot.slane %v3570, 5
  %v3836 = vsel %vm1622, %v3834, %v3835
  %v3837 = vrot.slane %v3835, 4
  %v3838 = vrot.slane %v3571, 5
  %v3839 = vsel %vm1622, %v3837, %v3838
  %v3840 = vrot.slane %v3572, 5
  %v3841 = vrot.slane %v3840, 4
  %v3842 = vrot.slane %v3573, 5
  %v3843 = vsel %vm1622, %v3841, %v3842
  %v3844 = vrot.slane %v3842, 4
  %v3845 = vrot.slane %v3574, 5
  %v3846 = vsel %vm1622, %v3844, %v3845
  %v3847 = vrot.slane %v3575, 5
  %v3848 = vrot.slane %v3847, 4
  %v3849 = vrot.slane %v3576, 5
  %v3850 = vsel %vm1622, %v3848, %v3849
  %v3851 = vrot.slane %v3849, 4
  %v3852 = vrot.slane %v3577, 5
  %v3853 = vsel %vm1622, %v3851, %v3852
  %v3854 = vrot.slane %v3578, 5
  %v3855 = vrot.slane %v3854, 4
  %v3856 = vrot.slane %v3579, 5
  %v3857 = vsel %vm1622, %v3855, %v3856
  %v3858 = vrot.slane %v3856, 4
  %v3859 = vrot.slane %v3580, 5
  %v3860 = vsel %vm1622, %v3858, %v3859
  %v3861 = vrot.slane %v3581, 5
  %v3862 = vrot.slane %v3861, 4
  %v3863 = vrot.slane %v3582, 5
  %v3864 = vsel %vm1622, %v3862, %v3863
  %v3865 = vrot.slane %v3863, 4
  %v3866 = vrot.slane %v3583, 5
  %v3867 = vsel %vm1622, %v3865, %v3866
  %v3868 = vrot.slane %v3584, 5
  %v3869 = vrot.slane %v3868, 4
  %v3870 = vrot.slane %v3585, 5
  %v3871 = vsel %vm1622, %v3869, %v3870
  %v3872 = vrot.slane %v3870, 4
  %v3873 = vrot.slane %v3586, 5
  %v3874 = vsel %vm1622, %v3872, %v3873
  %v3875 = vrot.slane %v3587, 5
  %v3876 = vrot.slane %v3875, 4
  %v3877 = vrot.slane %v3588, 5
  %v3878 = vsel %vm1622, %v3876, %v3877
  %v3879 = vrot.slane %v3877, 4
  %v3880 = vrot.slane %v3589, 5
  %v3881 = vsel %vm1622, %v3879, %v3880
  %v3882 = vrot.slane %v3590, 5
  %v3883 = vrot.slane %v3882, 4
  %v3884 = vrot.slane %v3591, 5
  %v3885 = vsel %vm1622, %v3883, %v3884
  %v3886 = vrot.slane %v3884, 4
  %v3887 = vrot.slane %v3592, 5
  %v3888 = vsel %vm1622, %v3886, %v3887
  %v3889 = vrot.slane %v3593, 5
  %v3890 = vrot.slane %v3889, 4
  %v3891 = vrot.slane %v3594, 5
  %v3892 = vsel %vm1622, %v3890, %v3891
  %v3893 = vrot.slane %v3891, 4
  %v3894 = vrot.slane %v3595, 5
  %v3895 = vsel %vm1622, %v3893, %v3894
  %v3896 = vrot.slane %v3596, 5
  %v3897 = vrot.slane %v3896, 4
  %v3898 = vrot.slane %v3597, 5
  %v3899 = vsel %vm1622, %v3897, %v3898
  %v3900 = vrot.slane %v3898, 4
  %v3901 = vrot.slane %v3598, 5
  %v3902 = vsel %vm1622, %v3900, %v3901
  %v3903 = vrot.slane %v3599, 5
  %v3904 = vrot.slane %v3903, 4
  %v3905 = vrot.slane %v3600, 5
  %v3906 = vsel %vm1622, %v3904, %v3905
  %v3907 = vrot.slane %v3905, 4
  %v3908 = vrot.slane %v3601, 5
  %v3909 = vsel %vm1622, %v3907, %v3908
  %v3910 = vrot.slane %v3602, 5
  %v3911 = vrot.slane %v3910, 4
  %v3912 = vrot.slane %v3603, 5
  %v3913 = vsel %vm1622, %v3911, %v3912
  %v3914 = vrot.slane %v3912, 4
  %v3915 = vrot.slane %v3604, 5
  %v3916 = vsel %vm1622, %v3914, %v3915
  %v3917 = vrot.slane %v3605, 5
  %v3918 = vrot.slane %v3917, 4
  %v3919 = vrot.slane %v3606, 5
  %v3920 = vsel %vm1622, %v3918, %v3919
  %v3921 = vrot.slane %v3919, 4
  %v3922 = vrot.slane %v3607, 5
  %v3923 = vsel %vm1622, %v3921, %v3922
  %v3924 = vrot.slane %v3608, 5
  %v3925 = vrot.slane %v3924, 4
  %v3926 = vrot.slane %v3609, 5
  %v3927 = vsel %vm1622, %v3925, %v3926
  %v3928 = vrot.slane %v3926, 4
  %v3929 = vrot.slane %v3610, 5
  %v3930 = vsel %vm1622, %v3928, %v3929
  %v3931 = vunpack.c.l.b16 %v3710
  %v3932 = vunpack.c.l.b16 %v3713
  %v3933 = vunpack.c.l.b16 %v3717
  %v3934 = vunpack.c.l.b16 %v3720
  %v3935 = vunpack.c.l.b16 %v3724
  %v3936 = vunpack.c.l.b16 %v3727
  %v3937 = vunpack.c.l.b16 %v3731
  %v3938 = vunpack.c.l.b16 %v3734
  %v3939 = vunpack.c.l.b16 %v3738
  %v3940 = vunpack.c.l.b16 %v3741
  %v3941 = vunpack.c.l.b16 %v3745
  %v3942 = vunpack.c.l.b16 %v3748
  %v3943 = vunpack.c.l.b16 %v3752
  %v3944 = vunpack.c.l.b16 %v3755
  %v3945 = vunpack.c.l.b16 %v3759
  %v3946 = vunpack.c.l.b16 %v3762
  %v3947 = vunpack.c.l.b16 %v3766
  %v3948 = vunpack.c.l.b16 %v3769
  %v3949 = vunpack.c.l.b16 %v3773
  %v3950 = vunpack.c.l.b16 %v3776
  %v3951 = vunpack.c.l.b16 %v3780
  %v3952 = vunpack.c.l.b16 %v3783
  %v3953 = vunpack.c.l.b16 %v3787
  %v3954 = vunpack.c.l.b16 %v3790
  %v3955 = vunpack.c.l.b16 %v3794
  %v3956 = vunpack.c.l.b16 %v3797
  %v3957 = vunpack.c.l.b16 %v3801
  %v3958 = vunpack.c.l.b16 %v3804
  %v3959 = vunpack.c.l.b16 %v3808
  %v3960 = vunpack.c.l.b16 %v3811
  %v3961 = vunpack.c.l.b16 %v3815
  %v3962 = vunpack.c.l.b16 %v3818
  %v3963 = vunpack.c.l.b16 %v3822
  %v3964 = vunpack.c.l.b16 %v3825
  %v3965 = vunpack.c.l.b16 %v3829
  %v3966 = vunpack.c.l.b16 %v3832
  %v3967 = vunpack.c.l.b16 %v3836
  %v3968 = vunpack.c.l.b16 %v3839
  %v3969 = vunpack.c.l.b16 %v3843
  %v3970 = vunpack.c.l.b16 %v3846
  %v3971 = vunpack.c.l.b16 %v3850
  %v3972 = vunpack.c.l.b16 %v3853
  %v3973 = vunpack.c.l.b16 %v3857
  %v3974 = vunpack.c.l.b16 %v3860
  %v3975 = vunpack.c.l.b16 %v3864
  %v3976 = vunpack.c.l.b16 %v3867
  %v3977 = vunpack.c.l.b16 %v3871
  %v3978 = vunpack.c.l.b16 %v3874
  %v3979 = vunpack.c.l.b16 %v3878
  %v3980 = vunpack.c.l.b16 %v3881
  %v3981 = vunpack.c.l.b16 %v3885
  %v3982 = vunpack.c.l.b16 %v3888
  %v3983 = vunpack.c.l.b16 %v3892
  %v3984 = vunpack.c.l.b16 %v3895
  %v3985 = vunpack.c.l.b16 %v3899
  %v3986 = vunpack.c.l.b16 %v3902
  %v3987 = vunpack.c.l.b16 %v3906
  %v3988 = vunpack.c.l.b16 %v3909
  %v3989 = vunpack.c.l.b16 %v3913
  %v3990 = vunpack.c.l.b16 %v3916
  %v3991 = vunpack.c.l.b16 %v3920
  %v3992 = vunpack.c.l.b16 %v3923
  %v3993 = vunpack.c.l.b16 %v3927
  %v3994 = vunpack.c.l.b16 %v3930
  %v3995 = vpack.c.b16 %v3932, %v3931
  %v3996 = vpack.c.b16 %v3934, %v3933
  %v3997 = vpack.c.b16 %v3936, %v3935
  %v3998 = vpack.c.b16 %v3938, %v3937
  %v3999 = vpack.c.b16 %v3940, %v3939
  %v4000 = vpack.c.b16 %v3942, %v3941
  %v4001 = vpack.c.b16 %v3944, %v3943
  %v4002 = vpack.c.b16 %v3946, %v3945
  %v4003 = vpack.c.b16 %v3948, %v3947
  %v4004 = vpack.c.b16 %v3950, %v3949
  %v4005 = vpack.c.b16 %v3952, %v3951
  %v4006 = vpack.c.b16 %v3954, %v3953
  %v4007 = vpack.c.b16 %v3956, %v3955
  %v4008 = vpack.c.b16 %v3958, %v3957
  %v4009 = vpack.c.b16 %v3960, %v3959
  %v4010 = vpack.c.b16 %v3962, %v3961
  %v4011 = vpack.c.b16 %v3964, %v3963
  %v4012 = vpack.c.b16 %v3966, %v3965
  %v4013 = vpack.c.b16 %v3968, %v3967
  %v4014 = vpack.c.b16 %v3970, %v3969
  %v4015 = vpack.c.b16 %v3972, %v3971
  %v4016 = vpack.c.b16 %v3974, %v3973
  %v4017 = vpack.c.b16 %v3976, %v3975
  %v4018 = vpack.c.b16 %v3978, %v3977
  %v4019 = vpack.c.b16 %v3980, %v3979
  %v4020 = vpack.c.b16 %v3982, %v3981
  %v4021 = vpack.c.b16 %v3984, %v3983
  %v4022 = vpack.c.b16 %v3986, %v3985
  %v4023 = vpack.c.b16 %v3988, %v3987
  %v4024 = vpack.c.b16 %v3990, %v3989
  %v4025 = vpack.c.b16 %v3992, %v3991
  %v4026 = vpack.c.b16 %v3994, %v3993
  %4027 = vrot.lane.b32.xlu0 %v3995, 20
  %v4028 = vpop.permute.xlu0 %4027
  %4029 = vrot.lane.b32.xlu0 %v3996, 20
  %v4030 = vpop.permute.xlu0 %4029
  %4031 = vrot.lane.b32.xlu0 %v3997, 20
  %v4032 = vpop.permute.xlu0 %4031
  %4033 = vrot.lane.b32.xlu0 %v3998, 20
  %v4034 = vpop.permute.xlu0 %4033
  %4035 = vrot.lane.b32.xlu0 %v3999, 20
  %v4036 = vpop.permute.xlu0 %4035
  %4037 = vrot.lane.b32.xlu0 %v4000, 20
  %v4038 = vpop.permute.xlu0 %4037
  %4039 = vrot.lane.b32.xlu0 %v4001, 20
  %v4040 = vpop.permute.xlu0 %4039
  %4041 = vrot.lane.b32.xlu0 %v4002, 20
  %v4042 = vpop.permute.xlu0 %4041
  %4043 = vrot.lane.b32.xlu0 %v4003, 20
  %v4044 = vpop.permute.xlu0 %4043
  %4045 = vrot.lane.b32.xlu0 %v4004, 20
  %v4046 = vpop.permute.xlu0 %4045
  %4047 = vrot.lane.b32.xlu0 %v4005, 20
  %v4048 = vpop.permute.xlu0 %4047
  %4049 = vrot.lane.b32.xlu0 %v4006, 20
  %v4050 = vpop.permute.xlu0 %4049
  %4051 = vrot.lane.b32.xlu0 %v4007, 20
  %v4052 = vpop.permute.xlu0 %4051
  %4053 = vrot.lane.b32.xlu0 %v4008, 20
  %v4054 = vpop.permute.xlu0 %4053
  %4055 = vrot.lane.b32.xlu0 %v4009, 20
  %v4056 = vpop.permute.xlu0 %4055
  %4057 = vrot.lane.b32.xlu0 %v4010, 20
  %v4058 = vpop.permute.xlu0 %4057
  %4059 = vrot.lane.b32.xlu0 %v4011, 20
  %v4060 = vpop.permute.xlu0 %4059
  %4061 = vrot.lane.b32.xlu0 %v4012, 20
  %v4062 = vpop.permute.xlu0 %4061
  %4063 = vrot.lane.b32.xlu0 %v4013, 20
  %v4064 = vpop.permute.xlu0 %4063
  %4065 = vrot.lane.b32.xlu0 %v4014, 20
  %v4066 = vpop.permute.xlu0 %4065
  %4067 = vrot.lane.b32.xlu0 %v4015, 20
  %v4068 = vpop.permute.xlu0 %4067
  %4069 = vrot.lane.b32.xlu0 %v4016, 20
  %v4070 = vpop.permute.xlu0 %4069
  %4071 = vrot.lane.b32.xlu0 %v4017, 20
  %v4072 = vpop.permute.xlu0 %4071
  %4073 = vrot.lane.b32.xlu0 %v4018, 20
  %v4074 = vpop.permute.xlu0 %4073
  %4075 = vrot.lane.b32.xlu0 %v4019, 20
  %v4076 = vpop.permute.xlu0 %4075
  %4077 = vrot.lane.b32.xlu0 %v4020, 20
  %v4078 = vpop.permute.xlu0 %4077
  %4079 = vrot.lane.b32.xlu0 %v4021, 20
  %v4080 = vpop.permute.xlu0 %4079
  %4081 = vrot.lane.b32.xlu0 %v4022, 20
  %v4082 = vpop.permute.xlu0 %4081
  %4083 = vrot.lane.b32.xlu0 %v4023, 20
  %v4084 = vpop.permute.xlu0 %4083
  %4085 = vrot.lane.b32.xlu0 %v4024, 20
  %v4086 = vpop.permute.xlu0 %4085
  %4087 = vrot.lane.b32.xlu0 %v4025, 20
  %v4088 = vpop.permute.xlu0 %4087
  %4089 = vrot.lane.b32.xlu0 %v4026, 20
  %v4090 = vpop.permute.xlu0 %4089
  %vm4123 = vcmask 195744
  %4124 = vst.msk [vmem:[#allocation2] sm:$0xff] %vm4123, %v4028
  %4125 = vst.msk [vmem:[#allocation2 + $0x8] sm:$0xff] %vm4123, %v4030
  %4126 = vst.msk [vmem:[#allocation2 + $0x10] sm:$0xff] %vm4123, %v4032
  %4127 = vst.msk [vmem:[#allocation2 + $0x18] sm:$0xff] %vm4123, %v4034
  %4128 = vst.msk [vmem:[#allocation2 + $0x20] sm:$0xff] %vm4123, %v4036
  %4129 = vst.msk [vmem:[#allocation2 + $0x28] sm:$0xff] %vm4123, %v4038
  %4130 = vst.msk [vmem:[#allocation2 + $0x30] sm:$0xff] %vm4123, %v4040
  %4131 = vst.msk [vmem:[#allocation2 + $0x38] sm:$0xff] %vm4123, %v4042
  %4132 = vst.msk [vmem:[#allocation2 + $0x40] sm:$0xff] %vm4123, %v4044
  %4133 = vst.msk [vmem:[#allocation2 + $0x48] sm:$0xff] %vm4123, %v4046
  %4134 = vst.msk [vmem:[#allocation2 + $0x50] sm:$0xff] %vm4123, %v4048
  %4135 = vst.msk [vmem:[#allocation2 + $0x58] sm:$0xff] %vm4123, %v4050
  %4136 = vst.msk [vmem:[#allocation2 + $0x60] sm:$0xff] %vm4123, %v4052
  %4137 = vst.msk [vmem:[#allocation2 + $0x68] sm:$0xff] %vm4123, %v4054
  %4138 = vst.msk [vmem:[#allocation2 + $0x70] sm:$0xff] %vm4123, %v4056
  %4139 = vst.msk [vmem:[#allocation2 + $0x78] sm:$0xff] %vm4123, %v4058
  %4140 = vst.msk [vmem:[#allocation2 + $0x80] sm:$0xff] %vm4123, %v4060
  %4141 = vst.msk [vmem:[#allocation2 + $0x88] sm:$0xff] %vm4123, %v4062
  %4142 = vst.msk [vmem:[#allocation2 + $0x90] sm:$0xff] %vm4123, %v4064
  %4143 = vst.msk [vmem:[#allocation2 + $0x98] sm:$0xff] %vm4123, %v4066
  %4144 = vst.msk [vmem:[#allocation2 + $0xa0] sm:$0xff] %vm4123, %v4068
  %4145 = vst.msk [vmem:[#allocation2 + $0xa8] sm:$0xff] %vm4123, %v4070
  %4146 = vst.msk [vmem:[#allocation2 + $0xb0] sm:$0xff] %vm4123, %v4072
  %4147 = vst.msk [vmem:[#allocation2 + $0xb8] sm:$0xff] %vm4123, %v4074
  %4148 = vst.msk [vmem:[#allocation2 + $0xc0] sm:$0xff] %vm4123, %v4076
  %4149 = vst.msk [vmem:[#allocation2 + $0xc8] sm:$0xff] %vm4123, %v4078
  %4150 = vst.msk [vmem:[#allocation2 + $0xd0] sm:$0xff] %vm4123, %v4080
  %4151 = vst.msk [vmem:[#allocation2 + $0xd8] sm:$0xff] %vm4123, %v4082
  %4152 = vst.msk [vmem:[#allocation2 + $0xe0] sm:$0xff] %vm4123, %v4084
  %4153 = vst.msk [vmem:[#allocation2 + $0xe8] sm:$0xff] %vm4123, %v4086
  %4154 = vst.msk [vmem:[#allocation2 + $0xf0] sm:$0xff] %vm4123, %v4088
  %4155 = vst.msk [vmem:[#allocation2 + $0xf8] sm:$0xff] %vm4123, %v4090
  %s4156 = scalar_lea.vmem %s0, 24
  %v4157 = vld [vmem:[%s4156] sm:$0xf]
  %v4158 = vld [vmem:[%s4156 + $0x4] sm:$0xf]
  %v4159 = vld [vmem:[%s4156 + $0xc] sm:$0xf]
  %v4160 = vld [vmem:[%s4156 + $0x10] sm:$0xf]
  %v4161 = vld [vmem:[%s4156 + $0x18] sm:$0xf]
  %v4162 = vld [vmem:[%s4156 + $0x1c] sm:$0xf]
  %v4163 = vld [vmem:[%s4156 + $0x24] sm:$0xf]
  %v4164 = vld [vmem:[%s4156 + $0x28] sm:$0xf]
  %v4165 = vld [vmem:[%s4156 + $0x30] sm:$0xf]
  %v4166 = vld [vmem:[%s4156 + $0x34] sm:$0xf]
  %v4167 = vld [vmem:[%s4156 + $0x3c] sm:$0xf]
  %v4168 = vld [vmem:[%s4156 + $0x40] sm:$0xf]
  %v4169 = vld [vmem:[%s4156 + $0x48] sm:$0xf]
  %v4170 = vld [vmem:[%s4156 + $0x4c] sm:$0xf]
  %v4171 = vld [vmem:[%s4156 + $0x54] sm:$0xf]
  %v4172 = vld [vmem:[%s4156 + $0x58] sm:$0xf]
  %v4173 = vld [vmem:[%s4156 + $0x60] sm:$0xf]
  %v4174 = vld [vmem:[%s4156 + $0x64] sm:$0xf]
  %v4175 = vld [vmem:[%s4156 + $0x6c] sm:$0xf]
  %v4176 = vld [vmem:[%s4156 + $0x70] sm:$0xf]
  %v4177 = vld [vmem:[%s4156 + $0x78] sm:$0xf]
  %v4178 = vld [vmem:[%s4156 + $0x7c] sm:$0xf]
  %v4179 = vld [vmem:[%s4156 + $0x84] sm:$0xf]
  %v4180 = vld [vmem:[%s4156 + $0x88] sm:$0xf]
  %v4181 = vld [vmem:[%s4156 + $0x90] sm:$0xf]
  %v4182 = vld [vmem:[%s4156 + $0x94] sm:$0xf]
  %v4183 = vld [vmem:[%s4156 + $0x9c] sm:$0xf]
  %v4184 = vld [vmem:[%s4156 + $0xa0] sm:$0xf]
  %v4185 = vld [vmem:[%s4156 + $0xa8] sm:$0xf]
  %v4186 = vld [vmem:[%s4156 + $0xac] sm:$0xf]
  %v4187 = vld [vmem:[%s4156 + $0xb4] sm:$0xf]
  %v4188 = vld [vmem:[%s4156 + $0xb8] sm:$0xf]
  %v4189 = vld [vmem:[%s4156 + $0xd8] sm:$0xf]
  %v4190 = vld [vmem:[%s4156 + $0xdc] sm:$0xf]
  %v4191 = vld [vmem:[%s4156 + $0xe4] sm:$0xf]
  %v4192 = vld [vmem:[%s4156 + $0xe8] sm:$0xf]
  %v4193 = vld [vmem:[%s4156 + $0xf0] sm:$0xf]
  %v4194 = vld [vmem:[%s4156 + $0xf4] sm:$0xf]
  %v4195 = vld [vmem:[%s4156 + $0xfc] sm:$0xf]
  %v4196 = vld [vmem:[%s4156 + $0x100] sm:$0xf]
  %v4197 = vld [vmem:[%s4156 + $0x108] sm:$0xf]
  %v4198 = vld [vmem:[%s4156 + $0x10c] sm:$0xf]
  %v4199 = vld [vmem:[%s4156 + $0x114] sm:$0xf]
  %v4200 = vld [vmem:[%s4156 + $0x118] sm:$0xf]
  %v4201 = vld [vmem:[%s4156 + $0x120] sm:$0xf]
  %v4202 = vld [vmem:[%s4156 + $0x124] sm:$0xf]
  %v4203 = vld [vmem:[%s4156 + $0x12c] sm:$0xf]
  %v4204 = vld [vmem:[%s4156 + $0x130] sm:$0xf]
  %v4205 = vld [vmem:[%s4156 + $0x138] sm:$0xf]
  %v4206 = vld [vmem:[%s4156 + $0x13c] sm:$0xf]
  %v4207 = vld [vmem:[%s4156 + $0x144] sm:$0xf]
  %v4208 = vld [vmem:[%s4156 + $0x148] sm:$0xf]
  %v4209 = vld [vmem:[%s4156 + $0x150] sm:$0xf]
  %v4210 = vld [vmem:[%s4156 + $0x154] sm:$0xf]
  %v4211 = vld [vmem:[%s4156 + $0x15c] sm:$0xf]
  %v4212 = vld [vmem:[%s4156 + $0x160] sm:$0xf]
  %v4213 = vld [vmem:[%s4156 + $0x168] sm:$0xf]
  %v4214 = vld [vmem:[%s4156 + $0x16c] sm:$0xf]
  %v4215 = vld [vmem:[%s4156 + $0x174] sm:$0xf]
  %v4216 = vld [vmem:[%s4156 + $0x178] sm:$0xf]
  %v4217 = vld [vmem:[%s4156 + $0x180] sm:$0xf]
  %v4218 = vld [vmem:[%s4156 + $0x184] sm:$0xf]
  %v4219 = vld [vmem:[%s4156 + $0x18c] sm:$0xf]
  %v4220 = vld [vmem:[%s4156 + $0x190] sm:$0xf]
  %v4285 = vunpack.c.l.b16 %v4157
  %v4286 = vunpack.c.l.b16 %v4158
  %v4287 = vunpack.c.l.b16 %v4159
  %v4288 = vunpack.c.l.b16 %v4160
  %v4289 = vunpack.c.l.b16 %v4161
  %v4290 = vunpack.c.l.b16 %v4162
  %v4291 = vunpack.c.l.b16 %v4163
  %v4292 = vunpack.c.l.b16 %v4164
  %v4293 = vunpack.c.l.b16 %v4165
  %v4294 = vunpack.c.l.b16 %v4166
  %v4295 = vunpack.c.l.b16 %v4167
  %v4296 = vunpack.c.l.b16 %v4168
  %v4297 = vunpack.c.l.b16 %v4169
  %v4298 = vunpack.c.l.b16 %v4170
  %v4299 = vunpack.c.l.b16 %v4171
  %v4300 = vunpack.c.l.b16 %v4172
  %v4301 = vunpack.c.l.b16 %v4173
  %v4302 = vunpack.c.l.b16 %v4174
  %v4303 = vunpack.c.l.b16 %v4175
  %v4304 = vunpack.c.l.b16 %v4176
  %v4305 = vunpack.c.l.b16 %v4177
  %v4306 = vunpack.c.l.b16 %v4178
  %v4307 = vunpack.c.l.b16 %v4179
  %v4308 = vunpack.c.l.b16 %v4180
  %v4309 = vunpack.c.l.b16 %v4181
  %v4310 = vunpack.c.l.b16 %v4182
  %v4311 = vunpack.c.l.b16 %v4183
  %v4312 = vunpack.c.l.b16 %v4184
  %v4313 = vunpack.c.l.b16 %v4185
  %v4314 = vunpack.c.l.b16 %v4186
  %v4315 = vunpack.c.l.b16 %v4187
  %v4316 = vunpack.c.l.b16 %v4188
  %v4317 = vunpack.c.l.b16 %v4189
  %v4318 = vunpack.c.l.b16 %v4190
  %v4319 = vunpack.c.l.b16 %v4191
  %v4320 = vunpack.c.l.b16 %v4192
  %v4321 = vunpack.c.l.b16 %v4193
  %v4322 = vunpack.c.l.b16 %v4194
  %v4323 = vunpack.c.l.b16 %v4195
  %v4324 = vunpack.c.l.b16 %v4196
  %v4325 = vunpack.c.l.b16 %v4197
  %v4326 = vunpack.c.l.b16 %v4198
  %v4327 = vunpack.c.l.b16 %v4199
  %v4328 = vunpack.c.l.b16 %v4200
  %v4329 = vunpack.c.l.b16 %v4201
  %v4330 = vunpack.c.l.b16 %v4202
  %v4331 = vunpack.c.l.b16 %v4203
  %v4332 = vunpack.c.l.b16 %v4204
  %v4333 = vunpack.c.l.b16 %v4205
  %v4334 = vunpack.c.l.b16 %v4206
  %v4335 = vunpack.c.l.b16 %v4207
  %v4336 = vunpack.c.l.b16 %v4208
  %v4337 = vunpack.c.l.b16 %v4209
  %v4338 = vunpack.c.l.b16 %v4210
  %v4339 = vunpack.c.l.b16 %v4211
  %v4340 = vunpack.c.l.b16 %v4212
  %v4341 = vunpack.c.l.b16 %v4213
  %v4342 = vunpack.c.l.b16 %v4214
  %v4343 = vunpack.c.l.b16 %v4215
  %v4344 = vunpack.c.l.b16 %v4216
  %v4345 = vunpack.c.l.b16 %v4217
  %v4346 = vunpack.c.l.b16 %v4218
  %v4347 = vunpack.c.l.b16 %v4219
  %v4348 = vunpack.c.l.b16 %v4220
  %v4349 = vpack.c.b16 %v4286, %v4285
  %v4350 = vpack.c.b16 %v4288, %v4287
  %v4351 = vpack.c.b16 %v4290, %v4289
  %v4352 = vpack.c.b16 %v4292, %v4291
  %v4353 = vpack.c.b16 %v4294, %v4293
  %v4354 = vpack.c.b16 %v4296, %v4295
  %v4355 = vpack.c.b16 %v4298, %v4297
  %v4356 = vpack.c.b16 %v4300, %v4299
  %v4357 = vpack.c.b16 %v4302, %v4301
  %v4358 = vpack.c.b16 %v4304, %v4303
  %v4359 = vpack.c.b16 %v4306, %v4305
  %v4360 = vpack.c.b16 %v4308, %v4307
  %v4361 = vpack.c.b16 %v4310, %v4309
  %v4362 = vpack.c.b16 %v4312, %v4311
  %v4363 = vpack.c.b16 %v4314, %v4313
  %v4364 = vpack.c.b16 %v4316, %v4315
  %v4365 = vpack.c.b16 %v4318, %v4317
  %v4366 = vpack.c.b16 %v4320, %v4319
  %v4367 = vpack.c.b16 %v4322, %v4321
  %v4368 = vpack.c.b16 %v4324, %v4323
  %v4369 = vpack.c.b16 %v4326, %v4325
  %v4370 = vpack.c.b16 %v4328, %v4327
  %v4371 = vpack.c.b16 %v4330, %v4329
  %v4372 = vpack.c.b16 %v4332, %v4331
  %v4373 = vpack.c.b16 %v4334, %v4333
  %v4374 = vpack.c.b16 %v4336, %v4335
  %v4375 = vpack.c.b16 %v4338, %v4337
  %v4376 = vpack.c.b16 %v4340, %v4339
  %v4377 = vpack.c.b16 %v4342, %v4341
  %v4378 = vpack.c.b16 %v4344, %v4343
  %v4379 = vpack.c.b16 %v4346, %v4345
  %v4380 = vpack.c.b16 %v4348, %v4347
  %4381 = vrot.lane.b32.xlu0 %v4349, 24
  %v4382 = vpop.permute.xlu0 %4381
  %4383 = vrot.lane.b32.xlu0 %v4350, 24
  %v4384 = vpop.permute.xlu0 %4383
  %4385 = vrot.lane.b32.xlu0 %v4351, 24
  %v4386 = vpop.permute.xlu0 %4385
  %4387 = vrot.lane.b32.xlu0 %v4352, 24
  %v4388 = vpop.permute.xlu0 %4387
  %4389 = vrot.lane.b32.xlu0 %v4353, 24
  %v4390 = vpop.permute.xlu0 %4389
  %4391 = vrot.lane.b32.xlu0 %v4354, 24
  %v4392 = vpop.permute.xlu0 %4391
  %4393 = vrot.lane.b32.xlu0 %v4355, 24
  %v4394 = vpop.permute.xlu0 %4393
  %4395 = vrot.lane.b32.xlu0 %v4356, 24
  %v4396 = vpop.permute.xlu0 %4395
  %4397 = vrot.lane.b32.xlu0 %v4357, 24
  %v4398 = vpop.permute.xlu0 %4397
  %4399 = vrot.lane.b32.xlu0 %v4358, 24
  %v4400 = vpop.permute.xlu0 %4399
  %4401 = vrot.lane.b32.xlu0 %v4359, 24
  %v4402 = vpop.permute.xlu0 %4401
  %4403 = vrot.lane.b32.xlu0 %v4360, 24
  %v4404 = vpop.permute.xlu0 %4403
  %4405 = vrot.lane.b32.xlu0 %v4361, 24
  %v4406 = vpop.permute.xlu0 %4405
  %4407 = vrot.lane.b32.xlu0 %v4362, 24
  %v4408 = vpop.permute.xlu0 %4407
  %4409 = vrot.lane.b32.xlu0 %v4363, 24
  %v4410 = vpop.permute.xlu0 %4409
  %4411 = vrot.lane.b32.xlu0 %v4364, 24
  %v4412 = vpop.permute.xlu0 %4411
  %4413 = vrot.lane.b32.xlu0 %v4365, 24
  %v4414 = vpop.permute.xlu0 %4413
  %4415 = vrot.lane.b32.xlu0 %v4366, 24
  %v4416 = vpop.permute.xlu0 %4415
  %4417 = vrot.lane.b32.xlu0 %v4367, 24
  %v4418 = vpop.permute.xlu0 %4417
  %4419 = vrot.lane.b32.xlu0 %v4368, 24
  %v4420 = vpop.permute.xlu0 %4419
  %4421 = vrot.lane.b32.xlu0 %v4369, 24
  %v4422 = vpop.permute.xlu0 %4421
  %4423 = vrot.lane.b32.xlu0 %v4370, 24
  %v4424 = vpop.permute.xlu0 %4423
  %4425 = vrot.lane.b32.xlu0 %v4371, 24
  %v4426 = vpop.permute.xlu0 %4425
  %4427 = vrot.lane.b32.xlu0 %v4372, 24
  %v4428 = vpop.permute.xlu0 %4427
  %4429 = vrot.lane.b32.xlu0 %v4373, 24
  %v4430 = vpop.permute.xlu0 %4429
  %4431 = vrot.lane.b32.xlu0 %v4374, 24
  %v4432 = vpop.permute.xlu0 %4431
  %4433 = vrot.lane.b32.xlu0 %v4375, 24
  %v4434 = vpop.permute.xlu0 %4433
  %4435 = vrot.lane.b32.xlu0 %v4376, 24
  %v4436 = vpop.permute.xlu0 %4435
  %4437 = vrot.lane.b32.xlu0 %v4377, 24
  %v4438 = vpop.permute.xlu0 %4437
  %4439 = vrot.lane.b32.xlu0 %v4378, 24
  %v4440 = vpop.permute.xlu0 %4439
  %4441 = vrot.lane.b32.xlu0 %v4379, 24
  %v4442 = vpop.permute.xlu0 %4441
  %4443 = vrot.lane.b32.xlu0 %v4380, 24
  %v4444 = vpop.permute.xlu0 %4443
  %vm4477 = vcmask 228544
  %4478 = vst.msk [vmem:[#allocation2] sm:$0xff] %vm4477, %v4382
  %4479 = vst.msk [vmem:[#allocation2 + $0x8] sm:$0xff] %vm4477, %v4384
  %4480 = vst.msk [vmem:[#allocation2 + $0x10] sm:$0xff] %vm4477, %v4386
  %4481 = vst.msk [vmem:[#allocation2 + $0x18] sm:$0xff] %vm4477, %v4388
  %4482 = vst.msk [vmem:[#allocation2 + $0x20] sm:$0xff] %vm4477, %v4390
  %4483 = vst.msk [vmem:[#allocation2 + $0x28] sm:$0xff] %vm4477, %v4392
  %4484 = vst.msk [vmem:[#allocation2 + $0x30] sm:$0xff] %vm4477, %v4394
  %4485 = vst.msk [vmem:[#allocation2 + $0x38] sm:$0xff] %vm4477, %v4396
  %4486 = vst.msk [vmem:[#allocation2 + $0x40] sm:$0xff] %vm4477, %v4398
  %4487 = vst.msk [vmem:[#allocation2 + $0x48] sm:$0xff] %vm4477, %v4400
  %4488 = vst.msk [vmem:[#allocation2 + $0x50] sm:$0xff] %vm4477, %v4402
  %4489 = vst.msk [vmem:[#allocation2 + $0x58] sm:$0xff] %vm4477, %v4404
  %4490 = vst.msk [vmem:[#allocation2 + $0x60] sm:$0xff] %vm4477, %v4406
  %4491 = vst.msk [vmem:[#allocation2 + $0x68] sm:$0xff] %vm4477, %v4408
  %4492 = vst.msk [vmem:[#allocation2 + $0x70] sm:$0xff] %vm4477, %v4410
  %4493 = vst.msk [vmem:[#allocation2 + $0x78] sm:$0xff] %vm4477, %v4412
  %4494 = vst.msk [vmem:[#allocation2 + $0x80] sm:$0xff] %vm4477, %v4414
  %4495 = vst.msk [vmem:[#allocation2 + $0x88] sm:$0xff] %vm4477, %v4416
  %4496 = vst.msk [vmem:[#allocation2 + $0x90] sm:$0xff] %vm4477, %v4418
  %4497 = vst.msk [vmem:[#allocation2 + $0x98] sm:$0xff] %vm4477, %v4420
  %4498 = vst.msk [vmem:[#allocation2 + $0xa0] sm:$0xff] %vm4477, %v4422
  %4499 = vst.msk [vmem:[#allocation2 + $0xa8] sm:$0xff] %vm4477, %v4424
  %4500 = vst.msk [vmem:[#allocation2 + $0xb0] sm:$0xff] %vm4477, %v4426
  %4501 = vst.msk [vmem:[#allocation2 + $0xb8] sm:$0xff] %vm4477, %v4428
  %4502 = vst.msk [vmem:[#allocation2 + $0xc0] sm:$0xff] %vm4477, %v4430
  %4503 = vst.msk [vmem:[#allocation2 + $0xc8] sm:$0xff] %vm4477, %v4432
  %4504 = vst.msk [vmem:[#allocation2 + $0xd0] sm:$0xff] %vm4477, %v4434
  %4505 = vst.msk [vmem:[#allocation2 + $0xd8] sm:$0xff] %vm4477, %v4436
  %4506 = vst.msk [vmem:[#allocation2 + $0xe0] sm:$0xff] %vm4477, %v4438
  %4507 = vst.msk [vmem:[#allocation2 + $0xe8] sm:$0xff] %vm4477, %v4440
  %4508 = vst.msk [vmem:[#allocation2 + $0xf0] sm:$0xff] %vm4477, %v4442
  %4509 = vst.msk [vmem:[#allocation2 + $0xf8] sm:$0xff] %vm4477, %v4444
  %v4510 = vld [vmem:[%s4156] sm:$0xf]
  %v4511 = vld [vmem:[%s4156 + $0x4] sm:$0xf]
  %v4512 = vld [vmem:[%s4156 + $0x8] sm:$0x1]
  %v4513 = vld [vmem:[%s4156 + $0xc] sm:$0xf]
  %v4514 = vld [vmem:[%s4156 + $0x10] sm:$0xf]
  %v4515 = vld [vmem:[%s4156 + $0x14] sm:$0x1]
  %v4516 = vld [vmem:[%s4156 + $0x18] sm:$0xf]
  %v4517 = vld [vmem:[%s4156 + $0x1c] sm:$0xf]
  %v4518 = vld [vmem:[%s4156 + $0x20] sm:$0x1]
  %v4519 = vld [vmem:[%s4156 + $0x24] sm:$0xf]
  %v4520 = vld [vmem:[%s4156 + $0x28] sm:$0xf]
  %v4521 = vld [vmem:[%s4156 + $0x2c] sm:$0x1]
  %v4522 = vld [vmem:[%s4156 + $0x30] sm:$0xf]
  %v4523 = vld [vmem:[%s4156 + $0x34] sm:$0xf]
  %v4524 = vld [vmem:[%s4156 + $0x38] sm:$0x1]
  %v4525 = vld [vmem:[%s4156 + $0x3c] sm:$0xf]
  %v4526 = vld [vmem:[%s4156 + $0x40] sm:$0xf]
  %v4527 = vld [vmem:[%s4156 + $0x44] sm:$0x1]
  %v4528 = vld [vmem:[%s4156 + $0x48] sm:$0xf]
  %v4529 = vld [vmem:[%s4156 + $0x4c] sm:$0xf]
  %v4530 = vld [vmem:[%s4156 + $0x50] sm:$0x1]
  %v4531 = vld [vmem:[%s4156 + $0x54] sm:$0xf]
  %v4532 = vld [vmem:[%s4156 + $0x58] sm:$0xf]
  %v4533 = vld [vmem:[%s4156 + $0x5c] sm:$0x1]
  %v4534 = vld [vmem:[%s4156 + $0x60] sm:$0xf]
  %v4535 = vld [vmem:[%s4156 + $0x64] sm:$0xf]
  %v4536 = vld [vmem:[%s4156 + $0x68] sm:$0x1]
  %v4537 = vld [vmem:[%s4156 + $0x6c] sm:$0xf]
  %v4538 = vld [vmem:[%s4156 + $0x70] sm:$0xf]
  %v4539 = vld [vmem:[%s4156 + $0x74] sm:$0x1]
  %v4540 = vld [vmem:[%s4156 + $0x78] sm:$0xf]
  %v4541 = vld [vmem:[%s4156 + $0x7c] sm:$0xf]
  %v4542 = vld [vmem:[%s4156 + $0x80] sm:$0x1]
  %v4543 = vld [vmem:[%s4156 + $0x84] sm:$0xf]
  %v4544 = vld [vmem:[%s4156 + $0x88] sm:$0xf]
  %v4545 = vld [vmem:[%s4156 + $0x8c] sm:$0x1]
  %v4546 = vld [vmem:[%s4156 + $0x90] sm:$0xf]
  %v4547 = vld [vmem:[%s4156 + $0x94] sm:$0xf]
  %v4548 = vld [vmem:[%s4156 + $0x98] sm:$0x1]
  %v4549 = vld [vmem:[%s4156 + $0x9c] sm:$0xf]
  %v4550 = vld [vmem:[%s4156 + $0xa0] sm:$0xf]
  %v4551 = vld [vmem:[%s4156 + $0xa4] sm:$0x1]
  %v4552 = vld [vmem:[%s4156 + $0xa8] sm:$0xf]
  %v4553 = vld [vmem:[%s4156 + $0xac] sm:$0xf]
  %v4554 = vld [vmem:[%s4156 + $0xb0] sm:$0x1]
  %v4555 = vld [vmem:[%s4156 + $0xb4] sm:$0xf]
  %v4556 = vld [vmem:[%s4156 + $0xb8] sm:$0xf]
  %v4557 = vld [vmem:[%s4156 + $0xbc] sm:$0x1]
  %v4558 = vld [vmem:[%s4156 + $0xd8] sm:$0xf]
  %v4559 = vld [vmem:[%s4156 + $0xdc] sm:$0xf]
  %v4560 = vld [vmem:[%s4156 + $0xe0] sm:$0x1]
  %v4561 = vld [vmem:[%s4156 + $0xe4] sm:$0xf]
  %v4562 = vld [vmem:[%s4156 + $0xe8] sm:$0xf]
  %v4563 = vld [vmem:[%s4156 + $0xec] sm:$0x1]
  %v4564 = vld [vmem:[%s4156 + $0xf0] sm:$0xf]
  %v4565 = vld [vmem:[%s4156 + $0xf4] sm:$0xf]
  %v4566 = vld [vmem:[%s4156 + $0xf8] sm:$0x1]
  %v4567 = vld [vmem:[%s4156 + $0xfc] sm:$0xf]
  %v4568 = vld [vmem:[%s4156 + $0x100] sm:$0xf]
  %v4569 = vld [vmem:[%s4156 + $0x104] sm:$0x1]
  %v4570 = vld [vmem:[%s4156 + $0x108] sm:$0xf]
  %v4571 = vld [vmem:[%s4156 + $0x10c] sm:$0xf]
  %v4572 = vld [vmem:[%s4156 + $0x110] sm:$0x1]
  %v4573 = vld [vmem:[%s4156 + $0x114] sm:$0xf]
  %v4574 = vld [vmem:[%s4156 + $0x118] sm:$0xf]
  %v4575 = vld [vmem:[%s4156 + $0x11c] sm:$0x1]
  %v4576 = vld [vmem:[%s4156 + $0x120] sm:$0xf]
  %v4577 = vld [vmem:[%s4156 + $0x124] sm:$0xf]
  %v4578 = vld [vmem:[%s4156 + $0x128] sm:$0x1]
  %v4579 = vld [vmem:[%s4156 + $0x12c] sm:$0xf]
  %v4580 = vld [vmem:[%s4156 + $0x130] sm:$0xf]
  %v4581 = vld [vmem:[%s4156 + $0x134] sm:$0x1]
  %v4582 = vld [vmem:[%s4156 + $0x138] sm:$0xf]
  %v4583 = vld [vmem:[%s4156 + $0x13c] sm:$0xf]
  %v4584 = vld [vmem:[%s4156 + $0x140] sm:$0x1]
  %v4585 = vld [vmem:[%s4156 + $0x144] sm:$0xf]
  %v4586 = vld [vmem:[%s4156 + $0x148] sm:$0xf]
  %v4587 = vld [vmem:[%s4156 + $0x14c] sm:$0x1]
  %v4588 = vld [vmem:[%s4156 + $0x150] sm:$0xf]
  %v4589 = vld [vmem:[%s4156 + $0x154] sm:$0xf]
  %v4590 = vld [vmem:[%s4156 + $0x158] sm:$0x1]
  %v4591 = vld [vmem:[%s4156 + $0x15c] sm:$0xf]
  %v4592 = vld [vmem:[%s4156 + $0x160] sm:$0xf]
  %v4593 = vld [vmem:[%s4156 + $0x164] sm:$0x1]
  %v4594 = vld [vmem:[%s4156 + $0x168] sm:$0xf]
  %v4595 = vld [vmem:[%s4156 + $0x16c] sm:$0xf]
  %v4596 = vld [vmem:[%s4156 + $0x170] sm:$0x1]
  %v4597 = vld [vmem:[%s4156 + $0x174] sm:$0xf]
  %v4598 = vld [vmem:[%s4156 + $0x178] sm:$0xf]
  %v4599 = vld [vmem:[%s4156 + $0x17c] sm:$0x1]
  %v4600 = vld [vmem:[%s4156 + $0x180] sm:$0xf]
  %v4601 = vld [vmem:[%s4156 + $0x184] sm:$0xf]
  %v4602 = vld [vmem:[%s4156 + $0x188] sm:$0x1]
  %v4603 = vld [vmem:[%s4156 + $0x18c] sm:$0xf]
  %v4604 = vld [vmem:[%s4156 + $0x190] sm:$0xf]
  %v4605 = vld [vmem:[%s4156 + $0x194] sm:$0x1]
  %v4607 = vshrl.u32 %v4510, 16
  %v4609 = vrot.slane %v4607, 4
  %v4610 = vshll.u32 %v4510, 16
  %v4612 = vrot.slane %v4610, 5
  %v4613 = vor.u32 %v4609, %v4612
  %v4614 = vrot.slane %v4613, 4
  %v4616 = vshll.u32 %v4511, 16
  %v4618 = vrot.slane %v4616, 5
  %v4619 = vsel %vm434, %v4614, %v4618
  %v4620 = vshrl.u32 %v4511, 16
  %v4622 = vrot.slane %v4620, 4
  %v4623 = vor.u32 %v4622, %v4618
  %v4624 = vrot.slane %v4623, 4
  %v4626 = vshll.u32 %v4512, 16
  %v4628 = vrot.slane %v4626, 5
  %v4629 = vsel %vm434, %v4624, %v4628
  %v4631 = vshrl.u32 %v4513, 16
  %v4633 = vrot.slane %v4631, 4
  %v4634 = vshll.u32 %v4513, 16
  %v4636 = vrot.slane %v4634, 5
  %v4637 = vor.u32 %v4633, %v4636
  %v4638 = vrot.slane %v4637, 4
  %v4640 = vshll.u32 %v4514, 16
  %v4642 = vrot.slane %v4640, 5
  %v4643 = vsel %vm434, %v4638, %v4642
  %v4644 = vshrl.u32 %v4514, 16
  %v4646 = vrot.slane %v4644, 4
  %v4647 = vor.u32 %v4646, %v4642
  %v4648 = vrot.slane %v4647, 4
  %v4650 = vshll.u32 %v4515, 16
  %v4652 = vrot.slane %v4650, 5
  %v4653 = vsel %vm434, %v4648, %v4652
  %v4655 = vshrl.u32 %v4516, 16
  %v4657 = vrot.slane %v4655, 4
  %v4658 = vshll.u32 %v4516, 16
  %v4660 = vrot.slane %v4658, 5
  %v4661 = vor.u32 %v4657, %v4660
  %v4662 = vrot.slane %v4661, 4
  %v4664 = vshll.u32 %v4517, 16
  %v4666 = vrot.slane %v4664, 5
  %v4667 = vsel %vm434, %v4662, %v4666
  %v4668 = vshrl.u32 %v4517, 16
  %v4670 = vrot.slane %v4668, 4
  %v4671 = vor.u32 %v4670, %v4666
  %v4672 = vrot.slane %v4671, 4
  %v4674 = vshll.u32 %v4518, 16
  %v4676 = vrot.slane %v4674, 5
  %v4677 = vsel %vm434, %v4672, %v4676
  %v4679 = vshrl.u32 %v4519, 16
  %v4681 = vrot.slane %v4679, 4
  %v4682 = vshll.u32 %v4519, 16
  %v4684 = vrot.slane %v4682, 5
  %v4685 = vor.u32 %v4681, %v4684
  %v4686 = vrot.slane %v4685, 4
  %v4688 = vshll.u32 %v4520, 16
  %v4690 = vrot.slane %v4688, 5
  %v4691 = vsel %vm434, %v4686, %v4690
  %v4692 = vshrl.u32 %v4520, 16
  %v4694 = vrot.slane %v4692, 4
  %v4695 = vor.u32 %v4694, %v4690
  %v4696 = vrot.slane %v4695, 4
  %v4698 = vshll.u32 %v4521, 16
  %v4700 = vrot.slane %v4698, 5
  %v4701 = vsel %vm434, %v4696, %v4700
  %v4703 = vshrl.u32 %v4522, 16
  %v4705 = vrot.slane %v4703, 4
  %v4706 = vshll.u32 %v4522, 16
  %v4708 = vrot.slane %v4706, 5
  %v4709 = vor.u32 %v4705, %v4708
  %v4710 = vrot.slane %v4709, 4
  %v4712 = vshll.u32 %v4523, 16
  %v4714 = vrot.slane %v4712, 5
  %v4715 = vsel %vm434, %v4710, %v4714
  %v4716 = vshrl.u32 %v4523, 16
  %v4718 = vrot.slane %v4716, 4
  %v4719 = vor.u32 %v4718, %v4714
  %v4720 = vrot.slane %v4719, 4
  %v4722 = vshll.u32 %v4524, 16
  %v4724 = vrot.slane %v4722, 5
  %v4725 = vsel %vm434, %v4720, %v4724
  %v4727 = vshrl.u32 %v4525, 16
  %v4729 = vrot.slane %v4727, 4
  %v4730 = vshll.u32 %v4525, 16
  %v4732 = vrot.slane %v4730, 5
  %v4733 = vor.u32 %v4729, %v4732
  %v4734 = vrot.slane %v4733, 4
  %v4736 = vshll.u32 %v4526, 16
  %v4738 = vrot.slane %v4736, 5
  %v4739 = vsel %vm434, %v4734, %v4738
  %v4740 = vshrl.u32 %v4526, 16
  %v4742 = vrot.slane %v4740, 4
  %v4743 = vor.u32 %v4742, %v4738
  %v4744 = vrot.slane %v4743, 4
  %v4746 = vshll.u32 %v4527, 16
  %v4748 = vrot.slane %v4746, 5
  %v4749 = vsel %vm434, %v4744, %v4748
  %v4751 = vshrl.u32 %v4528, 16
  %v4753 = vrot.slane %v4751, 4
  %v4754 = vshll.u32 %v4528, 16
  %v4756 = vrot.slane %v4754, 5
  %v4757 = vor.u32 %v4753, %v4756
  %v4758 = vrot.slane %v4757, 4
  %v4760 = vshll.u32 %v4529, 16
  %v4762 = vrot.slane %v4760, 5
  %v4763 = vsel %vm434, %v4758, %v4762
  %v4764 = vshrl.u32 %v4529, 16
  %v4766 = vrot.slane %v4764, 4
  %v4767 = vor.u32 %v4766, %v4762
  %v4768 = vrot.slane %v4767, 4
  %v4770 = vshll.u32 %v4530, 16
  %v4772 = vrot.slane %v4770, 5
  %v4773 = vsel %vm434, %v4768, %v4772
  %v4775 = vshrl.u32 %v4531, 16
  %v4777 = vrot.slane %v4775, 4
  %v4778 = vshll.u32 %v4531, 16
  %v4780 = vrot.slane %v4778, 5
  %v4781 = vor.u32 %v4777, %v4780
  %v4782 = vrot.slane %v4781, 4
  %v4784 = vshll.u32 %v4532, 16
  %v4786 = vrot.slane %v4784, 5
  %v4787 = vsel %vm434, %v4782, %v4786
  %v4788 = vshrl.u32 %v4532, 16
  %v4790 = vrot.slane %v4788, 4
  %v4791 = vor.u32 %v4790, %v4786
  %v4792 = vrot.slane %v4791, 4
  %v4794 = vshll.u32 %v4533, 16
  %v4796 = vrot.slane %v4794, 5
  %v4797 = vsel %vm434, %v4792, %v4796
  %v4799 = vshrl.u32 %v4534, 16
  %v4801 = vrot.slane %v4799, 4
  %v4802 = vshll.u32 %v4534, 16
  %v4804 = vrot.slane %v4802, 5
  %v4805 = vor.u32 %v4801, %v4804
  %v4806 = vrot.slane %v4805, 4
  %v4808 = vshll.u32 %v4535, 16
  %v4810 = vrot.slane %v4808, 5
  %v4811 = vsel %vm434, %v4806, %v4810
  %v4812 = vshrl.u32 %v4535, 16
  %v4814 = vrot.slane %v4812, 4
  %v4815 = vor.u32 %v4814, %v4810
  %v4816 = vrot.slane %v4815, 4
  %v4818 = vshll.u32 %v4536, 16
  %v4820 = vrot.slane %v4818, 5
  %v4821 = vsel %vm434, %v4816, %v4820
  %v4823 = vshrl.u32 %v4537, 16
  %v4825 = vrot.slane %v4823, 4
  %v4826 = vshll.u32 %v4537, 16
  %v4828 = vrot.slane %v4826, 5
  %v4829 = vor.u32 %v4825, %v4828
  %v4830 = vrot.slane %v4829, 4
  %v4832 = vshll.u32 %v4538, 16
  %v4834 = vrot.slane %v4832, 5
  %v4835 = vsel %vm434, %v4830, %v4834
  %v4836 = vshrl.u32 %v4538, 16
  %v4838 = vrot.slane %v4836, 4
  %v4839 = vor.u32 %v4838, %v4834
  %v4840 = vrot.slane %v4839, 4
  %v4842 = vshll.u32 %v4539, 16
  %v4844 = vrot.slane %v4842, 5
  %v4845 = vsel %vm434, %v4840, %v4844
  %v4847 = vshrl.u32 %v4540, 16
  %v4849 = vrot.slane %v4847, 4
  %v4850 = vshll.u32 %v4540, 16
  %v4852 = vrot.slane %v4850, 5
  %v4853 = vor.u32 %v4849, %v4852
  %v4854 = vrot.slane %v4853, 4
  %v4856 = vshll.u32 %v4541, 16
  %v4858 = vrot.slane %v4856, 5
  %v4859 = vsel %vm434, %v4854, %v4858
  %v4860 = vshrl.u32 %v4541, 16
  %v4862 = vrot.slane %v4860, 4
  %v4863 = vor.u32 %v4862, %v4858
  %v4864 = vrot.slane %v4863, 4
  %v4866 = vshll.u32 %v4542, 16
  %v4868 = vrot.slane %v4866, 5
  %v4869 = vsel %vm434, %v4864, %v4868
  %v4871 = vshrl.u32 %v4543, 16
  %v4873 = vrot.slane %v4871, 4
  %v4874 = vshll.u32 %v4543, 16
  %v4876 = vrot.slane %v4874, 5
  %v4877 = vor.u32 %v4873, %v4876
  %v4878 = vrot.slane %v4877, 4
  %v4880 = vshll.u32 %v4544, 16
  %v4882 = vrot.slane %v4880, 5
  %v4883 = vsel %vm434, %v4878, %v4882
  %v4884 = vshrl.u32 %v4544, 16
  %v4886 = vrot.slane %v4884, 4
  %v4887 = vor.u32 %v4886, %v4882
  %v4888 = vrot.slane %v4887, 4
  %v4890 = vshll.u32 %v4545, 16
  %v4892 = vrot.slane %v4890, 5
  %v4893 = vsel %vm434, %v4888, %v4892
  %v4895 = vshrl.u32 %v4546, 16
  %v4897 = vrot.slane %v4895, 4
  %v4898 = vshll.u32 %v4546, 16
  %v4900 = vrot.slane %v4898, 5
  %v4901 = vor.u32 %v4897, %v4900
  %v4902 = vrot.slane %v4901, 4
  %v4904 = vshll.u32 %v4547, 16
  %v4906 = vrot.slane %v4904, 5
  %v4907 = vsel %vm434, %v4902, %v4906
  %v4908 = vshrl.u32 %v4547, 16
  %v4910 = vrot.slane %v4908, 4
  %v4911 = vor.u32 %v4910, %v4906
  %v4912 = vrot.slane %v4911, 4
  %v4914 = vshll.u32 %v4548, 16
  %v4916 = vrot.slane %v4914, 5
  %v4917 = vsel %vm434, %v4912, %v4916
  %v4919 = vshrl.u32 %v4549, 16
  %v4921 = vrot.slane %v4919, 4
  %v4922 = vshll.u32 %v4549, 16
  %v4924 = vrot.slane %v4922, 5
  %v4925 = vor.u32 %v4921, %v4924
  %v4926 = vrot.slane %v4925, 4
  %v4928 = vshll.u32 %v4550, 16
  %v4930 = vrot.slane %v4928, 5
  %v4931 = vsel %vm434, %v4926, %v4930
  %v4932 = vshrl.u32 %v4550, 16
  %v4934 = vrot.slane %v4932, 4
  %v4935 = vor.u32 %v4934, %v4930
  %v4936 = vrot.slane %v4935, 4
  %v4938 = vshll.u32 %v4551, 16
  %v4940 = vrot.slane %v4938, 5
  %v4941 = vsel %vm434, %v4936, %v4940
  %v4943 = vshrl.u32 %v4552, 16
  %v4945 = vrot.slane %v4943, 4
  %v4946 = vshll.u32 %v4552, 16
  %v4948 = vrot.slane %v4946, 5
  %v4949 = vor.u32 %v4945, %v4948
  %v4950 = vrot.slane %v4949, 4
  %v4952 = vshll.u32 %v4553, 16
  %v4954 = vrot.slane %v4952, 5
  %v4955 = vsel %vm434, %v4950, %v4954
  %v4956 = vshrl.u32 %v4553, 16
  %v4958 = vrot.slane %v4956, 4
  %v4959 = vor.u32 %v4958, %v4954
  %v4960 = vrot.slane %v4959, 4
  %v4962 = vshll.u32 %v4554, 16
  %v4964 = vrot.slane %v4962, 5
  %v4965 = vsel %vm434, %v4960, %v4964
  %v4967 = vshrl.u32 %v4555, 16
  %v4969 = vrot.slane %v4967, 4
  %v4970 = vshll.u32 %v4555, 16
  %v4972 = vrot.slane %v4970, 5
  %v4973 = vor.u32 %v4969, %v4972
  %v4974 = vrot.slane %v4973, 4
  %v4976 = vshll.u32 %v4556, 16
  %v4978 = vrot.slane %v4976, 5
  %v4979 = vsel %vm434, %v4974, %v4978
  %v4980 = vshrl.u32 %v4556, 16
  %v4982 = vrot.slane %v4980, 4
  %v4983 = vor.u32 %v4982, %v4978
  %v4984 = vrot.slane %v4983, 4
  %v4986 = vshll.u32 %v4557, 16
  %v4988 = vrot.slane %v4986, 5
  %v4989 = vsel %vm434, %v4984, %v4988
  %v4991 = vshrl.u32 %v4558, 16
  %v4993 = vrot.slane %v4991, 4
  %v4994 = vshll.u32 %v4558, 16
  %v4996 = vrot.slane %v4994, 5
  %v4997 = vor.u32 %v4993, %v4996
  %v4998 = vrot.slane %v4997, 4
  %v5000 = vshll.u32 %v4559, 16
  %v5002 = vrot.slane %v5000, 5
  %v5003 = vsel %vm434, %v4998, %v5002
  %v5004 = vshrl.u32 %v4559, 16
  %v5006 = vrot.slane %v5004, 4
  %v5007 = vor.u32 %v5006, %v5002
  %v5008 = vrot.slane %v5007, 4
  %v5010 = vshll.u32 %v4560, 16
  %v5012 = vrot.slane %v5010, 5
  %v5013 = vsel %vm434, %v5008, %v5012
  %v5015 = vshrl.u32 %v4561, 16
  %v5017 = vrot.slane %v5015, 4
  %v5018 = vshll.u32 %v4561, 16
  %v5020 = vrot.slane %v5018, 5
  %v5021 = vor.u32 %v5017, %v5020
  %v5022 = vrot.slane %v5021, 4
  %v5024 = vshll.u32 %v4562, 16
  %v5026 = vrot.slane %v5024, 5
  %v5027 = vsel %vm434, %v5022, %v5026
  %v5028 = vshrl.u32 %v4562, 16
  %v5030 = vrot.slane %v5028, 4
  %v5031 = vor.u32 %v5030, %v5026
  %v5032 = vrot.slane %v5031, 4
  %v5034 = vshll.u32 %v4563, 16
  %v5036 = vrot.slane %v5034, 5
  %v5037 = vsel %vm434, %v5032, %v5036
  %v5039 = vshrl.u32 %v4564, 16
  %v5041 = vrot.slane %v5039, 4
  %v5042 = vshll.u32 %v4564, 16
  %v5044 = vrot.slane %v5042, 5
  %v5045 = vor.u32 %v5041, %v5044
  %v5046 = vrot.slane %v5045, 4
  %v5048 = vshll.u32 %v4565, 16
  %v5050 = vrot.slane %v5048, 5
  %v5051 = vsel %vm434, %v5046, %v5050
  %v5052 = vshrl.u32 %v4565, 16
  %v5054 = vrot.slane %v5052, 4
  %v5055 = vor.u32 %v5054, %v5050
  %v5056 = vrot.slane %v5055, 4
  %v5058 = vshll.u32 %v4566, 16
  %v5060 = vrot.slane %v5058, 5
  %v5061 = vsel %vm434, %v5056, %v5060
  %v5063 = vshrl.u32 %v4567, 16
  %v5065 = vrot.slane %v5063, 4
  %v5066 = vshll.u32 %v4567, 16
  %v5068 = vrot.slane %v5066, 5
  %v5069 = vor.u32 %v5065, %v5068
  %v5070 = vrot.slane %v5069, 4
  %v5072 = vshll.u32 %v4568, 16
  %v5074 = vrot.slane %v5072, 5
  %v5075 = vsel %vm434, %v5070, %v5074
  %v5076 = vshrl.u32 %v4568, 16
  %v5078 = vrot.slane %v5076, 4
  %v5079 = vor.u32 %v5078, %v5074
  %v5080 = vrot.slane %v5079, 4
  %v5082 = vshll.u32 %v4569, 16
  %v5084 = vrot.slane %v5082, 5
  %v5085 = vsel %vm434, %v5080, %v5084
  %v5087 = vshrl.u32 %v4570, 16
  %v5089 = vrot.slane %v5087, 4
  %v5090 = vshll.u32 %v4570, 16
  %v5092 = vrot.slane %v5090, 5
  %v5093 = vor.u32 %v5089, %v5092
  %v5094 = vrot.slane %v5093, 4
  %v5096 = vshll.u32 %v4571, 16
  %v5098 = vrot.slane %v5096, 5
  %v5099 = vsel %vm434, %v5094, %v5098
  %v5100 = vshrl.u32 %v4571, 16
  %v5102 = vrot.slane %v5100, 4
  %v5103 = vor.u32 %v5102, %v5098
  %v5104 = vrot.slane %v5103, 4
  %v5106 = vshll.u32 %v4572, 16
  %v5108 = vrot.slane %v5106, 5
  %v5109 = vsel %vm434, %v5104, %v5108
  %v5111 = vshrl.u32 %v4573, 16
  %v5113 = vrot.slane %v5111, 4
  %v5114 = vshll.u32 %v4573, 16
  %v5116 = vrot.slane %v5114, 5
  %v5117 = vor.u32 %v5113, %v5116
  %v5118 = vrot.slane %v5117, 4
  %v5120 = vshll.u32 %v4574, 16
  %v5122 = vrot.slane %v5120, 5
  %v5123 = vsel %vm434, %v5118, %v5122
  %v5124 = vshrl.u32 %v4574, 16
  %v5126 = vrot.slane %v5124, 4
  %v5127 = vor.u32 %v5126, %v5122
  %v5128 = vrot.slane %v5127, 4
  %v5130 = vshll.u32 %v4575, 16
  %v5132 = vrot.slane %v5130, 5
  %v5133 = vsel %vm434, %v5128, %v5132
  %v5135 = vshrl.u32 %v4576, 16
  %v5137 = vrot.slane %v5135, 4
  %v5138 = vshll.u32 %v4576, 16
  %v5140 = vrot.slane %v5138, 5
  %v5141 = vor.u32 %v5137, %v5140
  %v5142 = vrot.slane %v5141, 4
  %v5144 = vshll.u32 %v4577, 16
  %v5146 = vrot.slane %v5144, 5
  %v5147 = vsel %vm434, %v5142, %v5146
  %v5148 = vshrl.u32 %v4577, 16
  %v5150 = vrot.slane %v5148, 4
  %v5151 = vor.u32 %v5150, %v5146
  %v5152 = vrot.slane %v5151, 4
  %v5154 = vshll.u32 %v4578, 16
  %v5156 = vrot.slane %v5154, 5
  %v5157 = vsel %vm434, %v5152, %v5156
  %v5159 = vshrl.u32 %v4579, 16
  %v5161 = vrot.slane %v5159, 4
  %v5162 = vshll.u32 %v4579, 16
  %v5164 = vrot.slane %v5162, 5
  %v5165 = vor.u32 %v5161, %v5164
  %v5166 = vrot.slane %v5165, 4
  %v5168 = vshll.u32 %v4580, 16
  %v5170 = vrot.slane %v5168, 5
  %v5171 = vsel %vm434, %v5166, %v5170
  %v5172 = vshrl.u32 %v4580, 16
  %v5174 = vrot.slane %v5172, 4
  %v5175 = vor.u32 %v5174, %v5170
  %v5176 = vrot.slane %v5175, 4
  %v5178 = vshll.u32 %v4581, 16
  %v5180 = vrot.slane %v5178, 5
  %v5181 = vsel %vm434, %v5176, %v5180
  %v5183 = vshrl.u32 %v4582, 16
  %v5185 = vrot.slane %v5183, 4
  %v5186 = vshll.u32 %v4582, 16
  %v5188 = vrot.slane %v5186, 5
  %v5189 = vor.u32 %v5185, %v5188
  %v5190 = vrot.slane %v5189, 4
  %v5192 = vshll.u32 %v4583, 16
  %v5194 = vrot.slane %v5192, 5
  %v5195 = vsel %vm434, %v5190, %v5194
  %v5196 = vshrl.u32 %v4583, 16
  %v5198 = vrot.slane %v5196, 4
  %v5199 = vor.u32 %v5198, %v5194
  %v5200 = vrot.slane %v5199, 4
  %v5202 = vshll.u32 %v4584, 16
  %v5204 = vrot.slane %v5202, 5
  %v5205 = vsel %vm434, %v5200, %v5204
  %v5207 = vshrl.u32 %v4585, 16
  %v5209 = vrot.slane %v5207, 4
  %v5210 = vshll.u32 %v4585, 16
  %v5212 = vrot.slane %v5210, 5
  %v5213 = vor.u32 %v5209, %v5212
  %v5214 = vrot.slane %v5213, 4
  %v5216 = vshll.u32 %v4586, 16
  %v5218 = vrot.slane %v5216, 5
  %v5219 = vsel %vm434, %v5214, %v5218
  %v5220 = vshrl.u32 %v4586, 16
  %v5222 = vrot.slane %v5220, 4
  %v5223 = vor.u32 %v5222, %v5218
  %v5224 = vrot.slane %v5223, 4
  %v5226 = vshll.u32 %v4587, 16
  %v5228 = vrot.slane %v5226, 5
  %v5229 = vsel %vm434, %v5224, %v5228
  %v5231 = vshrl.u32 %v4588, 16
  %v5233 = vrot.slane %v5231, 4
  %v5234 = vshll.u32 %v4588, 16
  %v5236 = vrot.slane %v5234, 5
  %v5237 = vor.u32 %v5233, %v5236
  %v5238 = vrot.slane %v5237, 4
  %v5240 = vshll.u32 %v4589, 16
  %v5242 = vrot.slane %v5240, 5
  %v5243 = vsel %vm434, %v5238, %v5242
  %v5244 = vshrl.u32 %v4589, 16
  %v5246 = vrot.slane %v5244, 4
  %v5247 = vor.u32 %v5246, %v5242
  %v5248 = vrot.slane %v5247, 4
  %v5250 = vshll.u32 %v4590, 16
  %v5252 = vrot.slane %v5250, 5
  %v5253 = vsel %vm434, %v5248, %v5252
  %v5255 = vshrl.u32 %v4591, 16
  %v5257 = vrot.slane %v5255, 4
  %v5258 = vshll.u32 %v4591, 16
  %v5260 = vrot.slane %v5258, 5
  %v5261 = vor.u32 %v5257, %v5260
  %v5262 = vrot.slane %v5261, 4
  %v5264 = vshll.u32 %v4592, 16
  %v5266 = vrot.slane %v5264, 5
  %v5267 = vsel %vm434, %v5262, %v5266
  %v5268 = vshrl.u32 %v4592, 16
  %v5270 = vrot.slane %v5268, 4
  %v5271 = vor.u32 %v5270, %v5266
  %v5272 = vrot.slane %v5271, 4
  %v5274 = vshll.u32 %v4593, 16
  %v5276 = vrot.slane %v5274, 5
  %v5277 = vsel %vm434, %v5272, %v5276
  %v5279 = vshrl.u32 %v4594, 16
  %v5281 = vrot.slane %v5279, 4
  %v5282 = vshll.u32 %v4594, 16
  %v5284 = vrot.slane %v5282, 5
  %v5285 = vor.u32 %v5281, %v5284
  %v5286 = vrot.slane %v5285, 4
  %v5288 = vshll.u32 %v4595, 16
  %v5290 = vrot.slane %v5288, 5
  %v5291 = vsel %vm434, %v5286, %v5290
  %v5292 = vshrl.u32 %v4595, 16
  %v5294 = vrot.slane %v5292, 4
  %v5295 = vor.u32 %v5294, %v5290
  %v5296 = vrot.slane %v5295, 4
  %v5298 = vshll.u32 %v4596, 16
  %v5300 = vrot.slane %v5298, 5
  %v5301 = vsel %vm434, %v5296, %v5300
  %v5303 = vshrl.u32 %v4597, 16
  %v5305 = vrot.slane %v5303, 4
  %v5306 = vshll.u32 %v4597, 16
  %v5308 = vrot.slane %v5306, 5
  %v5309 = vor.u32 %v5305, %v5308
  %v5310 = vrot.slane %v5309, 4
  %v5312 = vshll.u32 %v4598, 16
  %v5314 = vrot.slane %v5312, 5
  %v5315 = vsel %vm434, %v5310, %v5314
  %v5316 = vshrl.u32 %v4598, 16
  %v5318 = vrot.slane %v5316, 4
  %v5319 = vor.u32 %v5318, %v5314
  %v5320 = vrot.slane %v5319, 4
  %v5322 = vshll.u32 %v4599, 16
  %v5324 = vrot.slane %v5322, 5
  %v5325 = vsel %vm434, %v5320, %v5324
  %v5327 = vshrl.u32 %v4600, 16
  %v5329 = vrot.slane %v5327, 4
  %v5330 = vshll.u32 %v4600, 16
  %v5332 = vrot.slane %v5330, 5
  %v5333 = vor.u32 %v5329, %v5332
  %v5334 = vrot.slane %v5333, 4
  %v5336 = vshll.u32 %v4601, 16
  %v5338 = vrot.slane %v5336, 5
  %v5339 = vsel %vm434, %v5334, %v5338
  %v5340 = vshrl.u32 %v4601, 16
  %v5342 = vrot.slane %v5340, 4
  %v5343 = vor.u32 %v5342, %v5338
  %v5344 = vrot.slane %v5343, 4
  %v5346 = vshll.u32 %v4602, 16
  %v5348 = vrot.slane %v5346, 5
  %v5349 = vsel %vm434, %v5344, %v5348
  %v5351 = vshrl.u32 %v4603, 16
  %v5353 = vrot.slane %v5351, 4
  %v5354 = vshll.u32 %v4603, 16
  %v5356 = vrot.slane %v5354, 5
  %v5357 = vor.u32 %v5353, %v5356
  %v5358 = vrot.slane %v5357, 4
  %v5360 = vshll.u32 %v4604, 16
  %v5362 = vrot.slane %v5360, 5
  %v5363 = vsel %vm434, %v5358, %v5362
  %v5364 = vshrl.u32 %v4604, 16
  %v5366 = vrot.slane %v5364, 4
  %v5367 = vor.u32 %v5366, %v5362
  %v5368 = vrot.slane %v5367, 4
  %v5370 = vshll.u32 %v4605, 16
  %v5372 = vrot.slane %v5370, 5
  %v5373 = vsel %vm434, %v5368, %v5372
  %v5374 = vunpack.c.l.b16 %v4619
  %v5375 = vunpack.c.l.b16 %v4629
  %v5376 = vunpack.c.l.b16 %v4643
  %v5377 = vunpack.c.l.b16 %v4653
  %v5378 = vunpack.c.l.b16 %v4667
  %v5379 = vunpack.c.l.b16 %v4677
  %v5380 = vunpack.c.l.b16 %v4691
  %v5381 = vunpack.c.l.b16 %v4701
  %v5382 = vunpack.c.l.b16 %v4715
  %v5383 = vunpack.c.l.b16 %v4725
  %v5384 = vunpack.c.l.b16 %v4739
  %v5385 = vunpack.c.l.b16 %v4749
  %v5386 = vunpack.c.l.b16 %v4763
  %v5387 = vunpack.c.l.b16 %v4773
  %v5388 = vunpack.c.l.b16 %v4787
  %v5389 = vunpack.c.l.b16 %v4797
  %v5390 = vunpack.c.l.b16 %v4811
  %v5391 = vunpack.c.l.b16 %v4821
  %v5392 = vunpack.c.l.b16 %v4835
  %v5393 = vunpack.c.l.b16 %v4845
  %v5394 = vunpack.c.l.b16 %v4859
  %v5395 = vunpack.c.l.b16 %v4869
  %v5396 = vunpack.c.l.b16 %v4883
  %v5397 = vunpack.c.l.b16 %v4893
  %v5398 = vunpack.c.l.b16 %v4907
  %v5399 = vunpack.c.l.b16 %v4917
  %v5400 = vunpack.c.l.b16 %v4931
  %v5401 = vunpack.c.l.b16 %v4941
  %v5402 = vunpack.c.l.b16 %v4955
  %v5403 = vunpack.c.l.b16 %v4965
  %v5404 = vunpack.c.l.b16 %v4979
  %v5405 = vunpack.c.l.b16 %v4989
  %v5406 = vunpack.c.l.b16 %v5003
  %v5407 = vunpack.c.l.b16 %v5013
  %v5408 = vunpack.c.l.b16 %v5027
  %v5409 = vunpack.c.l.b16 %v5037
  %v5410 = vunpack.c.l.b16 %v5051
  %v5411 = vunpack.c.l.b16 %v5061
  %v5412 = vunpack.c.l.b16 %v5075
  %v5413 = vunpack.c.l.b16 %v5085
  %v5414 = vunpack.c.l.b16 %v5099
  %v5415 = vunpack.c.l.b16 %v5109
  %v5416 = vunpack.c.l.b16 %v5123
  %v5417 = vunpack.c.l.b16 %v5133
  %v5418 = vunpack.c.l.b16 %v5147
  %v5419 = vunpack.c.l.b16 %v5157
  %v5420 = vunpack.c.l.b16 %v5171
  %v5421 = vunpack.c.l.b16 %v5181
  %v5422 = vunpack.c.l.b16 %v5195
  %v5423 = vunpack.c.l.b16 %v5205
  %v5424 = vunpack.c.l.b16 %v5219
  %v5425 = vunpack.c.l.b16 %v5229
  %v5426 = vunpack.c.l.b16 %v5243
  %v5427 = vunpack.c.l.b16 %v5253
  %v5428 = vunpack.c.l.b16 %v5267
  %v5429 = vunpack.c.l.b16 %v5277
  %v5430 = vunpack.c.l.b16 %v5291
  %v5431 = vunpack.c.l.b16 %v5301
  %v5432 = vunpack.c.l.b16 %v5315
  %v5433 = vunpack.c.l.b16 %v5325
  %v5434 = vunpack.c.l.b16 %v5339
  %v5435 = vunpack.c.l.b16 %v5349
  %v5436 = vunpack.c.l.b16 %v5363
  %v5437 = vunpack.c.l.b16 %v5373
  %v5438 = vpack.c.b16 %v5375, %v5374
  %v5439 = vpack.c.b16 %v5377, %v5376
  %v5440 = vpack.c.b16 %v5379, %v5378
  %v5441 = vpack.c.b16 %v5381, %v5380
  %v5442 = vpack.c.b16 %v5383, %v5382
  %v5443 = vpack.c.b16 %v5385, %v5384
  %v5444 = vpack.c.b16 %v5387, %v5386
  %v5445 = vpack.c.b16 %v5389, %v5388
  %v5446 = vpack.c.b16 %v5391, %v5390
  %v5447 = vpack.c.b16 %v5393, %v5392
  %v5448 = vpack.c.b16 %v5395, %v5394
  %v5449 = vpack.c.b16 %v5397, %v5396
  %v5450 = vpack.c.b16 %v5399, %v5398
  %v5451 = vpack.c.b16 %v5401, %v5400
  %v5452 = vpack.c.b16 %v5403, %v5402
  %v5453 = vpack.c.b16 %v5405, %v5404
  %v5454 = vpack.c.b16 %v5407, %v5406
  %v5455 = vpack.c.b16 %v5409, %v5408
  %v5456 = vpack.c.b16 %v5411, %v5410
  %v5457 = vpack.c.b16 %v5413, %v5412
  %v5458 = vpack.c.b16 %v5415, %v5414
  %v5459 = vpack.c.b16 %v5417, %v5416
  %v5460 = vpack.c.b16 %v5419, %v5418
  %v5461 = vpack.c.b16 %v5421, %v5420
  %v5462 = vpack.c.b16 %v5423, %v5422
  %v5463 = vpack.c.b16 %v5425, %v5424
  %v5464 = vpack.c.b16 %v5427, %v5426
  %v5465 = vpack.c.b16 %v5429, %v5428
  %v5466 = vpack.c.b16 %v5431, %v5430
  %v5467 = vpack.c.b16 %v5433, %v5432
  %v5468 = vpack.c.b16 %v5435, %v5434
  %v5469 = vpack.c.b16 %v5437, %v5436
  %5470 = vrot.lane.b32.xlu0 %v5438, 28
  %v5471 = vpop.permute.xlu0 %5470
  %5472 = vrot.lane.b32.xlu0 %v5439, 28
  %v5473 = vpop.permute.xlu0 %5472
  %5474 = vrot.lane.b32.xlu0 %v5440, 28
  %v5475 = vpop.permute.xlu0 %5474
  %5476 = vrot.lane.b32.xlu0 %v5441, 28
  %v5477 = vpop.permute.xlu0 %5476
  %5478 = vrot.lane.b32.xlu0 %v5442, 28
  %v5479 = vpop.permute.xlu0 %5478
  %5480 = vrot.lane.b32.xlu0 %v5443, 28
  %v5481 = vpop.permute.xlu0 %5480
  %5482 = vrot.lane.b32.xlu0 %v5444, 28
  %v5483 = vpop.permute.xlu0 %5482
  %5484 = vrot.lane.b32.xlu0 %v5445, 28
  %v5485 = vpop.permute.xlu0 %5484
  %5486 = vrot.lane.b32.xlu0 %v5446, 28
  %v5487 = vpop.permute.xlu0 %5486
  %5488 = vrot.lane.b32.xlu0 %v5447, 28
  %v5489 = vpop.permute.xlu0 %5488
  %5490 = vrot.lane.b32.xlu0 %v5448, 28
  %v5491 = vpop.permute.xlu0 %5490
  %5492 = vrot.lane.b32.xlu0 %v5449, 28
  %v5493 = vpop.permute.xlu0 %5492
  %5494 = vrot.lane.b32.xlu0 %v5450, 28
  %v5495 = vpop.permute.xlu0 %5494
  %5496 = vrot.lane.b32.xlu0 %v5451, 28
  %v5497 = vpop.permute.xlu0 %5496
  %5498 = vrot.lane.b32.xlu0 %v5452, 28
  %v5499 = vpop.permute.xlu0 %5498
  %5500 = vrot.lane.b32.xlu0 %v5453, 28
  %v5501 = vpop.permute.xlu0 %5500
  %5502 = vrot.lane.b32.xlu0 %v5454, 28
  %v5503 = vpop.permute.xlu0 %5502
  %5504 = vrot.lane.b32.xlu0 %v5455, 28
  %v5505 = vpop.permute.xlu0 %5504
  %5506 = vrot.lane.b32.xlu0 %v5456, 28
  %v5507 = vpop.permute.xlu0 %5506
  %5508 = vrot.lane.b32.xlu0 %v5457, 28
  %v5509 = vpop.permute.xlu0 %5508
  %5510 = vrot.lane.b32.xlu0 %v5458, 28
  %v5511 = vpop.permute.xlu0 %5510
  %5512 = vrot.lane.b32.xlu0 %v5459, 28
  %v5513 = vpop.permute.xlu0 %5512
  %5514 = vrot.lane.b32.xlu0 %v5460, 28
  %v5515 = vpop.permute.xlu0 %5514
  %5516 = vrot.lane.b32.xlu0 %v5461, 28
  %v5517 = vpop.permute.xlu0 %5516
  %5518 = vrot.lane.b32.xlu0 %v5462, 28
  %v5519 = vpop.permute.xlu0 %5518
  %5520 = vrot.lane.b32.xlu0 %v5463, 28
  %v5521 = vpop.permute.xlu0 %5520
  %5522 = vrot.lane.b32.xlu0 %v5464, 28
  %v5523 = vpop.permute.xlu0 %5522
  %5524 = vrot.lane.b32.xlu0 %v5465, 28
  %v5525 = vpop.permute.xlu0 %5524
  %5526 = vrot.lane.b32.xlu0 %v5466, 28
  %v5527 = vpop.permute.xlu0 %5526
  %5528 = vrot.lane.b32.xlu0 %v5467, 28
  %v5529 = vpop.permute.xlu0 %5528
  %5530 = vrot.lane.b32.xlu0 %v5468, 28
  %v5531 = vpop.permute.xlu0 %5530
  %5532 = vrot.lane.b32.xlu0 %v5469, 28
  %v5533 = vpop.permute.xlu0 %5532
  %vm5566 = vcmask 261344
  %5567 = vst.msk [vmem:[#allocation2] sm:$0xff] %vm5566, %v5471
  %5568 = vst.msk [vmem:[#allocation2 + $0x8] sm:$0xff] %vm5566, %v5473
  %5569 = vst.msk [vmem:[#allocation2 + $0x10] sm:$0xff] %vm5566, %v5475
  %5570 = vst.msk [vmem:[#allocation2 + $0x18] sm:$0xff] %vm5566, %v5477
  %5571 = vst.msk [vmem:[#allocation2 + $0x20] sm:$0xff] %vm5566, %v5479
  %5572 = vst.msk [vmem:[#allocation2 + $0x28] sm:$0xff] %vm5566, %v5481
  %5573 = vst.msk [vmem:[#allocation2 + $0x30] sm:$0xff] %vm5566, %v5483
  %5574 = vst.msk [vmem:[#allocation2 + $0x38] sm:$0xff] %vm5566, %v5485
  %5575 = vst.msk [vmem:[#allocation2 + $0x40] sm:$0xff] %vm5566, %v5487
  %5576 = vst.msk [vmem:[#allocation2 + $0x48] sm:$0xff] %vm5566, %v5489
  %5577 = vst.msk [vmem:[#allocation2 + $0x50] sm:$0xff] %vm5566, %v5491
  %5578 = vst.msk [vmem:[#allocation2 + $0x58] sm:$0xff] %vm5566, %v5493
  %5579 = vst.msk [vmem:[#allocation2 + $0x60] sm:$0xff] %vm5566, %v5495
  %5580 = vst.msk [vmem:[#allocation2 + $0x68] sm:$0xff] %vm5566, %v5497
  %5581 = vst.msk [vmem:[#allocation2 + $0x70] sm:$0xff] %vm5566, %v5499
  %5582 = vst.msk [vmem:[#allocation2 + $0x78] sm:$0xff] %vm5566, %v5501
  %5583 = vst.msk [vmem:[#allocation2 + $0x80] sm:$0xff] %vm5566, %v5503
  %5584 = vst.msk [vmem:[#allocation2 + $0x88] sm:$0xff] %vm5566, %v5505
  %5585 = vst.msk [vmem:[#allocation2 + $0x90] sm:$0xff] %vm5566, %v5507
  %5586 = vst.msk [vmem:[#allocation2 + $0x98] sm:$0xff] %vm5566, %v5509
  %5587 = vst.msk [vmem:[#allocation2 + $0xa0] sm:$0xff] %vm5566, %v5511
  %5588 = vst.msk [vmem:[#allocation2 + $0xa8] sm:$0xff] %vm5566, %v5513
  %5589 = vst.msk [vmem:[#allocation2 + $0xb0] sm:$0xff] %vm5566, %v5515
  %5590 = vst.msk [vmem:[#allocation2 + $0xb8] sm:$0xff] %vm5566, %v5517
  %5591 = vst.msk [vmem:[#allocation2 + $0xc0] sm:$0xff] %vm5566, %v5519
  %5592 = vst.msk [vmem:[#allocation2 + $0xc8] sm:$0xff] %vm5566, %v5521
  %5593 = vst.msk [vmem:[#allocation2 + $0xd0] sm:$0xff] %vm5566, %v5523
  %5594 = vst.msk [vmem:[#allocation2 + $0xd8] sm:$0xff] %vm5566, %v5525
  %5595 = vst.msk [vmem:[#allocation2 + $0xe0] sm:$0xff] %vm5566, %v5527
  %5596 = vst.msk [vmem:[#allocation2 + $0xe8] sm:$0xff] %vm5566, %v5529
  %5597 = vst.msk [vmem:[#allocation2 + $0xf0] sm:$0xff] %vm5566, %v5531
  %5598 = vst.msk [vmem:[#allocation2 + $0xf8] sm:$0xff] %vm5566, %v5533
  %v5599 = vld [vmem:[%s4156] sm:$0xe]
  %v5600 = vld [vmem:[%s4156 + $0x4] sm:$0xf]
  %v5601 = vld [vmem:[%s4156 + $0x8] sm:$0x1]
  %v5602 = vld [vmem:[%s4156 + $0xc] sm:$0xe]
  %v5603 = vld [vmem:[%s4156 + $0x10] sm:$0xf]
  %v5604 = vld [vmem:[%s4156 + $0x14] sm:$0x1]
  %v5605 = vld [vmem:[%s4156 + $0x18] sm:$0xe]
  %v5606 = vld [vmem:[%s4156 + $0x1c] sm:$0xf]
  %v5607 = vld [vmem:[%s4156 + $0x20] sm:$0x1]
  %v5608 = vld [vmem:[%s4156 + $0x24] sm:$0xe]
  %v5609 = vld [vmem:[%s4156 + $0x28] sm:$0xf]
  %v5610 = vld [vmem:[%s4156 + $0x2c] sm:$0x1]
  %v5611 = vld [vmem:[%s4156 + $0x30] sm:$0xe]
  %v5612 = vld [vmem:[%s4156 + $0x34] sm:$0xf]
  %v5613 = vld [vmem:[%s4156 + $0x38] sm:$0x1]
  %v5614 = vld [vmem:[%s4156 + $0x3c] sm:$0xe]
  %v5615 = vld [vmem:[%s4156 + $0x40] sm:$0xf]
  %v5616 = vld [vmem:[%s4156 + $0x44] sm:$0x1]
  %v5617 = vld [vmem:[%s4156 + $0x48] sm:$0xe]
  %v5618 = vld [vmem:[%s4156 + $0x4c] sm:$0xf]
  %v5619 = vld [vmem:[%s4156 + $0x50] sm:$0x1]
  %v5620 = vld [vmem:[%s4156 + $0x54] sm:$0xe]
  %v5621 = vld [vmem:[%s4156 + $0x58] sm:$0xf]
  %v5622 = vld [vmem:[%s4156 + $0x5c] sm:$0x1]
  %v5623 = vld [vmem:[%s4156 + $0x60] sm:$0xe]
  %v5624 = vld [vmem:[%s4156 + $0x64] sm:$0xf]
  %v5625 = vld [vmem:[%s4156 + $0x68] sm:$0x1]
  %v5626 = vld [vmem:[%s4156 + $0x6c] sm:$0xe]
  %v5627 = vld [vmem:[%s4156 + $0x70] sm:$0xf]
  %v5628 = vld [vmem:[%s4156 + $0x74] sm:$0x1]
  %v5629 = vld [vmem:[%s4156 + $0x78] sm:$0xe]
  %v5630 = vld [vmem:[%s4156 + $0x7c] sm:$0xf]
  %v5631 = vld [vmem:[%s4156 + $0x80] sm:$0x1]
  %v5632 = vld [vmem:[%s4156 + $0x84] sm:$0xe]
  %v5633 = vld [vmem:[%s4156 + $0x88] sm:$0xf]
  %v5634 = vld [vmem:[%s4156 + $0x8c] sm:$0x1]
  %v5635 = vld [vmem:[%s4156 + $0x90] sm:$0xe]
  %v5636 = vld [vmem:[%s4156 + $0x94] sm:$0xf]
  %v5637 = vld [vmem:[%s4156 + $0x98] sm:$0x1]
  %v5638 = vld [vmem:[%s4156 + $0x9c] sm:$0xe]
  %v5639 = vld [vmem:[%s4156 + $0xa0] sm:$0xf]
  %v5640 = vld [vmem:[%s4156 + $0xa4] sm:$0x1]
  %v5641 = vld [vmem:[%s4156 + $0xa8] sm:$0xe]
  %v5642 = vld [vmem:[%s4156 + $0xac] sm:$0xf]
  %v5643 = vld [vmem:[%s4156 + $0xb0] sm:$0x1]
  %v5644 = vld [vmem:[%s4156 + $0xb4] sm:$0xe]
  %v5645 = vld [vmem:[%s4156 + $0xb8] sm:$0xf]
  %v5646 = vld [vmem:[%s4156 + $0xbc] sm:$0x1]
  %v5647 = vld [vmem:[%s4156 + $0xd8] sm:$0xe]
  %v5648 = vld [vmem:[%s4156 + $0xdc] sm:$0xf]
  %v5649 = vld [vmem:[%s4156 + $0xe0] sm:$0x1]
  %v5650 = vld [vmem:[%s4156 + $0xe4] sm:$0xe]
  %v5651 = vld [vmem:[%s4156 + $0xe8] sm:$0xf]
  %v5652 = vld [vmem:[%s4156 + $0xec] sm:$0x1]
  %v5653 = vld [vmem:[%s4156 + $0xf0] sm:$0xe]
  %v5654 = vld [vmem:[%s4156 + $0xf4] sm:$0xf]
  %v5655 = vld [vmem:[%s4156 + $0xf8] sm:$0x1]
  %v5656 = vld [vmem:[%s4156 + $0xfc] sm:$0xe]
  %v5657 = vld [vmem:[%s4156 + $0x100] sm:$0xf]
  %v5658 = vld [vmem:[%s4156 + $0x104] sm:$0x1]
  %v5659 = vld [vmem:[%s4156 + $0x108] sm:$0xe]
  %v5660 = vld [vmem:[%s4156 + $0x10c] sm:$0xf]
  %v5661 = vld [vmem:[%s4156 + $0x110] sm:$0x1]
  %v5662 = vld [vmem:[%s4156 + $0x114] sm:$0xe]
  %v5663 = vld [vmem:[%s4156 + $0x118] sm:$0xf]
  %v5664 = vld [vmem:[%s4156 + $0x11c] sm:$0x1]
  %v5665 = vld [vmem:[%s4156 + $0x120] sm:$0xe]
  %v5666 = vld [vmem:[%s4156 + $0x124] sm:$0xf]
  %v5667 = vld [vmem:[%s4156 + $0x128] sm:$0x1]
  %v5668 = vld [vmem:[%s4156 + $0x12c] sm:$0xe]
  %v5669 = vld [vmem:[%s4156 + $0x130] sm:$0xf]
  %v5670 = vld [vmem:[%s4156 + $0x134] sm:$0x1]
  %v5671 = vld [vmem:[%s4156 + $0x138] sm:$0xe]
  %v5672 = vld [vmem:[%s4156 + $0x13c] sm:$0xf]
  %v5673 = vld [vmem:[%s4156 + $0x140] sm:$0x1]
  %v5674 = vld [vmem:[%s4156 + $0x144] sm:$0xe]
  %v5675 = vld [vmem:[%s4156 + $0x148] sm:$0xf]
  %v5676 = vld [vmem:[%s4156 + $0x14c] sm:$0x1]
  %v5677 = vld [vmem:[%s4156 + $0x150] sm:$0xe]
  %v5678 = vld [vmem:[%s4156 + $0x154] sm:$0xf]
  %v5679 = vld [vmem:[%s4156 + $0x158] sm:$0x1]
  %v5680 = vld [vmem:[%s4156 + $0x15c] sm:$0xe]
  %v5681 = vld [vmem:[%s4156 + $0x160] sm:$0xf]
  %v5682 = vld [vmem:[%s4156 + $0x164] sm:$0x1]
  %v5683 = vld [vmem:[%s4156 + $0x168] sm:$0xe]
  %v5684 = vld [vmem:[%s4156 + $0x16c] sm:$0xf]
  %v5685 = vld [vmem:[%s4156 + $0x170] sm:$0x1]
  %v5686 = vld [vmem:[%s4156 + $0x174] sm:$0xe]
  %v5687 = vld [vmem:[%s4156 + $0x178] sm:$0xf]
  %v5688 = vld [vmem:[%s4156 + $0x17c] sm:$0x1]
  %v5689 = vld [vmem:[%s4156 + $0x180] sm:$0xe]
  %v5690 = vld [vmem:[%s4156 + $0x184] sm:$0xf]
  %v5691 = vld [vmem:[%s4156 + $0x188] sm:$0x1]
  %v5692 = vld [vmem:[%s4156 + $0x18c] sm:$0xe]
  %v5693 = vld [vmem:[%s4156 + $0x190] sm:$0xf]
  %v5694 = vld [vmem:[%s4156 + $0x194] sm:$0x1]
  %v5791 = vrot.slane %v5599, 5
  %v5792 = vrot.slane %v5791, 4
  %v5793 = vrot.slane %v5600, 5
  %v5794 = vsel %vm1622, %v5792, %v5793
  %v5795 = vrot.slane %v5793, 4
  %v5796 = vrot.slane %v5601, 5
  %v5797 = vsel %vm1622, %v5795, %v5796
  %v5798 = vrot.slane %v5602, 5
  %v5799 = vrot.slane %v5798, 4
  %v5800 = vrot.slane %v5603, 5
  %v5801 = vsel %vm1622, %v5799, %v5800
  %v5802 = vrot.slane %v5800, 4
  %v5803 = vrot.slane %v5604, 5
  %v5804 = vsel %vm1622, %v5802, %v5803
  %v5805 = vrot.slane %v5605, 5
  %v5806 = vrot.slane %v5805, 4
  %v5807 = vrot.slane %v5606, 5
  %v5808 = vsel %vm1622, %v5806, %v5807
  %v5809 = vrot.slane %v5807, 4
  %v5810 = vrot.slane %v5607, 5
  %v5811 = vsel %vm1622, %v5809, %v5810
  %v5812 = vrot.slane %v5608, 5
  %v5813 = vrot.slane %v5812, 4
  %v5814 = vrot.slane %v5609, 5
  %v5815 = vsel %vm1622, %v5813, %v5814
  %v5816 = vrot.slane %v5814, 4
  %v5817 = vrot.slane %v5610, 5
  %v5818 = vsel %vm1622, %v5816, %v5817
  %v5819 = vrot.slane %v5611, 5
  %v5820 = vrot.slane %v5819, 4
  %v5821 = vrot.slane %v5612, 5
  %v5822 = vsel %vm1622, %v5820, %v5821
  %v5823 = vrot.slane %v5821, 4
  %v5824 = vrot.slane %v5613, 5
  %v5825 = vsel %vm1622, %v5823, %v5824
  %v5826 = vrot.slane %v5614, 5
  %v5827 = vrot.slane %v5826, 4
  %v5828 = vrot.slane %v5615, 5
  %v5829 = vsel %vm1622, %v5827, %v5828
  %v5830 = vrot.slane %v5828, 4
  %v5831 = vrot.slane %v5616, 5
  %v5832 = vsel %vm1622, %v5830, %v5831
  %v5833 = vrot.slane %v5617, 5
  %v5834 = vrot.slane %v5833, 4
  %v5835 = vrot.slane %v5618, 5
  %v5836 = vsel %vm1622, %v5834, %v5835
  %v5837 = vrot.slane %v5835, 4
  %v5838 = vrot.slane %v5619, 5
  %v5839 = vsel %vm1622, %v5837, %v5838
  %v5840 = vrot.slane %v5620, 5
  %v5841 = vrot.slane %v5840, 4
  %v5842 = vrot.slane %v5621, 5
  %v5843 = vsel %vm1622, %v5841, %v5842
  %v5844 = vrot.slane %v5842, 4
  %v5845 = vrot.slane %v5622, 5
  %v5846 = vsel %vm1622, %v5844, %v5845
  %v5847 = vrot.slane %v5623, 5
  %v5848 = vrot.slane %v5847, 4
  %v5849 = vrot.slane %v5624, 5
  %v5850 = vsel %vm1622, %v5848, %v5849
  %v5851 = vrot.slane %v5849, 4
  %v5852 = vrot.slane %v5625, 5
  %v5853 = vsel %vm1622, %v5851, %v5852
  %v5854 = vrot.slane %v5626, 5
  %v5855 = vrot.slane %v5854, 4
  %v5856 = vrot.slane %v5627, 5
  %v5857 = vsel %vm1622, %v5855, %v5856
  %v5858 = vrot.slane %v5856, 4
  %v5859 = vrot.slane %v5628, 5
  %v5860 = vsel %vm1622, %v5858, %v5859
  %v5861 = vrot.slane %v5629, 5
  %v5862 = vrot.slane %v5861, 4
  %v5863 = vrot.slane %v5630, 5
  %v5864 = vsel %vm1622, %v5862, %v5863
  %v5865 = vrot.slane %v5863, 4
  %v5866 = vrot.slane %v5631, 5
  %v5867 = vsel %vm1622, %v5865, %v5866
  %v5868 = vrot.slane %v5632, 5
  %v5869 = vrot.slane %v5868, 4
  %v5870 = vrot.slane %v5633, 5
  %v5871 = vsel %vm1622, %v5869, %v5870
  %v5872 = vrot.slane %v5870, 4
  %v5873 = vrot.slane %v5634, 5
  %v5874 = vsel %vm1622, %v5872, %v5873
  %v5875 = vrot.slane %v5635, 5
  %v5876 = vrot.slane %v5875, 4
  %v5877 = vrot.slane %v5636, 5
  %v5878 = vsel %vm1622, %v5876, %v5877
  %v5879 = vrot.slane %v5877, 4
  %v5880 = vrot.slane %v5637, 5
  %v5881 = vsel %vm1622, %v5879, %v5880
  %v5882 = vrot.slane %v5638, 5
  %v5883 = vrot.slane %v5882, 4
  %v5884 = vrot.slane %v5639, 5
  %v5885 = vsel %vm1622, %v5883, %v5884
  %v5886 = vrot.slane %v5884, 4
  %v5887 = vrot.slane %v5640, 5
  %v5888 = vsel %vm1622, %v5886, %v5887
  %v5889 = vrot.slane %v5641, 5
  %v5890 = vrot.slane %v5889, 4
  %v5891 = vrot.slane %v5642, 5
  %v5892 = vsel %vm1622, %v5890, %v5891
  %v5893 = vrot.slane %v5891, 4
  %v5894 = vrot.slane %v5643, 5
  %v5895 = vsel %vm1622, %v5893, %v5894
  %v5896 = vrot.slane %v5644, 5
  %v5897 = vrot.slane %v5896, 4
  %v5898 = vrot.slane %v5645, 5
  %v5899 = vsel %vm1622, %v5897, %v5898
  %v5900 = vrot.slane %v5898, 4
  %v5901 = vrot.slane %v5646, 5
  %v5902 = vsel %vm1622, %v5900, %v5901
  %v5903 = vrot.slane %v5647, 5
  %v5904 = vrot.slane %v5903, 4
  %v5905 = vrot.slane %v5648, 5
  %v5906 = vsel %vm1622, %v5904, %v5905
  %v5907 = vrot.slane %v5905, 4
  %v5908 = vrot.slane %v5649, 5
  %v5909 = vsel %vm1622, %v5907, %v5908
  %v5910 = vrot.slane %v5650, 5
  %v5911 = vrot.slane %v5910, 4
  %v5912 = vrot.slane %v5651, 5
  %v5913 = vsel %vm1622, %v5911, %v5912
  %v5914 = vrot.slane %v5912, 4
  %v5915 = vrot.slane %v5652, 5
  %v5916 = vsel %vm1622, %v5914, %v5915
  %v5917 = vrot.slane %v5653, 5
  %v5918 = vrot.slane %v5917, 4
  %v5919 = vrot.slane %v5654, 5
  %v5920 = vsel %vm1622, %v5918, %v5919
  %v5921 = vrot.slane %v5919, 4
  %v5922 = vrot.slane %v5655, 5
  %v5923 = vsel %vm1622, %v5921, %v5922
  %v5924 = vrot.slane %v5656, 5
  %v5925 = vrot.slane %v5924, 4
  %v5926 = vrot.slane %v5657, 5
  %v5927 = vsel %vm1622, %v5925, %v5926
  %v5928 = vrot.slane %v5926, 4
  %v5929 = vrot.slane %v5658, 5
  %v5930 = vsel %vm1622, %v5928, %v5929
  %v5931 = vrot.slane %v5659, 5
  %v5932 = vrot.slane %v5931, 4
  %v5933 = vrot.slane %v5660, 5
  %v5934 = vsel %vm1622, %v5932, %v5933
  %v5935 = vrot.slane %v5933, 4
  %v5936 = vrot.slane %v5661, 5
  %v5937 = vsel %vm1622, %v5935, %v5936
  %v5938 = vrot.slane %v5662, 5
  %v5939 = vrot.slane %v5938, 4
  %v5940 = vrot.slane %v5663, 5
  %v5941 = vsel %vm1622, %v5939, %v5940
  %v5942 = vrot.slane %v5940, 4
  %v5943 = vrot.slane %v5664, 5
  %v5944 = vsel %vm1622, %v5942, %v5943
  %v5945 = vrot.slane %v5665, 5
  %v5946 = vrot.slane %v5945, 4
  %v5947 = vrot.slane %v5666, 5
  %v5948 = vsel %vm1622, %v5946, %v5947
  %v5949 = vrot.slane %v5947, 4
  %v5950 = vrot.slane %v5667, 5
  %v5951 = vsel %vm1622, %v5949, %v5950
  %v5952 = vrot.slane %v5668, 5
  %v5953 = vrot.slane %v5952, 4
  %v5954 = vrot.slane %v5669, 5
  %v5955 = vsel %vm1622, %v5953, %v5954
  %v5956 = vrot.slane %v5954, 4
  %v5957 = vrot.slane %v5670, 5
  %v5958 = vsel %vm1622, %v5956, %v5957
  %v5959 = vrot.slane %v5671, 5
  %v5960 = vrot.slane %v5959, 4
  %v5961 = vrot.slane %v5672, 5
  %v5962 = vsel %vm1622, %v5960, %v5961
  %v5963 = vrot.slane %v5961, 4
  %v5964 = vrot.slane %v5673, 5
  %v5965 = vsel %vm1622, %v5963, %v5964
  %v5966 = vrot.slane %v5674, 5
  %v5967 = vrot.slane %v5966, 4
  %v5968 = vrot.slane %v5675, 5
  %v5969 = vsel %vm1622, %v5967, %v5968
  %v5970 = vrot.slane %v5968, 4
  %v5971 = vrot.slane %v5676, 5
  %v5972 = vsel %vm1622, %v5970, %v5971
  %v5973 = vrot.slane %v5677, 5
  %v5974 = vrot.slane %v5973, 4
  %v5975 = vrot.slane %v5678, 5
  %v5976 = vsel %vm1622, %v5974, %v5975
  %v5977 = vrot.slane %v5975, 4
  %v5978 = vrot.slane %v5679, 5
  %v5979 = vsel %vm1622, %v5977, %v5978
  %v5980 = vrot.slane %v5680, 5
  %v5981 = vrot.slane %v5980, 4
  %v5982 = vrot.slane %v5681, 5
  %v5983 = vsel %vm1622, %v5981, %v5982
  %v5984 = vrot.slane %v5982, 4
  %v5985 = vrot.slane %v5682, 5
  %v5986 = vsel %vm1622, %v5984, %v5985
  %v5987 = vrot.slane %v5683, 5
  %v5988 = vrot.slane %v5987, 4
  %v5989 = vrot.slane %v5684, 5
  %v5990 = vsel %vm1622, %v5988, %v5989
  %v5991 = vrot.slane %v5989, 4
  %v5992 = vrot.slane %v5685, 5
  %v5993 = vsel %vm1622, %v5991, %v5992
  %v5994 = vrot.slane %v5686, 5
  %v5995 = vrot.slane %v5994, 4
  %v5996 = vrot.slane %v5687, 5
  %v5997 = vsel %vm1622, %v5995, %v5996
  %v5998 = vrot.slane %v5996, 4
  %v5999 = vrot.slane %v5688, 5
  %v6000 = vsel %vm1622, %v5998, %v5999
  %v6001 = vrot.slane %v5689, 5
  %v6002 = vrot.slane %v6001, 4
  %v6003 = vrot.slane %v5690, 5
  %v6004 = vsel %vm1622, %v6002, %v6003
  %v6005 = vrot.slane %v6003, 4
  %v6006 = vrot.slane %v5691, 5
  %v6007 = vsel %vm1622, %v6005, %v6006
  %v6008 = vrot.slane %v5692, 5
  %v6009 = vrot.slane %v6008, 4
  %v6010 = vrot.slane %v5693, 5
  %v6011 = vsel %vm1622, %v6009, %v6010
  %v6012 = vrot.slane %v6010, 4
  %v6013 = vrot.slane %v5694, 5
  %v6014 = vsel %vm1622, %v6012, %v6013
  %v6015 = vunpack.c.l.b16 %v5794
  %v6016 = vunpack.c.l.b16 %v5797
  %v6017 = vunpack.c.l.b16 %v5801
  %v6018 = vunpack.c.l.b16 %v5804
  %v6019 = vunpack.c.l.b16 %v5808
  %v6020 = vunpack.c.l.b16 %v5811
  %v6021 = vunpack.c.l.b16 %v5815
  %v6022 = vunpack.c.l.b16 %v5818
  %v6023 = vunpack.c.l.b16 %v5822
  %v6024 = vunpack.c.l.b16 %v5825
  %v6025 = vunpack.c.l.b16 %v5829
  %v6026 = vunpack.c.l.b16 %v5832
  %v6027 = vunpack.c.l.b16 %v5836
  %v6028 = vunpack.c.l.b16 %v5839
  %v6029 = vunpack.c.l.b16 %v5843
  %v6030 = vunpack.c.l.b16 %v5846
  %v6031 = vunpack.c.l.b16 %v5850
  %v6032 = vunpack.c.l.b16 %v5853
  %v6033 = vunpack.c.l.b16 %v5857
  %v6034 = vunpack.c.l.b16 %v5860
  %v6035 = vunpack.c.l.b16 %v5864
  %v6036 = vunpack.c.l.b16 %v5867
  %v6037 = vunpack.c.l.b16 %v5871
  %v6038 = vunpack.c.l.b16 %v5874
  %v6039 = vunpack.c.l.b16 %v5878
  %v6040 = vunpack.c.l.b16 %v5881
  %v6041 = vunpack.c.l.b16 %v5885
  %v6042 = vunpack.c.l.b16 %v5888
  %v6043 = vunpack.c.l.b16 %v5892
  %v6044 = vunpack.c.l.b16 %v5895
  %v6045 = vunpack.c.l.b16 %v5899
  %v6046 = vunpack.c.l.b16 %v5902
  %v6047 = vunpack.c.l.b16 %v5906
  %v6048 = vunpack.c.l.b16 %v5909
  %v6049 = vunpack.c.l.b16 %v5913
  %v6050 = vunpack.c.l.b16 %v5916
  %v6051 = vunpack.c.l.b16 %v5920
  %v6052 = vunpack.c.l.b16 %v5923
  %v6053 = vunpack.c.l.b16 %v5927
  %v6054 = vunpack.c.l.b16 %v5930
  %v6055 = vunpack.c.l.b16 %v5934
  %v6056 = vunpack.c.l.b16 %v5937
  %v6057 = vunpack.c.l.b16 %v5941
  %v6058 = vunpack.c.l.b16 %v5944
  %v6059 = vunpack.c.l.b16 %v5948
  %v6060 = vunpack.c.l.b16 %v5951
  %v6061 = vunpack.c.l.b16 %v5955
  %v6062 = vunpack.c.l.b16 %v5958
  %v6063 = vunpack.c.l.b16 %v5962
  %v6064 = vunpack.c.l.b16 %v5965
  %v6065 = vunpack.c.l.b16 %v5969
  %v6066 = vunpack.c.l.b16 %v5972
  %v6067 = vunpack.c.l.b16 %v5976
  %v6068 = vunpack.c.l.b16 %v5979
  %v6069 = vunpack.c.l.b16 %v5983
  %v6070 = vunpack.c.l.b16 %v5986
  %v6071 = vunpack.c.l.b16 %v5990
  %v6072 = vunpack.c.l.b16 %v5993
  %v6073 = vunpack.c.l.b16 %v5997
  %v6074 = vunpack.c.l.b16 %v6000
  %v6075 = vunpack.c.l.b16 %v6004
  %v6076 = vunpack.c.l.b16 %v6007
  %v6077 = vunpack.c.l.b16 %v6011
  %v6078 = vunpack.c.l.b16 %v6014
  %v6079 = vpack.c.b16 %v6016, %v6015
  %v6080 = vpack.c.b16 %v6018, %v6017
  %v6081 = vpack.c.b16 %v6020, %v6019
  %v6082 = vpack.c.b16 %v6022, %v6021
  %v6083 = vpack.c.b16 %v6024, %v6023
  %v6084 = vpack.c.b16 %v6026, %v6025
  %v6085 = vpack.c.b16 %v6028, %v6027
  %v6086 = vpack.c.b16 %v6030, %v6029
  %v6087 = vpack.c.b16 %v6032, %v6031
  %v6088 = vpack.c.b16 %v6034, %v6033
  %v6089 = vpack.c.b16 %v6036, %v6035
  %v6090 = vpack.c.b16 %v6038, %v6037
  %v6091 = vpack.c.b16 %v6040, %v6039
  %v6092 = vpack.c.b16 %v6042, %v6041
  %v6093 = vpack.c.b16 %v6044, %v6043
  %v6094 = vpack.c.b16 %v6046, %v6045
  %v6095 = vpack.c.b16 %v6048, %v6047
  %v6096 = vpack.c.b16 %v6050, %v6049
  %v6097 = vpack.c.b16 %v6052, %v6051
  %v6098 = vpack.c.b16 %v6054, %v6053
  %v6099 = vpack.c.b16 %v6056, %v6055
  %v6100 = vpack.c.b16 %v6058, %v6057
  %v6101 = vpack.c.b16 %v6060, %v6059
  %v6102 = vpack.c.b16 %v6062, %v6061
  %v6103 = vpack.c.b16 %v6064, %v6063
  %v6104 = vpack.c.b16 %v6066, %v6065
  %v6105 = vpack.c.b16 %v6068, %v6067
  %v6106 = vpack.c.b16 %v6070, %v6069
  %v6107 = vpack.c.b16 %v6072, %v6071
  %v6108 = vpack.c.b16 %v6074, %v6073
  %v6109 = vpack.c.b16 %v6076, %v6075
  %v6110 = vpack.c.b16 %v6078, %v6077
  %6111 = vrot.lane.b32.xlu0 %v6079, 32
  %v6112 = vpop.permute.xlu0 %6111
  %6113 = vrot.lane.b32.xlu0 %v6080, 32
  %v6114 = vpop.permute.xlu0 %6113
  %6115 = vrot.lane.b32.xlu0 %v6081, 32
  %v6116 = vpop.permute.xlu0 %6115
  %6117 = vrot.lane.b32.xlu0 %v6082, 32
  %v6118 = vpop.permute.xlu0 %6117
  %6119 = vrot.lane.b32.xlu0 %v6083, 32
  %v6120 = vpop.permute.xlu0 %6119
  %6121 = vrot.lane.b32.xlu0 %v6084, 32
  %v6122 = vpop.permute.xlu0 %6121
  %6123 = vrot.lane.b32.xlu0 %v6085, 32
  %v6124 = vpop.permute.xlu0 %6123
  %6125 = vrot.lane.b32.xlu0 %v6086, 32
  %v6126 = vpop.permute.xlu0 %6125
  %6127 = vrot.lane.b32.xlu0 %v6087, 32
  %v6128 = vpop.permute.xlu0 %6127
  %6129 = vrot.lane.b32.xlu0 %v6088, 32
  %v6130 = vpop.permute.xlu0 %6129
  %6131 = vrot.lane.b32.xlu0 %v6089, 32
  %v6132 = vpop.permute.xlu0 %6131
  %6133 = vrot.lane.b32.xlu0 %v6090, 32
  %v6134 = vpop.permute.xlu0 %6133
  %6135 = vrot.lane.b32.xlu0 %v6091, 32
  %v6136 = vpop.permute.xlu0 %6135
  %6137 = vrot.lane.b32.xlu0 %v6092, 32
  %v6138 = vpop.permute.xlu0 %6137
  %6139 = vrot.lane.b32.xlu0 %v6093, 32
  %v6140 = vpop.permute.xlu0 %6139
  %6141 = vrot.lane.b32.xlu0 %v6094, 32
  %v6142 = vpop.permute.xlu0 %6141
  %6143 = vrot.lane.b32.xlu0 %v6095, 32
  %v6144 = vpop.permute.xlu0 %6143
  %6145 = vrot.lane.b32.xlu0 %v6096, 32
  %v6146 = vpop.permute.xlu0 %6145
  %6147 = vrot.lane.b32.xlu0 %v6097, 32
  %v6148 = vpop.permute.xlu0 %6147
  %6149 = vrot.lane.b32.xlu0 %v6098, 32
  %v6150 = vpop.permute.xlu0 %6149
  %6151 = vrot.lane.b32.xlu0 %v6099, 32
  %v6152 = vpop.permute.xlu0 %6151
  %6153 = vrot.lane.b32.xlu0 %v6100, 32
  %v6154 = vpop.permute.xlu0 %6153
  %6155 = vrot.lane.b32.xlu0 %v6101, 32
  %v6156 = vpop.permute.xlu0 %6155
  %6157 = vrot.lane.b32.xlu0 %v6102, 32
  %v6158 = vpop.permute.xlu0 %6157
  %6159 = vrot.lane.b32.xlu0 %v6103, 32
  %v6160 = vpop.permute.xlu0 %6159
  %6161 = vrot.lane.b32.xlu0 %v6104, 32
  %v6162 = vpop.permute.xlu0 %6161
  %6163 = vrot.lane.b32.xlu0 %v6105, 32
  %v6164 = vpop.permute.xlu0 %6163
  %6165 = vrot.lane.b32.xlu0 %v6106, 32
  %v6166 = vpop.permute.xlu0 %6165
  %6167 = vrot.lane.b32.xlu0 %v6107, 32
  %v6168 = vpop.permute.xlu0 %6167
  %6169 = vrot.lane.b32.xlu0 %v6108, 32
  %v6170 = vpop.permute.xlu0 %6169
  %6171 = vrot.lane.b32.xlu0 %v6109, 32
  %v6172 = vpop.permute.xlu0 %6171
  %6173 = vrot.lane.b32.xlu0 %v6110, 32
  %v6174 = vpop.permute.xlu0 %6173
  %vm6207 = vcmask 294144
  %6208 = vst.msk [vmem:[#allocation2] sm:$0xff] %vm6207, %v6112
  %6209 = vst.msk [vmem:[#allocation2 + $0x8] sm:$0xff] %vm6207, %v6114
  %6210 = vst.msk [vmem:[#allocation2 + $0x10] sm:$0xff] %vm6207, %v6116
  %6211 = vst.msk [vmem:[#allocation2 + $0x18] sm:$0xff] %vm6207, %v6118
  %6212 = vst.msk [vmem:[#allocation2 + $0x20] sm:$0xff] %vm6207, %v6120
  %6213 = vst.msk [vmem:[#allocation2 + $0x28] sm:$0xff] %vm6207, %v6122
  %6214 = vst.msk [vmem:[#allocation2 + $0x30] sm:$0xff] %vm6207, %v6124
  %6215 = vst.msk [vmem:[#allocation2 + $0x38] sm:$0xff] %vm6207, %v6126
  %6216 = vst.msk [vmem:[#allocation2 + $0x40] sm:$0xff] %vm6207, %v6128
  %6217 = vst.msk [vmem:[#allocation2 + $0x48] sm:$0xff] %vm6207, %v6130
  %6218 = vst.msk [vmem:[#allocation2 + $0x50] sm:$0xff] %vm6207, %v6132
  %6219 = vst.msk [vmem:[#allocation2 + $0x58] sm:$0xff] %vm6207, %v6134
  %6220 = vst.msk [vmem:[#allocation2 + $0x60] sm:$0xff] %vm6207, %v6136
  %6221 = vst.msk [vmem:[#allocation2 + $0x68] sm:$0xff] %vm6207, %v6138
  %6222 = vst.msk [vmem:[#allocation2 + $0x70] sm:$0xff] %vm6207, %v6140
  %6223 = vst.msk [vmem:[#allocation2 + $0x78] sm:$0xff] %vm6207, %v6142
  %6224 = vst.msk [vmem:[#allocation2 + $0x80] sm:$0xff] %vm6207, %v6144
  %6225 = vst.msk [vmem:[#allocation2 + $0x88] sm:$0xff] %vm6207, %v6146
  %6226 = vst.msk [vmem:[#allocation2 + $0x90] sm:$0xff] %vm6207, %v6148
  %6227 = vst.msk [vmem:[#allocation2 + $0x98] sm:$0xff] %vm6207, %v6150
  %6228 = vst.msk [vmem:[#allocation2 + $0xa0] sm:$0xff] %vm6207, %v6152
  %6229 = vst.msk [vmem:[#allocation2 + $0xa8] sm:$0xff] %vm6207, %v6154
  %6230 = vst.msk [vmem:[#allocation2 + $0xb0] sm:$0xff] %vm6207, %v6156
  %6231 = vst.msk [vmem:[#allocation2 + $0xb8] sm:$0xff] %vm6207, %v6158
  %6232 = vst.msk [vmem:[#allocation2 + $0xc0] sm:$0xff] %vm6207, %v6160
  %6233 = vst.msk [vmem:[#allocation2 + $0xc8] sm:$0xff] %vm6207, %v6162
  %6234 = vst.msk [vmem:[#allocation2 + $0xd0] sm:$0xff] %vm6207, %v6164
  %6235 = vst.msk [vmem:[#allocation2 + $0xd8] sm:$0xff] %vm6207, %v6166
  %6236 = vst.msk [vmem:[#allocation2 + $0xe0] sm:$0xff] %vm6207, %v6168
  %6237 = vst.msk [vmem:[#allocation2 + $0xe8] sm:$0xff] %vm6207, %v6170
  %6238 = vst.msk [vmem:[#allocation2 + $0xf0] sm:$0xff] %vm6207, %v6172
  %6239 = vst.msk [vmem:[#allocation2 + $0xf8] sm:$0xff] %vm6207, %v6174
  %v6240 = vld [vmem:[#allocation2] sm:$0xff]
  %v6241 = vld [vmem:[#allocation2 + $0x8] sm:$0xff]
  %v6242 = vld [vmem:[#allocation2 + $0x10] sm:$0xff]
  %v6243 = vld [vmem:[#allocation2 + $0x18] sm:$0xff]
  %v6244 = vld [vmem:[#allocation2 + $0x20] sm:$0xff]
  %v6245 = vld [vmem:[#allocation2 + $0x28] sm:$0xff]
  %v6246 = vld [vmem:[#allocation2 + $0x30] sm:$0xff]
  %v6247 = vld [vmem:[#allocation2 + $0x38] sm:$0xff]
  %v6248 = vld [vmem:[#allocation2 + $0x40] sm:$0xff]
  %v6249 = vld [vmem:[#allocation2 + $0x48] sm:$0xff]
  %v6250 = vld [vmem:[#allocation2 + $0x50] sm:$0xff]
  %v6251 = vld [vmem:[#allocation2 + $0x58] sm:$0xff]
  %v6252 = vld [vmem:[#allocation2 + $0x60] sm:$0xff]
  %v6253 = vld [vmem:[#allocation2 + $0x68] sm:$0xff]
  %v6254 = vld [vmem:[#allocation2 + $0x70] sm:$0xff]
  %v6255 = vld [vmem:[#allocation2 + $0x78] sm:$0xff]
  %v6256 = vld [vmem:[#allocation2 + $0x80] sm:$0xff]
  %v6257 = vld [vmem:[#allocation2 + $0x88] sm:$0xff]
  %v6258 = vld [vmem:[#allocation2 + $0x90] sm:$0xff]
  %v6259 = vld [vmem:[#allocation2 + $0x98] sm:$0xff]
  %v6260 = vld [vmem:[#allocation2 + $0xa0] sm:$0xff]
  %v6261 = vld [vmem:[#allocation2 + $0xa8] sm:$0xff]
  %v6262 = vld [vmem:[#allocation2 + $0xb0] sm:$0xff]
  %v6263 = vld [vmem:[#allocation2 + $0xb8] sm:$0xff]
  %v6264 = vld [vmem:[#allocation2 + $0xc0] sm:$0xff]
  %v6265 = vld [vmem:[#allocation2 + $0xc8] sm:$0xff]
  %v6266 = vld [vmem:[#allocation2 + $0xd0] sm:$0xff]
  %v6267 = vld [vmem:[#allocation2 + $0xd8] sm:$0xff]
  %v6268 = vld [vmem:[#allocation2 + $0xe0] sm:$0xff]
  %v6269 = vld [vmem:[#allocation2 + $0xe8] sm:$0xff]
  %v6270 = vld [vmem:[#allocation2 + $0xf0] sm:$0xff]
  %v6271 = vld [vmem:[#allocation2 + $0xf8] sm:$0xff]
  %v6272 = vld [vmem:[%s1] sm:$0xf]
  %v6273 = vld [vmem:[%s1 + $0x4] sm:$0xf]
  %v6274 = vld [vmem:[%s1 + $0x8] sm:$0xf]
  %v6275 = vld [vmem:[%s1 + $0xc] sm:$0xf]
  %v6276 = vld [vmem:[%s1 + $0x10] sm:$0xf]
  %v6277 = vld [vmem:[%s1 + $0x14] sm:$0xf]
  %v6278 = vld [vmem:[%s1 + $0x18] sm:$0xf]
  %v6279 = vld [vmem:[%s1 + $0x1c] sm:$0xf]
  %v6280 = vld [vmem:[%s1 + $0x20] sm:$0xf]
  %v6281 = vld [vmem:[%s1 + $0x24] sm:$0xf]
  %v6282 = vld [vmem:[%s1 + $0x28] sm:$0xf]
  %v6283 = vld [vmem:[%s1 + $0x2c] sm:$0xf]
  %v6284 = vld [vmem:[%s1 + $0x30] sm:$0xf]
  %v6285 = vld [vmem:[%s1 + $0x34] sm:$0xf]
  %v6286 = vld [vmem:[%s1 + $0x38] sm:$0xf]
  %v6287 = vld [vmem:[%s1 + $0x3c] sm:$0xf]
  %v6304 = vunpack.c.l.b16 %v6272
  %v6305 = vunpack.c.l.b16 %v6273
  %v6306 = vunpack.c.l.b16 %v6274
  %v6307 = vunpack.c.l.b16 %v6275
  %v6308 = vunpack.c.l.b16 %v6276
  %v6309 = vunpack.c.l.b16 %v6277
  %v6310 = vunpack.c.l.b16 %v6278
  %v6311 = vunpack.c.l.b16 %v6279
  %v6312 = vunpack.c.l.b16 %v6280
  %v6313 = vunpack.c.l.b16 %v6281
  %v6314 = vunpack.c.l.b16 %v6282
  %v6315 = vunpack.c.l.b16 %v6283
  %v6316 = vunpack.c.l.b16 %v6284
  %v6317 = vunpack.c.l.b16 %v6285
  %v6318 = vunpack.c.l.b16 %v6286
  %v6319 = vunpack.c.l.b16 %v6287
  %v6320 = vpack.c.b16 %v6305, %v6304
  %v6321 = vpack.c.b16 %v6307, %v6306
  %v6322 = vpack.c.b16 %v6309, %v6308
  %v6323 = vpack.c.b16 %v6311, %v6310
  %v6324 = vpack.c.b16 %v6313, %v6312
  %v6325 = vpack.c.b16 %v6315, %v6314
  %v6326 = vpack.c.b16 %v6317, %v6316
  %v6327 = vpack.c.b16 %v6319, %v6318
  %6336 = vmatprep.subr.bf16.mxu0 0
  %6337 = vmatpush1.bf16.msra.mxu0 %v6320
  %6338 = vmatprep.subr.bf16.mxu0 0
  %6339 = vmatpush1.bf16.msra.mxu0 %v6321
  %6340 = vmatprep.subr.bf16.mxu0 0
  %6341 = vmatpush1.bf16.msra.mxu0 %v6322
  %6342 = vmatprep.subr.bf16.mxu0 0
  %6343 = vmatpush1.bf16.msra.mxu0 %v6323
  %6344 = vmatprep.subr.bf16.mxu0 0
  %6345 = vmatpush1.bf16.msra.mxu0 %v6324
  %6346 = vmatprep.subr.bf16.mxu0 0
  %6347 = vmatpush1.bf16.msra.mxu0 %v6325
  %6348 = vmatprep.subr.bf16.mxu0 0
  %6349 = vmatpush1.bf16.msra.mxu0 %v6326
  %6350 = vmatprep.subr.bf16.mxu0 0
  %6351 = vmatpush1.bf16.msra.mxu0 %v6327
  %6352 = vmatprep.subr.bf16.mxu0 0
  %6353 = vmatpush1.bf16.msra.mxu0 0
  %6354 = vmatprep.subr.bf16.mxu0 0
  %6355 = vmatpush1.bf16.msra.mxu0 0
  %6356 = vmatprep.subr.bf16.mxu0 0
  %6357 = vmatpush1.bf16.msra.mxu0 0
  %6358 = vmatprep.subr.bf16.mxu0 0
  %6359 = vmatpush1.bf16.msra.mxu0 0
  %6360 = vmatprep.subr.bf16.mxu0 0
  %6361 = vmatpush1.bf16.msra.mxu0 0
  %6362 = vmatprep.subr.bf16.mxu0 0
  %6363 = vmatpush1.bf16.msra.mxu0 0
  %6364 = vmatprep.subr.bf16.mxu0 0
  %6365 = vmatpush1.bf16.msra.mxu0 0
  %6366 = vmatprep.subr.bf16.mxu0 0
  %6367 = vmatpush1.bf16.msra.mxu0 0
  %6368 = vmatprep.mubr.bf16.mxu0 0
  %6369 = vmatmul.mubr.bf16.gmra.mrb[0].mxu0 %v6240
  %v6370 = vpop.f32.mrb[0].mxu0
  %v6371 = vadd.f32 0.0, %v6370
  %v6372 = vpop.f32.mrb[0].mxu0
  %v6373 = vpop.f32.mrb[0].mxu0
  %v6374 = vadd.f32 0.0, %v6373
  %v6375 = vpop.f32.mrb[0].mxu0
  %6376 = vmatprep.mubr.bf16.mxu0 0
  %6377 = vmatmul.mubr.bf16.gmra.mrb[0].mxu0 %v6241
  %v6378 = vpop.f32.mrb[0].mxu0
  %v6379 = vadd.f32 0.0, %v6378
  %v6380 = vpop.f32.mrb[0].mxu0
  %v6381 = vpop.f32.mrb[0].mxu0
  %v6382 = vadd.f32 0.0, %v6381
  %v6383 = vpop.f32.mrb[0].mxu0
  %6384 = vmatprep.mubr.bf16.mxu0 0
  %6385 = vmatmul.mubr.bf16.gmra.mrb[0].mxu0 %v6242
  %v6386 = vpop.f32.mrb[0].mxu0
  %v6387 = vadd.f32 0.0, %v6386
  %v6388 = vpop.f32.mrb[0].mxu0
  %v6389 = vpop.f32.mrb[0].mxu0
  %v6390 = vadd.f32 0.0, %v6389
  %v6391 = vpop.f32.mrb[0].mxu0
  %6392 = vmatprep.mubr.bf16.mxu0 0
  %6393 = vmatmul.mubr.bf16.gmra.mrb[0].mxu0 %v6243
  %v6394 = vpop.f32.mrb[0].mxu0
  %v6395 = vadd.f32 0.0, %v6394
  %v6396 = vpop.f32.mrb[0].mxu0
  %v6397 = vpop.f32.mrb[0].mxu0
  %v6398 = vadd.f32 0.0, %v6397
  %v6399 = vpop.f32.mrb[0].mxu0
  %6400 = vmatprep.mubr.bf16.mxu0 0
  %6401 = vmatmul.mubr.bf16.gmra.mrb[0].mxu0 %v6244
  %v6402 = vpop.f32.mrb[0].mxu0
  %v6403 = vadd.f32 0.0, %v6402
  %v6404 = vpop.f32.mrb[0].mxu0
  %v6405 = vpop.f32.mrb[0].mxu0
  %v6406 = vadd.f32 0.0, %v6405
  %v6407 = vpop.f32.mrb[0].mxu0
  %6408 = vmatprep.mubr.bf16.mxu0 0
  %6409 = vmatmul.mubr.bf16.gmra.mrb[0].mxu0 %v6245
  %v6410 = vpop.f32.mrb[0].mxu0
  %v6411 = vadd.f32 0.0, %v6410
  %v6412 = vpop.f32.mrb[0].mxu0
  %v6413 = vpop.f32.mrb[0].mxu0
  %v6414 = vadd.f32 0.0, %v6413
  %v6415 = vpop.f32.mrb[0].mxu0
  %6416 = vmatprep.mubr.bf16.mxu0 0
  %6417 = vmatmul.mubr.bf16.gmra.mrb[0].mxu0 %v6246
  %v6418 = vpop.f32.mrb[0].mxu0
  %v6419 = vadd.f32 0.0, %v6418
  %v6420 = vpop.f32.mrb[0].mxu0
  %v6421 = vpop.f32.mrb[0].mxu0
  %v6422 = vadd.f32 0.0, %v6421
  %v6423 = vpop.f32.mrb[0].mxu0
  %6424 = vmatprep.mubr.bf16.mxu0 0
  %6425 = vmatmul.mubr.bf16.gmra.mrb[0].mxu0 %v6247
  %v6426 = vpop.f32.mrb[0].mxu0
  %v6427 = vadd.f32 0.0, %v6426
  %v6428 = vpop.f32.mrb[0].mxu0
  %v6429 = vpop.f32.mrb[0].mxu0
  %v6430 = vadd.f32 0.0, %v6429
  %v6431 = vpop.f32.mrb[0].mxu0
  %6432 = vmatprep.mubr.bf16.mxu0 0
  %6433 = vmatmul.mubr.bf16.gmra.mrb[0].mxu0 %v6248
  %v6434 = vpop.f32.mrb[0].mxu0
  %v6435 = vadd.f32 0.0, %v6434
  %v6436 = vpop.f32.mrb[0].mxu0
  %v6437 = vpop.f32.mrb[0].mxu0
  %v6438 = vadd.f32 0.0, %v6437
  %v6439 = vpop.f32.mrb[0].mxu0
  %6440 = vmatprep.mubr.bf16.mxu0 0
  %6441 = vmatmul.mubr.bf16.gmra.mrb[0].mxu0 %v6249
  %v6442 = vpop.f32.mrb[0].mxu0
  %v6443 = vadd.f32 0.0, %v6442
  %v6444 = vpop.f32.mrb[0].mxu0
  %v6445 = vpop.f32.mrb[0].mxu0
  %v6446 = vadd.f32 0.0, %v6445
  %v6447 = vpop.f32.mrb[0].mxu0
  %6448 = vmatprep.mubr.bf16.mxu0 0
  %6449 = vmatmul.mubr.bf16.gmra.mrb[0].mxu0 %v6250
  %v6450 = vpop.f32.mrb[0].mxu0
  %v6451 = vadd.f32 0.0, %v6450
  %v6452 = vpop.f32.mrb[0].mxu0
  %v6453 = vpop.f32.mrb[0].mxu0
  %v6454 = vadd.f32 0.0, %v6453
  %v6455 = vpop.f32.mrb[0].mxu0
  %6456 = vmatprep.mubr.bf16.mxu0 0
  %6457 = vmatmul.mubr.bf16.gmra.mrb[0].mxu0 %v6251
  %v6458 = vpop.f32.mrb[0].mxu0
  %v6459 = vadd.f32 0.0, %v6458
  %v6460 = vpop.f32.mrb[0].mxu0
  %v6461 = vpop.f32.mrb[0].mxu0
  %v6462 = vadd.f32 0.0, %v6461
  %v6463 = vpop.f32.mrb[0].mxu0
  %6464 = vmatprep.mubr.bf16.mxu0 0
  %6465 = vmatmul.mubr.bf16.gmra.mrb[0].mxu0 %v6252
  %v6466 = vpop.f32.mrb[0].mxu0
  %v6467 = vadd.f32 0.0, %v6466
  %v6468 = vpop.f32.mrb[0].mxu0
  %v6469 = vpop.f32.mrb[0].mxu0
  %v6470 = vadd.f32 0.0, %v6469
  %v6471 = vpop.f32.mrb[0].mxu0
  %6472 = vmatprep.mubr.bf16.mxu0 0
  %6473 = vmatmul.mubr.bf16.gmra.mrb[0].mxu0 %v6253
  %v6474 = vpop.f32.mrb[0].mxu0
  %v6475 = vadd.f32 0.0, %v6474
  %v6476 = vpop.f32.mrb[0].mxu0
  %v6477 = vpop.f32.mrb[0].mxu0
  %v6478 = vadd.f32 0.0, %v6477
  %v6479 = vpop.f32.mrb[0].mxu0
  %6480 = vmatprep.mubr.bf16.mxu0 0
  %6481 = vmatmul.mubr.bf16.gmra.mrb[0].mxu0 %v6254
  %v6482 = vpop.f32.mrb[0].mxu0
  %v6483 = vadd.f32 0.0, %v6482
  %v6484 = vpop.f32.mrb[0].mxu0
  %v6485 = vpop.f32.mrb[0].mxu0
  %v6486 = vadd.f32 0.0, %v6485
  %v6487 = vpop.f32.mrb[0].mxu0
  %6488 = vmatprep.mubr.bf16.mxu0 0
  %6489 = vmatmul.mubr.bf16.gmra.mrb[0].mxu0 %v6255
  %v6490 = vpop.f32.mrb[0].mxu0
  %v6491 = vadd.f32 0.0, %v6490
  %v6492 = vpop.f32.mrb[0].mxu0
  %v6493 = vpop.f32.mrb[0].mxu0
  %v6494 = vadd.f32 0.0, %v6493
  %v6495 = vpop.f32.mrb[0].mxu0
  %6496 = vmatprep.mubr.bf16.mxu0 0
  %6497 = vmatmul.mubr.bf16.gmra.mrb[0].mxu0 %v6256
  %v6498 = vpop.f32.mrb[0].mxu0
  %v6499 = vadd.f32 0.0, %v6498
  %v6500 = vpop.f32.mrb[0].mxu0
  %v6501 = vpop.f32.mrb[0].mxu0
  %v6502 = vadd.f32 0.0, %v6501
  %v6503 = vpop.f32.mrb[0].mxu0
  %6504 = vmatprep.mubr.bf16.mxu0 0
  %6505 = vmatmul.mubr.bf16.gmra.mrb[0].mxu0 %v6257
  %v6506 = vpop.f32.mrb[0].mxu0
  %v6507 = vadd.f32 0.0, %v6506
  %v6508 = vpop.f32.mrb[0].mxu0
  %v6509 = vpop.f32.mrb[0].mxu0
  %v6510 = vadd.f32 0.0, %v6509
  %v6511 = vpop.f32.mrb[0].mxu0
  %6512 = vmatprep.mubr.bf16.mxu0 0
  %6513 = vmatmul.mubr.bf16.gmra.mrb[0].mxu0 %v6258
  %v6514 = vpop.f32.mrb[0].mxu0
  %v6515 = vadd.f32 0.0, %v6514
  %v6516 = vpop.f32.mrb[0].mxu0
  %v6517 = vpop.f32.mrb[0].mxu0
  %v6518 = vadd.f32 0.0, %v6517
  %v6519 = vpop.f32.mrb[0].mxu0
  %6520 = vmatprep.mubr.bf16.mxu0 0
  %6521 = vmatmul.mubr.bf16.gmra.mrb[0].mxu0 %v6259
  %v6522 = vpop.f32.mrb[0].mxu0
  %v6523 = vadd.f32 0.0, %v6522
  %v6524 = vpop.f32.mrb[0].mxu0
  %v6525 = vpop.f32.mrb[0].mxu0
  %v6526 = vadd.f32 0.0, %v6525
  %v6527 = vpop.f32.mrb[0].mxu0
  %6528 = vmatprep.mubr.bf16.mxu0 0
  %6529 = vmatmul.mubr.bf16.gmra.mrb[0].mxu0 %v6260
  %v6530 = vpop.f32.mrb[0].mxu0
  %v6531 = vadd.f32 0.0, %v6530
  %v6532 = vpop.f32.mrb[0].mxu0
  %v6533 = vpop.f32.mrb[0].mxu0
  %v6534 = vadd.f32 0.0, %v6533
  %v6535 = vpop.f32.mrb[0].mxu0
  %6536 = vmatprep.mubr.bf16.mxu0 0
  %6537 = vmatmul.mubr.bf16.gmra.mrb[0].mxu0 %v6261
  %v6538 = vpop.f32.mrb[0].mxu0
  %v6539 = vadd.f32 0.0, %v6538
  %v6540 = vpop.f32.mrb[0].mxu0
  %v6541 = vpop.f32.mrb[0].mxu0
  %v6542 = vadd.f32 0.0, %v6541
  %v6543 = vpop.f32.mrb[0].mxu0
  %6544 = vmatprep.mubr.bf16.mxu0 0
  %6545 = vmatmul.mubr.bf16.gmra.mrb[0].mxu0 %v6262
  %v6546 = vpop.f32.mrb[0].mxu0
  %v6547 = vadd.f32 0.0, %v6546
  %v6548 = vpop.f32.mrb[0].mxu0
  %v6549 = vpop.f32.mrb[0].mxu0
  %v6550 = vadd.f32 0.0, %v6549
  %v6551 = vpop.f32.mrb[0].mxu0
  %6552 = vmatprep.mubr.bf16.mxu0 0
  %6553 = vmatmul.mubr.bf16.gmra.mrb[0].mxu0 %v6263
  %v6554 = vpop.f32.mrb[0].mxu0
  %v6555 = vadd.f32 0.0, %v6554
  %v6556 = vpop.f32.mrb[0].mxu0
  %v6557 = vpop.f32.mrb[0].mxu0
  %v6558 = vadd.f32 0.0, %v6557
  %v6559 = vpop.f32.mrb[0].mxu0
  %6560 = vmatprep.mubr.bf16.mxu0 0
  %6561 = vmatmul.mubr.bf16.gmra.mrb[0].mxu0 %v6264
  %v6562 = vpop.f32.mrb[0].mxu0
  %v6563 = vadd.f32 0.0, %v6562
  %v6564 = vpop.f32.mrb[0].mxu0
  %v6565 = vpop.f32.mrb[0].mxu0
  %v6566 = vadd.f32 0.0, %v6565
  %v6567 = vpop.f32.mrb[0].mxu0
  %6568 = vmatprep.mubr.bf16.mxu0 0
  %6569 = vmatmul.mubr.bf16.gmra.mrb[0].mxu0 %v6265
  %v6570 = vpop.f32.mrb[0].mxu0
  %v6571 = vadd.f32 0.0, %v6570
  %v6572 = vpop.f32.mrb[0].mxu0
  %v6573 = vpop.f32.mrb[0].mxu0
  %v6574 = vadd.f32 0.0, %v6573
  %v6575 = vpop.f32.mrb[0].mxu0
  %6576 = vmatprep.mubr.bf16.mxu0 0
  %6577 = vmatmul.mubr.bf16.gmra.mrb[0].mxu0 %v6266
  %v6578 = vpop.f32.mrb[0].mxu0
  %v6579 = vadd.f32 0.0, %v6578
  %v6580 = vpop.f32.mrb[0].mxu0
  %v6581 = vpop.f32.mrb[0].mxu0
  %v6582 = vadd.f32 0.0, %v6581
  %v6583 = vpop.f32.mrb[0].mxu0
  %6584 = vmatprep.mubr.bf16.mxu0 0
  %6585 = vmatmul.mubr.bf16.gmra.mrb[0].mxu0 %v6267
  %v6586 = vpop.f32.mrb[0].mxu0
  %v6587 = vadd.f32 0.0, %v6586
  %v6588 = vpop.f32.mrb[0].mxu0
  %v6589 = vpop.f32.mrb[0].mxu0
  %v6590 = vadd.f32 0.0, %v6589
  %v6591 = vpop.f32.mrb[0].mxu0
  %6592 = vmatprep.mubr.bf16.mxu0 0
  %6593 = vmatmul.mubr.bf16.gmra.mrb[0].mxu0 %v6268
  %v6594 = vpop.f32.mrb[0].mxu0
  %v6595 = vadd.f32 0.0, %v6594
  %v6596 = vpop.f32.mrb[0].mxu0
  %v6597 = vpop.f32.mrb[0].mxu0
  %v6598 = vadd.f32 0.0, %v6597
  %v6599 = vpop.f32.mrb[0].mxu0
  %6600 = vmatprep.mubr.bf16.mxu0 0
  %6601 = vmatmul.mubr.bf16.gmra.mrb[0].mxu0 %v6269
  %v6602 = vpop.f32.mrb[0].mxu0
  %v6603 = vadd.f32 0.0, %v6602
  %v6604 = vpop.f32.mrb[0].mxu0
  %v6605 = vpop.f32.mrb[0].mxu0
  %v6606 = vadd.f32 0.0, %v6605
  %v6607 = vpop.f32.mrb[0].mxu0
  %6608 = vmatprep.mubr.bf16.mxu0 0
  %6609 = vmatmul.mubr.bf16.gmra.mrb[0].mxu0 %v6270
  %v6610 = vpop.f32.mrb[0].mxu0
  %v6611 = vadd.f32 0.0, %v6610
  %v6612 = vpop.f32.mrb[0].mxu0
  %v6613 = vpop.f32.mrb[0].mxu0
  %v6614 = vadd.f32 0.0, %v6613
  %v6615 = vpop.f32.mrb[0].mxu0
  %6616 = vmatprep.mubr.bf16.mxu0 0
  %6617 = vmatmul.mubr.bf16.gmra.mrb[0].mxu0 %v6271
  %v6618 = vpop.f32.mrb[0].mxu0
  %v6619 = vadd.f32 0.0, %v6618
  %v6620 = vpop.f32.mrb[0].mxu0
  %v6621 = vpop.f32.mrb[0].mxu0
  %v6622 = vadd.f32 0.0, %v6621
  %v6623 = vpop.f32.mrb[0].mxu0
  %6624 = vdwg.mxu0
  %6625 = vxpose.xlu0.b32.start [1/16] %v6371, 128
  %6626 = vxpose.xlu0.b32.cont [2/16] %v6374, 128
  %6627 = vxpose.xlu0.b32.cont [3/16] %v6379, 128
  %6628 = vxpose.xlu0.b32.cont [4/16] %v6382, 128
  %6629 = vxpose.xlu0.b32.cont [5/16] %v6387, 128
  %6630 = vxpose.xlu0.b32.cont [6/16] %v6390, 128
  %6631 = vxpose.xlu0.b32.cont [7/16] %v6395, 128
  %6632 = vxpose.xlu0.b32.cont [8/16] %v6398, 128
  %6633 = vxpose.xlu0.b32.cont [9/16] %v6403, 128
  %6634 = vxpose.xlu0.b32.cont [10/16] %v6406, 128
  %6635 = vxpose.xlu0.b32.cont [11/16] %v6411, 128
  %6636 = vxpose.xlu0.b32.cont [12/16] %v6414, 128
  %6637 = vxpose.xlu0.b32.cont [13/16] %v6419, 128
  %6638 = vxpose.xlu0.b32.cont [14/16] %v6422, 128
  %6639 = vxpose.xlu0.b32.cont [15/16] %v6427, 128
  %6640 = vxpose.xlu0.b32.end [16/16] %v6430, 128
  %v6641 = vpop.trf.xlu0
  %v6642 = vpop.trf.xlu0
  %v6643 = vpop.trf.xlu0
  %v6644 = vpop.trf.xlu0
  %v6645 = vpop.trf.xlu0
  %v6646 = vpop.trf.xlu0
  %v6647 = vpop.trf.xlu0
  %v6648 = vpop.trf.xlu0
  %v6649 = vpop.trf.xlu0
  %v6650 = vpop.trf.xlu0
  %v6651 = vpop.trf.xlu0
  %v6652 = vpop.trf.xlu0
  %v6653 = vpop.trf.xlu0
  %v6654 = vpop.trf.xlu0
  %v6655 = vpop.trf.xlu0
  %v6656 = vpop.trf.xlu0
  %6657 = vxpose.xlu0.b32.start [1/16] %v6435, 128
  %6658 = vxpose.xlu0.b32.cont [2/16] %v6438, 128
  %6659 = vxpose.xlu0.b32.cont [3/16] %v6443, 128
  %6660 = vxpose.xlu0.b32.cont [4/16] %v6446, 128
  %6661 = vxpose.xlu0.b32.cont [5/16] %v6451, 128
  %6662 = vxpose.xlu0.b32.cont [6/16] %v6454, 128
  %6663 = vxpose.xlu0.b32.cont [7/16] %v6459, 128
  %6664 = vxpose.xlu0.b32.cont [8/16] %v6462, 128
  %6665 = vxpose.xlu0.b32.cont [9/16] %v6467, 128
  %6666 = vxpose.xlu0.b32.cont [10/16] %v6470, 128
  %6667 = vxpose.xlu0.b32.cont [11/16] %v6475, 128
  %6668 = vxpose.xlu0.b32.cont [12/16] %v6478, 128
  %6669 = vxpose.xlu0.b32.cont [13/16] %v6483, 128
  %6670 = vxpose.xlu0.b32.cont [14/16] %v6486, 128
  %6671 = vxpose.xlu0.b32.cont [15/16] %v6491, 128
  %6672 = vxpose.xlu0.b32.end [16/16] %v6494, 128
  %v6673 = vpop.trf.xlu0
  %v6674 = vpop.trf.xlu0
  %v6675 = vpop.trf.xlu0
  %v6676 = vpop.trf.xlu0
  %v6677 = vpop.trf.xlu0
  %v6678 = vpop.trf.xlu0
  %v6679 = vpop.trf.xlu0
  %v6680 = vpop.trf.xlu0
  %v6681 = vpop.trf.xlu0
  %v6682 = vpop.trf.xlu0
  %v6683 = vpop.trf.xlu0
  %v6684 = vpop.trf.xlu0
  %v6685 = vpop.trf.xlu0
  %v6686 = vpop.trf.xlu0
  %v6687 = vpop.trf.xlu0
  %v6688 = vpop.trf.xlu0
  %v6689 = vld [vmem:[%s2] sm:$0xff]
  %6691 = vset.pattern.permute.xlu0 0
  %6692 = vperm.xlu0 %6691, %v6689
  %v6693 = vpop.permute.xlu0 %6692
  %v6695 = vadd.f32 %v6641, %v6693
  %v6696 = vadd.f32 %v6673, %v6693
  %6697 = vst [vmem:[%s3] sm:$0xff] %v6695
  %6698 = vst [vmem:[%s3 + $0x8] sm:$0xff] %v6696
  %6699 = vxpose.xlu0.b32.start [1/16] %v6499, 128
  %6700 = vxpose.xlu0.b32.cont [2/16] %v6502, 128
  %6701 = vxpose.xlu0.b32.cont [3/16] %v6507, 128
  %6702 = vxpose.xlu0.b32.cont [4/16] %v6510, 128
  %6703 = vxpose.xlu0.b32.cont [5/16] %v6515, 128
  %6704 = vxpose.xlu0.b32.cont [6/16] %v6518, 128
  %6705 = vxpose.xlu0.b32.cont [7/16] %v6523, 128
  %6706 = vxpose.xlu0.b32.cont [8/16] %v6526, 128
  %6707 = vxpose.xlu0.b32.cont [9/16] %v6531, 128
  %6708 = vxpose.xlu0.b32.cont [10/16] %v6534, 128
  %6709 = vxpose.xlu0.b32.cont [11/16] %v6539, 128
  %6710 = vxpose.xlu0.b32.cont [12/16] %v6542, 128
  %6711 = vxpose.xlu0.b32.cont [13/16] %v6547, 128
  %6712 = vxpose.xlu0.b32.cont [14/16] %v6550, 128
  %6713 = vxpose.xlu0.b32.cont [15/16] %v6555, 128
  %6714 = vxpose.xlu0.b32.end [16/16] %v6558, 128
  %v6715 = vpop.trf.xlu0
  %v6716 = vpop.trf.xlu0
  %v6717 = vpop.trf.xlu0
  %v6718 = vpop.trf.xlu0
  %v6719 = vpop.trf.xlu0
  %v6720 = vpop.trf.xlu0
  %v6721 = vpop.trf.xlu0
  %v6722 = vpop.trf.xlu0
  %v6723 = vpop.trf.xlu0
  %v6724 = vpop.trf.xlu0
  %v6725 = vpop.trf.xlu0
  %v6726 = vpop.trf.xlu0
  %v6727 = vpop.trf.xlu0
  %v6728 = vpop.trf.xlu0
  %v6729 = vpop.trf.xlu0
  %v6730 = vpop.trf.xlu0
  %6731 = vxpose.xlu0.b32.start [1/16] %v6563, 128
  %6732 = vxpose.xlu0.b32.cont [2/16] %v6566, 128
  %6733 = vxpose.xlu0.b32.cont [3/16] %v6571, 128
  %6734 = vxpose.xlu0.b32.cont [4/16] %v6574, 128
  %6735 = vxpose.xlu0.b32.cont [5/16] %v6579, 128
  %6736 = vxpose.xlu0.b32.cont [6/16] %v6582, 128
  %6737 = vxpose.xlu0.b32.cont [7/16] %v6587, 128
  %6738 = vxpose.xlu0.b32.cont [8/16] %v6590, 128
  %6739 = vxpose.xlu0.b32.cont [9/16] %v6595, 128
  %6740 = vxpose.xlu0.b32.cont [10/16] %v6598, 128
  %6741 = vxpose.xlu0.b32.cont [11/16] %v6603, 128
  %6742 = vxpose.xlu0.b32.cont [12/16] %v6606, 128
  %6743 = vxpose.xlu0.b32.cont [13/16] %v6611, 128
  %6744 = vxpose.xlu0.b32.cont [14/16] %v6614, 128
  %6745 = vxpose.xlu0.b32.cont [15/16] %v6619, 128
  %6746 = vxpose.xlu0.b32.end [16/16] %v6622, 128
  %v6747 = vpop.trf.xlu0
  %v6748 = vpop.trf.xlu0
  %v6749 = vpop.trf.xlu0
  %v6750 = vpop.trf.xlu0
  %v6751 = vpop.trf.xlu0
  %v6752 = vpop.trf.xlu0
  %v6753 = vpop.trf.xlu0
  %v6754 = vpop.trf.xlu0
  %v6755 = vpop.trf.xlu0
  %v6756 = vpop.trf.xlu0
  %v6757 = vpop.trf.xlu0
  %v6758 = vpop.trf.xlu0
  %v6759 = vpop.trf.xlu0
  %v6760 = vpop.trf.xlu0
  %v6761 = vpop.trf.xlu0
  %v6762 = vpop.trf.xlu0
  %v6763 = vld [vmem:[%s2] sm:$0xff]
  %6765 = vset.pattern.permute.xlu0 0
  %6766 = vperm.xlu0 %6765, %v6763
  %v6767 = vpop.permute.xlu0 %6766
  %v6769 = vadd.f32 %v6715, %v6767
  %v6770 = vadd.f32 %v6747, %v6767
  %s6771 = scalar_lea.vmem %s3, 16
  %6772 = vst [vmem:[%s6771] sm:$0xff] %v6769
  %6773 = vst [vmem:[%s6771 + $0x8] sm:$0xff] %v6770
  // Predicated region
  $region14: #{faster_conv2d.1} parent=0 // pred_check
    _
  $region15: #{faster_conv2d.1} parent=0 // pred_check_branch
    %6775 = sbr.rel (0) target = $region17
  $region16: #{faster_conv2d.1} parent=0 // pred_region
    _
  $region17: #{faster_conv2d.1} parent=0 // pred_fallthru
    _
  // Predicated region
  $region18: #{faster_conv2d.1} parent=0 // pred_check
    _
  $region19: #{faster_conv2d.1} parent=0 // pred_check_branch
    %6777 = sbr.rel (0) target = $region21
  $region20: #{faster_conv2d.1} parent=0 // pred_region
    _
  $region21: #{faster_conv2d.1} parent=0 // pred_fallthru
    _

</llo_original>
